<compile_context>
chip_gen: v7x
topology: tpu7x:2x2x1
jax: 0.10.0
libtpu: 0.0.40
codegen_flags: <defaults>
</compile_context>

<pallas_src>
import functools

import jax
import jax.numpy as jnp
from jax import lax
from jax.experimental import pallas as pl
from jax.experimental.pallas import tpu as pltpu


# ----------------------------- kernel -------------------------------------- #

def _lstm_kernel(x_ref, w1i_ref, w1h_ref, b1_ref, w2i_ref, w2h_ref, b2_ref,
                 wfc_ref, bfc_ref, out_ref,
                 gx_ref, h1_ref, c1_ref, h2_ref, c2_ref, *, unroll):
    chunk = pl.program_id(0)
    Bp, Hp = h1_ref.shape
    Tc = gx_ref.shape[0] // Bp
    four_Hp = gx_ref.shape[1]

    @pl.when(chunk == 0)
    def _init():
        h1_ref[...] = jnp.zeros_like(h1_ref)
        c1_ref[...] = jnp.zeros_like(c1_ref)
        h2_ref[...] = jnp.zeros_like(h2_ref)
        c2_ref[...] = jnp.zeros_like(c2_ref)

    # Chunk prologue: batched layer-1 input projection for all Tc timesteps
    # (one MXU-shaped (Tc*Bp, Dp) @ (Dp, 4Hp) matmul), bias b1 folded in.
    # x_ref is already bf16 (cast once in the wrapper).
    gx_ref[...] = (
        jnp.dot(x_ref[...], w1i_ref[...], preferred_element_type=jnp.float32)
        + b1_ref[...])

    # Hoist the layer-2 bias broadcast out of the recurrence loop.
    b2 = jnp.broadcast_to(b2_ref[...], (Bp, four_Hp))

    def gates_to_hc(gates, c_prev):
        # Hp is a multiple of 128 -> every slice below is lane-aligned.
        i = jax.nn.sigmoid(gates[:, 0 * Hp:1 * Hp])
        f = jax.nn.sigmoid(gates[:, 1 * Hp:2 * Hp])
        g = jnp.tanh(gates[:, 2 * Hp:3 * Hp])
        o = jax.nn.sigmoid(gates[:, 3 * Hp:4 * Hp])
        c_new = f * c_prev + i * g
        h_new = o * jnp.tanh(c_new)
        return h_new, c_new

    def step(t, carry):
        h1, c1, h2, c2 = carry
        # h2_{t-1} @ W2_hh depends only on the previous step's h2: issue it
        # first so it overlaps the layer-1 recurrent matmul below (shortens
        # the serial MXU chain); the bias add is also off the tail.
        g2_pre = jnp.dot(h2.astype(w2h_ref.dtype), w2h_ref[...],
                         preferred_element_type=jnp.float32) + b2
        row = pl.multiple_of(t * Bp, Bp)            # Bp is a multiple of 8
        gx_t = gx_ref[pl.ds(row, Bp), :]
        # Layer 1: only the recurrent matmul remains in the serial chain.
        gates1 = gx_t + jnp.dot(h1.astype(w1h_ref.dtype), w1h_ref[...],
                                preferred_element_type=jnp.float32)
        h1, c1 = gates_to_hc(gates1, c1)
        # Layer 2: remaining input-side matmul (no concat, split dot).
        gates2 = g2_pre + jnp.dot(h1.astype(w2i_ref.dtype), w2i_ref[...],
                                  preferred_element_type=jnp.float32)
        h2, c2 = gates_to_hc(gates2, c2)
        return h1, c1, h2, c2

    # TODO(synk): at production Hp (>=512) tile the 4Hp gate dimension
    # (per-gate column blocks of W1_hh / W2_*) so live temporaries stay
    # (Bp, Hp) and vreg pressure is bounded.
    carry0 = (h1_ref[...], c1_ref[...], h2_ref[...], c2_ref[...])
    h1, c1, h2, c2 = lax.fori_loop(0, Tc, step, carry0, unroll=unroll)

    # Persist state across chunks.
    h1_ref[...] = h1
    c1_ref[...] = c1
    h2_ref[...] = h2
    c2_ref[...] = c2

    @pl.when(chunk == pl.num_programs(0) - 1)
    def _final():
        out_ref[...] = (jnp.dot(h2.astype(wfc_ref.dtype), wfc_ref[...],
                                preferred_element_type=jnp.float32)
                        + bfc_ref[...])


# ----------------------------- wrapper -------------------------------------- #

def _round_up(x, m):
    return (x + m - 1) // m * m


def _pad_gate_mat(w, rows_p, H, Hp):
    """(rows, 4H) in PyTorch gate order [i,f,g,o] -> zero-padded (rows_p, 4Hp).

    Each H-wide gate block is padded to Hp so gate slices land on 128-lane
    boundaries; padded lanes produce exactly-zero h/c (sigmoid(0)*tanh(0)=0).
    """
    rows = w.shape[0]
    w4 = w.reshape(rows, 4, H)
    out = jnp.zeros((rows_p, 4, Hp), w.dtype)
    out = out.at[:rows, :, :H].set(w4)
    return out.reshape(rows_p, 4 * Hp)


def _vmem_limit_bytes():
    kind = jax.devices()[0].device_kind.lower()
    if "v7" in kind:
        return 56 * 1024 * 1024      # v7x: 64 MiB physical VMEM per TC
    if "v5" in kind or "v6" in kind:
        return 100 * 1024 * 1024     # v5e/v5p/v6e: 128 MiB physical VMEM
    return None                      # unknown/older chip: keep compiler default


def _pick_time_chunk(T, per_step_bytes, static_bytes, vmem_limit):
    """Largest divisor of T whose gx/x footprint fits ~60% of the VMEM limit."""
    effective = vmem_limit if vmem_limit is not None else 32 * 1024 * 1024
    budget = int(0.6 * effective)
    tc_max = max(1, (budget - static_bytes) // per_step_bytes)
    tc = 1
    for d in range(1, T + 1):
        if T % d == 0 and d <= tc_max:
            tc = d
    return tc


def lstm_model_forward(x, params, *, time_chunk=None,
                       matmul_dtype=jnp.bfloat16):
    """x: (B, T, D) float32 (batch_first, like the PyTorch module).

    Returns (B, O) float32.
    """
    B, T, D = x.shape
    H = params["w1h"].shape[0]
    O = params["wfc"].shape[1]

    LANE, SUB = 128, 8
    Bp = _round_up(B, SUB)
    Dp = _round_up(D, LANE)
    Hp = _round_up(H, LANE)
    Op = _round_up(O, LANE)

    mm_bytes = jnp.dtype(matmul_dtype).itemsize
    vmem_limit = _vmem_limit_bytes()

    if time_chunk is None:
        # gx scratch (f32) + double-buffered bf16 x chunk scale with Tc;
        # weights / biases / state scratch do not.
        per_step = Bp * 4 * Hp * 4 + 2 * Bp * Dp * mm_bytes
        static = ((Dp + 3 * Hp) * 4 * Hp + Hp * Op) * mm_bytes \
                 + (2 * 4 * Hp + Op) * 4 + 4 * Bp * Hp * 4
        time_chunk = _pick_time_chunk(T, per_step, static, vmem_limit)
    Tc = time_chunk
    assert T % Tc == 0, "time_chunk must divide T"
    n_chunks = T // Tc
    # Partial unroll: LLO scheduling visibility with bounded vreg pressure.
    unroll = max(1, min(Tc, 8))

    # ---- layout plumbing (done once, in XLA) ----
    # x -> (T, Bp, Dp) zero-padded, flattened to (T*Bp, Dp) so each chunk is a
    # lane-dense, sublane-aligned (Tc*Bp, Dp) slab; cast to bf16 (MXU operand).
    xp = jnp.zeros((T, Bp, Dp), jnp.float32)
    xp = xp.at[:, :B, :D].set(jnp.transpose(x, (1, 0, 2)))
    x2d = xp.reshape(T * Bp, Dp).astype(matmul_dtype)

    f32 = jnp.float32
    w1i = _pad_gate_mat(params["w1i"], Dp, H, Hp).astype(matmul_dtype)
    w1h = _pad_gate_mat(params["w1h"], Hp, H, Hp).astype(matmul_dtype)
    b1 = _pad_gate_mat(params["b1"], 1, H, Hp).astype(f32)
    w2i = _pad_gate_mat(params["w2i"], Hp, H, Hp).astype(matmul_dtype)
    w2h = _pad_gate_mat(params["w2h"], Hp, H, Hp).astype(matmul_dtype)
    b2 = _pad_gate_mat(params["b2"], 1, H, Hp).astype(f32)
    wfc = jnp.zeros((Hp, Op), f32).at[:H, :O].set(params["wfc"]).astype(matmul_dtype)
    bfc = jnp.zeros((1, Op), f32).at[:, :O].set(params["bfc"])

    # Constant operands: whole array resident in VMEM, single-buffered
    # (no double-buffering of never-changing blocks).
    vmem_resident = lambda: pl.BlockSpec(memory_space=pltpu.MemorySpace.VMEM)

    cp_kwargs = dict(dimension_semantics=("arbitrary",))   # serial recurrence
    if vmem_limit is not None:
        cp_kwargs["vmem_limit_bytes"] = vmem_limit

    out_padded = pl.pallas_call(
        functools.partial(_lstm_kernel, unroll=unroll),
        out_shape=jax.ShapeDtypeStruct((Bp, Op), jnp.float32),
        grid_spec=pltpu.PrefetchScalarGridSpec(
            num_scalar_prefetch=0,
            grid=(n_chunks,),
            in_specs=[
                pl.BlockSpec((Tc * Bp, Dp), lambda c: (c, 0)),   # streamed x
                vmem_resident(),   # W1_ih
                vmem_resident(),   # W1_hh
                vmem_resident(),   # b1 (= b_ih + b_hh)
                vmem_resident(),   # W2_ih
                vmem_resident(),   # W2_hh
                vmem_resident(),   # b2
                vmem_resident(),   # fc weight
                vmem_resident(),   # fc bias
            ],
            out_specs=pl.BlockSpec((Bp, Op), lambda c: (0, 0)),
            scratch_shapes=[
                pltpu.VMEM((Tc * Bp, 4 * Hp), jnp.float32),  # gx (x proj + b1)
                pltpu.VMEM((Bp, Hp), jnp.float32),           # h1
                pltpu.VMEM((Bp, Hp), jnp.float32),           # c1
                pltpu.VMEM((Bp, Hp), jnp.float32),           # h2
                pltpu.VMEM((Bp, Hp), jnp.float32),           # c2
            ],
        ),
        compiler_params=pltpu.CompilerParams(**cp_kwargs),
        # TODO(synk): v7x — split Bp across the 2 TensorCores (batch grid axis /
        # core_map) when B is large, and/or precompute gx outside the kernel and
        # stream it (bf16) via a BlockSpec if VMEM is still tight.
        # TODO(synk): v6e/v7x — optionally run the gate elementwise math in bf16
        # (keep c and matmul accumulation in f32) after precision validation.
    )(x2d, w1i, w1h, b1, w2i, w2h, b2, wfc, bfc)

    return out_padded[:B, :O]


# ----------------------------- reference ------------------------------------ #

def _reference_forward(x, params, matmul_dtype=jnp.float32):
    """Pure-JAX reference reproducing PyTorch nn.LSTM semantics.

    matmul_dtype=bf16 mimics the kernel's precision policy (bf16 MXU operands,
    f32 accumulation/state) for a tight apples-to-apples check.
    """
    B, T, D = x.shape
    H = params["w1h"].shape[0]

    def mm(a, b):
        return jnp.dot(a.astype(matmul_dtype), b.astype(matmul_dtype),
                       preferred_element_type=jnp.float32)

    def cell(h, c, inp, wi, wh, b):
        gates = mm(inp, wi) + mm(h, wh) + b
        i = jax.nn.sigmoid(gates[:, 0 * H:1 * H])
        f = jax.nn.sigmoid(gates[:, 1 * H:2 * H])
        g = jnp.tanh(gates[:, 2 * H:3 * H])
        o = jax.nn.sigmoid(gates[:, 3 * H:4 * H])
        c_new = f * c + i * g
        h_new = o * jnp.tanh(c_new)
        return h_new, c_new

    h1 = c1 = h2 = c2 = jnp.zeros((B, H), jnp.float32)
    for t in range(T):
        h1, c1 = cell(h1, c1, x[:, t, :],
                      params["w1i"], params["w1h"], params["b1"])
        h2, c2 = cell(h2, c2, h1,
                      params["w2i"], params["w2h"], params["b2"])
    return mm(h2, params["wfc"]) + params["bfc"]


def init_params(key, input_size, hidden_size, output_size):
    H = hidden_size
    k = 1.0 / jnp.sqrt(jnp.float32(H))
    keys = jax.random.split(key, 10)
    u = lambda kk, shape: jax.random.uniform(kk, shape, jnp.float32, -k, k)
    return {
        "w1i": u(keys[0], (input_size, 4 * H)),
        "w1h": u(keys[1], (H, 4 * H)),
        "b1":  u(keys[2], (1, 4 * H)) + u(keys[3], (1, 4 * H)),  # b_ih + b_hh
        "w2i": u(keys[4], (H, 4 * H)),
        "w2h": u(keys[5], (H, 4 * H)),
        "b2":  u(keys[6], (1, 4 * H)) + u(keys[7], (1, 4 * H)),
        "wfc": u(keys[8], (H, output_size)),
        "bfc": u(keys[9], (1, output_size)),
    }


if __name__ == "__main__":
    B, T, D, H, O = 2, 8, 4, 32, 1

    key = jax.random.PRNGKey(0)
    kx, kp = jax.random.split(key)
    x = jax.random.normal(kx, (B, T, D), jnp.float32)
    params = init_params(kp, D, H, O)

    # time_chunk=4 -> grid=(2,): exercises cross-chunk state persistence.
    out = lstm_model_forward(x, params, time_chunk=4)
    out = jax.block_until_ready(out)
    assert out.shape == (B, O)

    # Auto (VMEM-budgeted) chunk-size path must agree.
    out_auto = jax.block_until_ready(lstm_model_forward(x, params))
    assert jnp.allclose(out, out_auto, rtol=1e-5, atol=1e-5), (out, out_auto)

    # Matched-precision reference (bf16 MXU operands, f32 accumulate): tight.
    ref_matched = _reference_forward(x, params, matmul_dtype=jnp.bfloat16)
    assert jnp.allclose(out, ref_matched, rtol=5e-3, atol=5e-3), (out, ref_matched)

    # Full-f32 PyTorch-semantics reference: loose tol due to bf16 matmuls.
    ref_f32 = _reference_forward(x, params)
    assert jnp.allclose(out, ref_f32, rtol=5e-2, atol=5e-2), (out, ref_f32)

    print("KERNEL_OK")
</pallas_src>

<mosaic_0001>
module attributes {stable_mosaic.version = 11 : i64} {
  func.func @_lstm_kernel(%arg0: i32, %arg1: memref<32x128xbf16, #tpu.memory_space<vmem>>, %arg2: memref<128x512xbf16, #tpu.memory_space<vmem>>, %arg3: memref<128x512xbf16, #tpu.memory_space<vmem>>, %arg4: memref<1x512xf32, #tpu.memory_space<vmem>>, %arg5: memref<128x512xbf16, #tpu.memory_space<vmem>>, %arg6: memref<128x512xbf16, #tpu.memory_space<vmem>>, %arg7: memref<1x512xf32, #tpu.memory_space<vmem>>, %arg8: memref<128x128xbf16, #tpu.memory_space<vmem>>, %arg9: memref<1x128xf32, #tpu.memory_space<vmem>>, %arg10: memref<8x128xf32, #tpu.memory_space<vmem>>, %arg11: memref<32x512xf32, #tpu.memory_space<vmem>>, %arg12: memref<8x128xf32, #tpu.memory_space<vmem>>, %arg13: memref<8x128xf32, #tpu.memory_space<vmem>>, %arg14: memref<8x128xf32, #tpu.memory_space<vmem>>, %arg15: memref<8x128xf32, #tpu.memory_space<vmem>>) attributes {dimension_semantics = [#tpu.dimension_semantics<arbitrary>], iteration_bounds = array<i64: 2>, scalar_prefetch = 0 : i64, scratch_operands = 5 : i64, tpu.core_type = #tpu.core_type<tc>, window_params = [{transform_indices = @transform_0, window_bounds = array<i64: 32, 128>}, {pipeline_mode = #tpu.pipeline_mode<synchronous>, transform_indices = @transform_1, window_bounds = array<i64: 128, 512>}, {pipeline_mode = #tpu.pipeline_mode<synchronous>, transform_indices = @transform_2, window_bounds = array<i64: 128, 512>}, {pipeline_mode = #tpu.pipeline_mode<synchronous>, transform_indices = @transform_3, window_bounds = array<i64: 1, 512>}, {pipeline_mode = #tpu.pipeline_mode<synchronous>, transform_indices = @transform_4, window_bounds = array<i64: 128, 512>}, {pipeline_mode = #tpu.pipeline_mode<synchronous>, transform_indices = @transform_5, window_bounds = array<i64: 128, 512>}, {pipeline_mode = #tpu.pipeline_mode<synchronous>, transform_indices = @transform_6, window_bounds = array<i64: 1, 512>}, {pipeline_mode = #tpu.pipeline_mode<synchronous>, transform_indices = @transform_7, window_bounds = array<i64: 128, 128>}, {pipeline_mode = #tpu.pipeline_mode<synchronous>, transform_indices = @transform_8, window_bounds = array<i64: 1, 128>}, {pipeline_mode = #tpu.pipeline_mode<synchronous>, transform_indices = @transform_9, window_bounds = array<i64: 8, 128>}]} {
    %c0_i32 = arith.constant 0 : i32
    %0 = arith.cmpi eq, %arg0, %c0_i32 : i32
    %1 = arith.extui %0 : i1 to i32
    %c0_i32_0 = arith.constant 0 : i32
    %2 = arith.cmpi ne, %1, %c0_i32_0 : i32
    scf.if %2 {
      %cst_96 = arith.constant 0.000000e+00 : f32
      %288 = vector.broadcast %cst_96 : f32 to vector<8x128xf32>
      %c0_97 = arith.constant 0 : index
      %c0_98 = arith.constant 0 : index
      %289 = vector.load %arg12[%c0_97, %c0_98] : memref<8x128xf32, #tpu.memory_space<vmem>>, vector<8x128xf32>
      tpu.vector_store %arg12[%c0_97, %c0_98], %288 {strides = array<i32>} : memref<8x128xf32, #tpu.memory_space<vmem>>, vector<8x128xf32>,
      %cst_99 = arith.constant 0.000000e+00 : f32
      %290 = vector.broadcast %cst_99 : f32 to vector<8x128xf32>
      %c0_100 = arith.constant 0 : index
      %c0_101 = arith.constant 0 : index
      %291 = vector.load %arg13[%c0_100, %c0_101] : memref<8x128xf32, #tpu.memory_space<vmem>>, vector<8x128xf32>
      tpu.vector_store %arg13[%c0_100, %c0_101], %290 {strides = array<i32>} : memref<8x128xf32, #tpu.memory_space<vmem>>, vector<8x128xf32>,
      %cst_102 = arith.constant 0.000000e+00 : f32
      %292 = vector.broadcast %cst_102 : f32 to vector<8x128xf32>
      %c0_103 = arith.constant 0 : index
      %c0_104 = arith.constant 0 : index
      %293 = vector.load %arg14[%c0_103, %c0_104] : memref<8x128xf32, #tpu.memory_space<vmem>>, vector<8x128xf32>
      tpu.vector_store %arg14[%c0_103, %c0_104], %292 {strides = array<i32>} : memref<8x128xf32, #tpu.memory_space<vmem>>, vector<8x128xf32>,
      %cst_105 = arith.constant 0.000000e+00 : f32
      %294 = vector.broadcast %cst_105 : f32 to vector<8x128xf32>
      %c0_106 = arith.constant 0 : index
      %c0_107 = arith.constant 0 : index
      %295 = vector.load %arg15[%c0_106, %c0_107] : memref<8x128xf32, #tpu.memory_space<vmem>>, vector<8x128xf32>
      tpu.vector_store %arg15[%c0_106, %c0_107], %294 {strides = array<i32>} : memref<8x128xf32, #tpu.memory_space<vmem>>, vector<8x128xf32>,
    } else {
    }
    %c0 = arith.constant 0 : index
    %c0_1 = arith.constant 0 : index
    %3 = vector.load %arg1[%c0, %c0_1] : memref<32x128xbf16, #tpu.memory_space<vmem>>, vector<32x128xbf16>
    %c0_2 = arith.constant 0 : index
    %c0_3 = arith.constant 0 : index
    %4 = vector.load %arg2[%c0_2, %c0_3] : memref<128x512xbf16, #tpu.memory_space<vmem>>, vector<128x512xbf16>
    %cst = arith.constant dense<0.000000e+00> : vector<32x512xf32>
    %5 = tpu.matmul %3, %4, %cst {dimension_numbers = #tpu.dot_dimension_numbers<[1], [0], [0], [1], [0, 0, 1, 1], [], []>} : vector<32x128xbf16>, vector<128x512xbf16>, vector<32x512xf32> -> vector<32x512xf32>
    %c0_4 = arith.constant 0 : index
    %c0_5 = arith.constant 0 : index
    %6 = vector.load %arg4[%c0_4, %c0_5] : memref<1x512xf32, #tpu.memory_space<vmem>>, vector<1x512xf32>
    %7 = vector.broadcast %6 : vector<1x512xf32> to vector<32x512xf32>
    %8 = arith.addf %5, %7 : vector<32x512xf32>
    %c0_6 = arith.constant 0 : index
    %c0_7 = arith.constant 0 : index
    %9 = vector.load %arg11[%c0_6, %c0_7] : memref<32x512xf32, #tpu.memory_space<vmem>>, vector<32x512xf32>
    tpu.vector_store %arg11[%c0_6, %c0_7], %8 {strides = array<i32>} : memref<32x512xf32, #tpu.memory_space<vmem>>, vector<32x512xf32>,
    %c0_8 = arith.constant 0 : index
    %c0_9 = arith.constant 0 : index
    %10 = vector.load %arg7[%c0_8, %c0_9] : memref<1x512xf32, #tpu.memory_space<vmem>>, vector<1x512xf32>
    %11 = vector.shape_cast %10 : vector<1x512xf32> to vector<1x512xf32>
    %12 = vector.broadcast %11 : vector<1x512xf32> to vector<8x512xf32>
    %c0_10 = arith.constant 0 : index
    %c0_11 = arith.constant 0 : index
    %13 = vector.load %arg12[%c0_10, %c0_11] : memref<8x128xf32, #tpu.memory_space<vmem>>, vector<8x128xf32>
    %c0_12 = arith.constant 0 : index
    %c0_13 = arith.constant 0 : index
    %14 = vector.load %arg13[%c0_12, %c0_13] : memref<8x128xf32, #tpu.memory_space<vmem>>, vector<8x128xf32>
    %c0_14 = arith.constant 0 : index
    %c0_15 = arith.constant 0 : index
    %15 = vector.load %arg14[%c0_14, %c0_15] : memref<8x128xf32, #tpu.memory_space<vmem>>, vector<8x128xf32>
    %c0_16 = arith.constant 0 : index
    %c0_17 = arith.constant 0 : index
    %16 = vector.load %arg15[%c0_16, %c0_17] : memref<8x128xf32, #tpu.memory_space<vmem>>, vector<8x128xf32>
    %c0_i32_18 = arith.constant 0 : i32
    %17 = arith.truncf %15 : vector<8x128xf32> to vector<8x128xbf16>
    %c0_19 = arith.constant 0 : index
    %c0_20 = arith.constant 0 : index
    %18 = vector.load %arg6[%c0_19, %c0_20] : memref<128x512xbf16, #tpu.memory_space<vmem>>, vector<128x512xbf16>
    %cst_21 = arith.constant dense<0.000000e+00> : vector<8x512xf32>
    %19 = tpu.matmul %17, %18, %cst_21 {dimension_numbers = #tpu.dot_dimension_numbers<[1], [0], [0], [1], [0, 0, 1, 1], [], []>} : vector<8x128xbf16>, vector<128x512xbf16>, vector<8x512xf32> -> vector<8x512xf32>
    %20 = arith.addf %19, %12 : vector<8x512xf32>
    %c8_i32 = arith.constant 8 : i32
    %21 = arith.muli %c0_i32_18, %c8_i32 : i32
    %22 = tpu.assume_multiple %21, 8 : i32
    %23 = arith.index_cast %22 : i32 to index
    %c0_22 = arith.constant 0 : index
    %24 = vector.load %arg11[%23, %c0_22] : memref<32x512xf32, #tpu.memory_space<vmem>>, vector<8x512xf32>
    %25 = arith.truncf %13 : vector<8x128xf32> to vector<8x128xbf16>
    %c0_23 = arith.constant 0 : index
    %c0_24 = arith.constant 0 : index
    %26 = vector.load %arg3[%c0_23, %c0_24] : memref<128x512xbf16, #tpu.memory_space<vmem>>, vector<128x512xbf16>
    %cst_25 = arith.constant dense<0.000000e+00> : vector<8x512xf32>
    %27 = tpu.matmul %25, %26, %cst_25 {dimension_numbers = #tpu.dot_dimension_numbers<[1], [0], [0], [1], [0, 0, 1, 1], [], []>} : vector<8x128xbf16>, vector<128x512xbf16>, vector<8x512xf32> -> vector<8x512xf32>
    %28 = arith.addf %24, %27 : vector<8x512xf32>
    %29 = vector.extract_strided_slice %28 {offsets = [0, 0], sizes = [8, 128], strides = [1, 1]} : vector<8x512xf32> to vector<8x128xf32>
    %30 = arith.negf %29 : vector<8x128xf32>
    %31 = math.exp %30 : vector<8x128xf32>
    %cst_26 = arith.constant 1.000000e+00 : f32
    %32 = vector.broadcast %cst_26 : f32 to vector<8x128xf32>
    %33 = arith.addf %32, %31 : vector<8x128xf32>
    %34 = arith.divf %32, %33 : vector<8x128xf32>
    %35 = vector.extract_strided_slice %28 {offsets = [0, 128], sizes = [8, 128], strides = [1, 1]} : vector<8x512xf32> to vector<8x128xf32>
    %36 = arith.negf %35 : vector<8x128xf32>
    %37 = math.exp %36 : vector<8x128xf32>
    %cst_27 = arith.constant 1.000000e+00 : f32
    %38 = vector.broadcast %cst_27 : f32 to vector<8x128xf32>
    %39 = arith.addf %38, %37 : vector<8x128xf32>
    %40 = arith.divf %38, %39 : vector<8x128xf32>
    %41 = vector.extract_strided_slice %28 {offsets = [0, 256], sizes = [8, 128], strides = [1, 1]} : vector<8x512xf32> to vector<8x128xf32>
    %42 = math.tanh %41 : vector<8x128xf32>
    %43 = vector.extract_strided_slice %28 {offsets = [0, 384], sizes = [8, 128], strides = [1, 1]} : vector<8x512xf32> to vector<8x128xf32>
    %44 = arith.negf %43 : vector<8x128xf32>
    %45 = math.exp %44 : vector<8x128xf32>
    %cst_28 = arith.constant 1.000000e+00 : f32
    %46 = vector.broadcast %cst_28 : f32 to vector<8x128xf32>
    %47 = arith.addf %46, %45 : vector<8x128xf32>
    %48 = arith.divf %46, %47 : vector<8x128xf32>
    %49 = arith.mulf %40, %14 : vector<8x128xf32>
    %50 = arith.mulf %34, %42 : vector<8x128xf32>
    %51 = arith.addf %49, %50 : vector<8x128xf32>
    %52 = math.tanh %51 : vector<8x128xf32>
    %53 = arith.mulf %48, %52 : vector<8x128xf32>
    %54 = arith.truncf %53 : vector<8x128xf32> to vector<8x128xbf16>
    %c0_29 = arith.constant 0 : index
    %c0_30 = arith.constant 0 : index
    %55 = vector.load %arg5[%c0_29, %c0_30] : memref<128x512xbf16, #tpu.memory_space<vmem>>, vector<128x512xbf16>
    %cst_31 = arith.constant dense<0.000000e+00> : vector<8x512xf32>
    %56 = tpu.matmul %54, %55, %cst_31 {dimension_numbers = #tpu.dot_dimension_numbers<[1], [0], [0], [1], [0, 0, 1, 1], [], []>} : vector<8x128xbf16>, vector<128x512xbf16>, vector<8x512xf32> -> vector<8x512xf32>
    %57 = arith.addf %20, %56 : vector<8x512xf32>
    %58 = vector.extract_strided_slice %57 {offsets = [0, 0], sizes = [8, 128], strides = [1, 1]} : vector<8x512xf32> to vector<8x128xf32>
    %59 = arith.negf %58 : vector<8x128xf32>
    %60 = math.exp %59 : vector<8x128xf32>
    %cst_32 = arith.constant 1.000000e+00 : f32
    %61 = vector.broadcast %cst_32 : f32 to vector<8x128xf32>
    %62 = arith.addf %61, %60 : vector<8x128xf32>
    %63 = arith.divf %61, %62 : vector<8x128xf32>
    %64 = vector.extract_strided_slice %57 {offsets = [0, 128], sizes = [8, 128], strides = [1, 1]} : vector<8x512xf32> to vector<8x128xf32>
    %65 = arith.negf %64 : vector<8x128xf32>
    %66 = math.exp %65 : vector<8x128xf32>
    %cst_33 = arith.constant 1.000000e+00 : f32
    %67 = vector.broadcast %cst_33 : f32 to vector<8x128xf32>
    %68 = arith.addf %67, %66 : vector<8x128xf32>
    %69 = arith.divf %67, %68 : vector<8x128xf32>
    %70 = vector.extract_strided_slice %57 {offsets = [0, 256], sizes = [8, 128], strides = [1, 1]} : vector<8x512xf32> to vector<8x128xf32>
    %71 = math.tanh %70 : vector<8x128xf32>
    %72 = vector.extract_strided_slice %57 {offsets = [0, 384], sizes = [8, 128], strides = [1, 1]} : vector<8x512xf32> to vector<8x128xf32>
    %73 = arith.negf %72 : vector<8x128xf32>
    %74 = math.exp %73 : vector<8x128xf32>
    %cst_34 = arith.constant 1.000000e+00 : f32
    %75 = vector.broadcast %cst_34 : f32 to vector<8x128xf32>
    %76 = arith.addf %75, %74 : vector<8x128xf32>
    %77 = arith.divf %75, %76 : vector<8x128xf32>
    %78 = arith.mulf %69, %16 : vector<8x128xf32>
    %79 = arith.mulf %63, %71 : vector<8x128xf32>
    %80 = arith.addf %78, %79 : vector<8x128xf32>
    %81 = math.tanh %80 : vector<8x128xf32>
    %82 = arith.mulf %77, %81 : vector<8x128xf32>
    %c1_i32 = arith.constant 1 : i32
    %83 = arith.truncf %82 : vector<8x128xf32> to vector<8x128xbf16>
    %c0_35 = arith.constant 0 : index
    %c0_36 = arith.constant 0 : index
    %84 = vector.load %arg6[%c0_35, %c0_36] : memref<128x512xbf16, #tpu.memory_space<vmem>>, vector<128x512xbf16>
    %cst_37 = arith.constant dense<0.000000e+00> : vector<8x512xf32>
    %85 = tpu.matmul %83, %84, %cst_37 {dimension_numbers = #tpu.dot_dimension_numbers<[1], [0], [0], [1], [0, 0, 1, 1], [], []>} : vector<8x128xbf16>, vector<128x512xbf16>, vector<8x512xf32> -> vector<8x512xf32>
    %86 = arith.addf %85, %12 : vector<8x512xf32>
    %c8_i32_38 = arith.constant 8 : i32
    %87 = arith.muli %c1_i32, %c8_i32_38 : i32
    %88 = tpu.assume_multiple %87, 8 : i32
    %89 = arith.index_cast %88 : i32 to index
    %c0_39 = arith.constant 0 : index
    %90 = vector.load %arg11[%89, %c0_39] : memref<32x512xf32, #tpu.memory_space<vmem>>, vector<8x512xf32>
    %91 = arith.truncf %53 : vector<8x128xf32> to vector<8x128xbf16>
    %c0_40 = arith.constant 0 : index
    %c0_41 = arith.constant 0 : index
    %92 = vector.load %arg3[%c0_40, %c0_41] : memref<128x512xbf16, #tpu.memory_space<vmem>>, vector<128x512xbf16>
    %cst_42 = arith.constant dense<0.000000e+00> : vector<8x512xf32>
    %93 = tpu.matmul %91, %92, %cst_42 {dimension_numbers = #tpu.dot_dimension_numbers<[1], [0], [0], [1], [0, 0, 1, 1], [], []>} : vector<8x128xbf16>, vector<128x512xbf16>, vector<8x512xf32> -> vector<8x512xf32>
    %94 = arith.addf %90, %93 : vector<8x512xf32>
    %95 = vector.extract_strided_slice %94 {offsets = [0, 0], sizes = [8, 128], strides = [1, 1]} : vector<8x512xf32> to vector<8x128xf32>
    %96 = arith.negf %95 : vector<8x128xf32>
    %97 = math.exp %96 : vector<8x128xf32>
    %cst_43 = arith.constant 1.000000e+00 : f32
    %98 = vector.broadcast %cst_43 : f32 to vector<8x128xf32>
    %99 = arith.addf %98, %97 : vector<8x128xf32>
    %100 = arith.divf %98, %99 : vector<8x128xf32>
    %101 = vector.extract_strided_slice %94 {offsets = [0, 128], sizes = [8, 128], strides = [1, 1]} : vector<8x512xf32> to vector<8x128xf32>
    %102 = arith.negf %101 : vector<8x128xf32>
    %103 = math.exp %102 : vector<8x128xf32>
    %cst_44 = arith.constant 1.000000e+00 : f32
    %104 = vector.broadcast %cst_44 : f32 to vector<8x128xf32>
    %105 = arith.addf %104, %103 : vector<8x128xf32>
    %106 = arith.divf %104, %105 : vector<8x128xf32>
    %107 = vector.extract_strided_slice %94 {offsets = [0, 256], sizes = [8, 128], strides = [1, 1]} : vector<8x512xf32> to vector<8x128xf32>
    %108 = math.tanh %107 : vector<8x128xf32>
    %109 = vector.extract_strided_slice %94 {offsets = [0, 384], sizes = [8, 128], strides = [1, 1]} : vector<8x512xf32> to vector<8x128xf32>
    %110 = arith.negf %109 : vector<8x128xf32>
    %111 = math.exp %110 : vector<8x128xf32>
    %cst_45 = arith.constant 1.000000e+00 : f32
    %112 = vector.broadcast %cst_45 : f32 to vector<8x128xf32>
    %113 = arith.addf %112, %111 : vector<8x128xf32>
    %114 = arith.divf %112, %113 : vector<8x128xf32>
    %115 = arith.mulf %106, %51 : vector<8x128xf32>
    %116 = arith.mulf %100, %108 : vector<8x128xf32>
    %117 = arith.addf %115, %116 : vector<8x128xf32>
    %118 = math.tanh %117 : vector<8x128xf32>
    %119 = arith.mulf %114, %118 : vector<8x128xf32>
    %120 = arith.truncf %119 : vector<8x128xf32> to vector<8x128xbf16>
    %c0_46 = arith.constant 0 : index
    %c0_47 = arith.constant 0 : index
    %121 = vector.load %arg5[%c0_46, %c0_47] : memref<128x512xbf16, #tpu.memory_space<vmem>>, vector<128x512xbf16>
    %cst_48 = arith.constant dense<0.000000e+00> : vector<8x512xf32>
    %122 = tpu.matmul %120, %121, %cst_48 {dimension_numbers = #tpu.dot_dimension_numbers<[1], [0], [0], [1], [0, 0, 1, 1], [], []>} : vector<8x128xbf16>, vector<128x512xbf16>, vector<8x512xf32> -> vector<8x512xf32>
    %123 = arith.addf %86, %122 : vector<8x512xf32>
    %124 = vector.extract_strided_slice %123 {offsets = [0, 0], sizes = [8, 128], strides = [1, 1]} : vector<8x512xf32> to vector<8x128xf32>
    %125 = arith.negf %124 : vector<8x128xf32>
    %126 = math.exp %125 : vector<8x128xf32>
    %cst_49 = arith.constant 1.000000e+00 : f32
    %127 = vector.broadcast %cst_49 : f32 to vector<8x128xf32>
    %128 = arith.addf %127, %126 : vector<8x128xf32>
    %129 = arith.divf %127, %128 : vector<8x128xf32>
    %130 = vector.extract_strided_slice %123 {offsets = [0, 128], sizes = [8, 128], strides = [1, 1]} : vector<8x512xf32> to vector<8x128xf32>
    %131 = arith.negf %130 : vector<8x128xf32>
    %132 = math.exp %131 : vector<8x128xf32>
    %cst_50 = arith.constant 1.000000e+00 : f32
    %133 = vector.broadcast %cst_50 : f32 to vector<8x128xf32>
    %134 = arith.addf %133, %132 : vector<8x128xf32>
    %135 = arith.divf %133, %134 : vector<8x128xf32>
    %136 = vector.extract_strided_slice %123 {offsets = [0, 256], sizes = [8, 128], strides = [1, 1]} : vector<8x512xf32> to vector<8x128xf32>
    %137 = math.tanh %136 : vector<8x128xf32>
    %138 = vector.extract_strided_slice %123 {offsets = [0, 384], sizes = [8, 128], strides = [1, 1]} : vector<8x512xf32> to vector<8x128xf32>
    %139 = arith.negf %138 : vector<8x128xf32>
    %140 = math.exp %139 : vector<8x128xf32>
    %cst_51 = arith.constant 1.000000e+00 : f32
    %141 = vector.broadcast %cst_51 : f32 to vector<8x128xf32>
    %142 = arith.addf %141, %140 : vector<8x128xf32>
    %143 = arith.divf %141, %142 : vector<8x128xf32>
    %144 = arith.mulf %135, %80 : vector<8x128xf32>
    %145 = arith.mulf %129, %137 : vector<8x128xf32>
    %146 = arith.addf %144, %145 : vector<8x128xf32>
    %147 = math.tanh %146 : vector<8x128xf32>
    %148 = arith.mulf %143, %147 : vector<8x128xf32>
    %c2_i32 = arith.constant 2 : i32
    %149 = arith.truncf %148 : vector<8x128xf32> to vector<8x128xbf16>
    %c0_52 = arith.constant 0 : index
    %c0_53 = arith.constant 0 : index
    %150 = vector.load %arg6[%c0_52, %c0_53] : memref<128x512xbf16, #tpu.memory_space<vmem>>, vector<128x512xbf16>
    %cst_54 = arith.constant dense<0.000000e+00> : vector<8x512xf32>
    %151 = tpu.matmul %149, %150, %cst_54 {dimension_numbers = #tpu.dot_dimension_numbers<[1], [0], [0], [1], [0, 0, 1, 1], [], []>} : vector<8x128xbf16>, vector<128x512xbf16>, vector<8x512xf32> -> vector<8x512xf32>
    %152 = arith.addf %151, %12 : vector<8x512xf32>
    %c8_i32_55 = arith.constant 8 : i32
    %153 = arith.muli %c2_i32, %c8_i32_55 : i32
    %154 = tpu.assume_multiple %153, 8 : i32
    %155 = arith.index_cast %154 : i32 to index
    %c0_56 = arith.constant 0 : index
    %156 = vector.load %arg11[%155, %c0_56] : memref<32x512xf32, #tpu.memory_space<vmem>>, vector<8x512xf32>
    %157 = arith.truncf %119 : vector<8x128xf32> to vector<8x128xbf16>
    %c0_57 = arith.constant 0 : index
    %c0_58 = arith.constant 0 : index
    %158 = vector.load %arg3[%c0_57, %c0_58] : memref<128x512xbf16, #tpu.memory_space<vmem>>, vector<128x512xbf16>
    %cst_59 = arith.constant dense<0.000000e+00> : vector<8x512xf32>
    %159 = tpu.matmul %157, %158, %cst_59 {dimension_numbers = #tpu.dot_dimension_numbers<[1], [0], [0], [1], [0, 0, 1, 1], [], []>} : vector<8x128xbf16>, vector<128x512xbf16>, vector<8x512xf32> -> vector<8x512xf32>
    %160 = arith.addf %156, %159 : vector<8x512xf32>
    %161 = vector.extract_strided_slice %160 {offsets = [0, 0], sizes = [8, 128], strides = [1, 1]} : vector<8x512xf32> to vector<8x128xf32>
    %162 = arith.negf %161 : vector<8x128xf32>
    %163 = math.exp %162 : vector<8x128xf32>
    %cst_60 = arith.constant 1.000000e+00 : f32
    %164 = vector.broadcast %cst_60 : f32 to vector<8x128xf32>
    %165 = arith.addf %164, %163 : vector<8x128xf32>
    %166 = arith.divf %164, %165 : vector<8x128xf32>
    %167 = vector.extract_strided_slice %160 {offsets = [0, 128], sizes = [8, 128], strides = [1, 1]} : vector<8x512xf32> to vector<8x128xf32>
    %168 = arith.negf %167 : vector<8x128xf32>
    %169 = math.exp %168 : vector<8x128xf32>
    %cst_61 = arith.constant 1.000000e+00 : f32
    %170 = vector.broadcast %cst_61 : f32 to vector<8x128xf32>
    %171 = arith.addf %170, %169 : vector<8x128xf32>
    %172 = arith.divf %170, %171 : vector<8x128xf32>
    %173 = vector.extract_strided_slice %160 {offsets = [0, 256], sizes = [8, 128], strides = [1, 1]} : vector<8x512xf32> to vector<8x128xf32>
    %174 = math.tanh %173 : vector<8x128xf32>
    %175 = vector.extract_strided_slice %160 {offsets = [0, 384], sizes = [8, 128], strides = [1, 1]} : vector<8x512xf32> to vector<8x128xf32>
    %176 = arith.negf %175 : vector<8x128xf32>
    %177 = math.exp %176 : vector<8x128xf32>
    %cst_62 = arith.constant 1.000000e+00 : f32
    %178 = vector.broadcast %cst_62 : f32 to vector<8x128xf32>
    %179 = arith.addf %178, %177 : vector<8x128xf32>
    %180 = arith.divf %178, %179 : vector<8x128xf32>
    %181 = arith.mulf %172, %117 : vector<8x128xf32>
    %182 = arith.mulf %166, %174 : vector<8x128xf32>
    %183 = arith.addf %181, %182 : vector<8x128xf32>
    %184 = math.tanh %183 : vector<8x128xf32>
    %185 = arith.mulf %180, %184 : vector<8x128xf32>
    %186 = arith.truncf %185 : vector<8x128xf32> to vector<8x128xbf16>
    %c0_63 = arith.constant 0 : index
    %c0_64 = arith.constant 0 : index
    %187 = vector.load %arg5[%c0_63, %c0_64] : memref<128x512xbf16, #tpu.memory_space<vmem>>, vector<128x512xbf16>
    %cst_65 = arith.constant dense<0.000000e+00> : vector<8x512xf32>
    %188 = tpu.matmul %186, %187, %cst_65 {dimension_numbers = #tpu.dot_dimension_numbers<[1], [0], [0], [1], [0, 0, 1, 1], [], []>} : vector<8x128xbf16>, vector<128x512xbf16>, vector<8x512xf32> -> vector<8x512xf32>
    %189 = arith.addf %152, %188 : vector<8x512xf32>
    %190 = vector.extract_strided_slice %189 {offsets = [0, 0], sizes = [8, 128], strides = [1, 1]} : vector<8x512xf32> to vector<8x128xf32>
    %191 = arith.negf %190 : vector<8x128xf32>
    %192 = math.exp %191 : vector<8x128xf32>
    %cst_66 = arith.constant 1.000000e+00 : f32
    %193 = vector.broadcast %cst_66 : f32 to vector<8x128xf32>
    %194 = arith.addf %193, %192 : vector<8x128xf32>
    %195 = arith.divf %193, %194 : vector<8x128xf32>
    %196 = vector.extract_strided_slice %189 {offsets = [0, 128], sizes = [8, 128], strides = [1, 1]} : vector<8x512xf32> to vector<8x128xf32>
    %197 = arith.negf %196 : vector<8x128xf32>
    %198 = math.exp %197 : vector<8x128xf32>
    %cst_67 = arith.constant 1.000000e+00 : f32
    %199 = vector.broadcast %cst_67 : f32 to vector<8x128xf32>
    %200 = arith.addf %199, %198 : vector<8x128xf32>
    %201 = arith.divf %199, %200 : vector<8x128xf32>
    %202 = vector.extract_strided_slice %189 {offsets = [0, 256], sizes = [8, 128], strides = [1, 1]} : vector<8x512xf32> to vector<8x128xf32>
    %203 = math.tanh %202 : vector<8x128xf32>
    %204 = vector.extract_strided_slice %189 {offsets = [0, 384], sizes = [8, 128], strides = [1, 1]} : vector<8x512xf32> to vector<8x128xf32>
    %205 = arith.negf %204 : vector<8x128xf32>
    %206 = math.exp %205 : vector<8x128xf32>
    %cst_68 = arith.constant 1.000000e+00 : f32
    %207 = vector.broadcast %cst_68 : f32 to vector<8x128xf32>
    %208 = arith.addf %207, %206 : vector<8x128xf32>
    %209 = arith.divf %207, %208 : vector<8x128xf32>
    %210 = arith.mulf %201, %146 : vector<8x128xf32>
    %211 = arith.mulf %195, %203 : vector<8x128xf32>
    %212 = arith.addf %210, %211 : vector<8x128xf32>
    %213 = math.tanh %212 : vector<8x128xf32>
    %214 = arith.mulf %209, %213 : vector<8x128xf32>
    %c3_i32 = arith.constant 3 : i32
    %215 = arith.truncf %214 : vector<8x128xf32> to vector<8x128xbf16>
    %c0_69 = arith.constant 0 : index
    %c0_70 = arith.constant 0 : index
    %216 = vector.load %arg6[%c0_69, %c0_70] : memref<128x512xbf16, #tpu.memory_space<vmem>>, vector<128x512xbf16>
    %cst_71 = arith.constant dense<0.000000e+00> : vector<8x512xf32>
    %217 = tpu.matmul %215, %216, %cst_71 {dimension_numbers = #tpu.dot_dimension_numbers<[1], [0], [0], [1], [0, 0, 1, 1], [], []>} : vector<8x128xbf16>, vector<128x512xbf16>, vector<8x512xf32> -> vector<8x512xf32>
    %218 = arith.addf %217, %12 : vector<8x512xf32>
    %c8_i32_72 = arith.constant 8 : i32
    %219 = arith.muli %c3_i32, %c8_i32_72 : i32
    %220 = tpu.assume_multiple %219, 8 : i32
    %221 = arith.index_cast %220 : i32 to index
    %c0_73 = arith.constant 0 : index
    %222 = vector.load %arg11[%221, %c0_73] : memref<32x512xf32, #tpu.memory_space<vmem>>, vector<8x512xf32>
    %223 = arith.truncf %185 : vector<8x128xf32> to vector<8x128xbf16>
    %c0_74 = arith.constant 0 : index
    %c0_75 = arith.constant 0 : index
    %224 = vector.load %arg3[%c0_74, %c0_75] : memref<128x512xbf16, #tpu.memory_space<vmem>>, vector<128x512xbf16>
    %cst_76 = arith.constant dense<0.000000e+00> : vector<8x512xf32>
    %225 = tpu.matmul %223, %224, %cst_76 {dimension_numbers = #tpu.dot_dimension_numbers<[1], [0], [0], [1], [0, 0, 1, 1], [], []>} : vector<8x128xbf16>, vector<128x512xbf16>, vector<8x512xf32> -> vector<8x512xf32>
    %226 = arith.addf %222, %225 : vector<8x512xf32>
    %227 = vector.extract_strided_slice %226 {offsets = [0, 0], sizes = [8, 128], strides = [1, 1]} : vector<8x512xf32> to vector<8x128xf32>
    %228 = arith.negf %227 : vector<8x128xf32>
    %229 = math.exp %228 : vector<8x128xf32>
    %cst_77 = arith.constant 1.000000e+00 : f32
    %230 = vector.broadcast %cst_77 : f32 to vector<8x128xf32>
    %231 = arith.addf %230, %229 : vector<8x128xf32>
    %232 = arith.divf %230, %231 : vector<8x128xf32>
    %233 = vector.extract_strided_slice %226 {offsets = [0, 128], sizes = [8, 128], strides = [1, 1]} : vector<8x512xf32> to vector<8x128xf32>
    %234 = arith.negf %233 : vector<8x128xf32>
    %235 = math.exp %234 : vector<8x128xf32>
    %cst_78 = arith.constant 1.000000e+00 : f32
    %236 = vector.broadcast %cst_78 : f32 to vector<8x128xf32>
    %237 = arith.addf %236, %235 : vector<8x128xf32>
    %238 = arith.divf %236, %237 : vector<8x128xf32>
    %239 = vector.extract_strided_slice %226 {offsets = [0, 256], sizes = [8, 128], strides = [1, 1]} : vector<8x512xf32> to vector<8x128xf32>
    %240 = math.tanh %239 : vector<8x128xf32>
    %241 = vector.extract_strided_slice %226 {offsets = [0, 384], sizes = [8, 128], strides = [1, 1]} : vector<8x512xf32> to vector<8x128xf32>
    %242 = arith.negf %241 : vector<8x128xf32>
    %243 = math.exp %242 : vector<8x128xf32>
    %cst_79 = arith.constant 1.000000e+00 : f32
    %244 = vector.broadcast %cst_79 : f32 to vector<8x128xf32>
    %245 = arith.addf %244, %243 : vector<8x128xf32>
    %246 = arith.divf %244, %245 : vector<8x128xf32>
    %247 = arith.mulf %238, %183 : vector<8x128xf32>
    %248 = arith.mulf %232, %240 : vector<8x128xf32>
    %249 = arith.addf %247, %248 : vector<8x128xf32>
    %250 = math.tanh %249 : vector<8x128xf32>
    %251 = arith.mulf %246, %250 : vector<8x128xf32>
    %252 = arith.truncf %251 : vector<8x128xf32> to vector<8x128xbf16>
    %c0_80 = arith.constant 0 : index
    %c0_81 = arith.constant 0 : index
    %253 = vector.load %arg5[%c0_80, %c0_81] : memref<128x512xbf16, #tpu.memory_space<vmem>>, vector<128x512xbf16>
    %cst_82 = arith.constant dense<0.000000e+00> : vector<8x512xf32>
    %254 = tpu.matmul %252, %253, %cst_82 {dimension_numbers = #tpu.dot_dimension_numbers<[1], [0], [0], [1], [0, 0, 1, 1], [], []>} : vector<8x128xbf16>, vector<128x512xbf16>, vector<8x512xf32> -> vector<8x512xf32>
    %255 = arith.addf %218, %254 : vector<8x512xf32>
    %256 = vector.extract_strided_slice %255 {offsets = [0, 0], sizes = [8, 128], strides = [1, 1]} : vector<8x512xf32> to vector<8x128xf32>
    %257 = arith.negf %256 : vector<8x128xf32>
    %258 = math.exp %257 : vector<8x128xf32>
    %cst_83 = arith.constant 1.000000e+00 : f32
    %259 = vector.broadcast %cst_83 : f32 to vector<8x128xf32>
    %260 = arith.addf %259, %258 : vector<8x128xf32>
    %261 = arith.divf %259, %260 : vector<8x128xf32>
    %262 = vector.extract_strided_slice %255 {offsets = [0, 128], sizes = [8, 128], strides = [1, 1]} : vector<8x512xf32> to vector<8x128xf32>
    %263 = arith.negf %262 : vector<8x128xf32>
    %264 = math.exp %263 : vector<8x128xf32>
    %cst_84 = arith.constant 1.000000e+00 : f32
    %265 = vector.broadcast %cst_84 : f32 to vector<8x128xf32>
    %266 = arith.addf %265, %264 : vector<8x128xf32>
    %267 = arith.divf %265, %266 : vector<8x128xf32>
    %268 = vector.extract_strided_slice %255 {offsets = [0, 256], sizes = [8, 128], strides = [1, 1]} : vector<8x512xf32> to vector<8x128xf32>
    %269 = math.tanh %268 : vector<8x128xf32>
    %270 = vector.extract_strided_slice %255 {offsets = [0, 384], sizes = [8, 128], strides = [1, 1]} : vector<8x512xf32> to vector<8x128xf32>
    %271 = arith.negf %270 : vector<8x128xf32>
    %272 = math.exp %271 : vector<8x128xf32>
    %cst_85 = arith.constant 1.000000e+00 : f32
    %273 = vector.broadcast %cst_85 : f32 to vector<8x128xf32>
    %274 = arith.addf %273, %272 : vector<8x128xf32>
    %275 = arith.divf %273, %274 : vector<8x128xf32>
    %276 = arith.mulf %267, %212 : vector<8x128xf32>
    %277 = arith.mulf %261, %269 : vector<8x128xf32>
    %278 = arith.addf %276, %277 : vector<8x128xf32>
    %279 = math.tanh %278 : vector<8x128xf32>
    %280 = arith.mulf %275, %279 : vector<8x128xf32>
    %c4_i32 = arith.constant 4 : i32
    %c0_86 = arith.constant 0 : index
    %c0_87 = arith.constant 0 : index
    %281 = vector.load %arg12[%c0_86, %c0_87] : memref<8x128xf32, #tpu.memory_space<vmem>>, vector<8x128xf32>
    tpu.vector_store %arg12[%c0_86, %c0_87], %251 {strides = array<i32>} : memref<8x128xf32, #tpu.memory_space<vmem>>, vector<8x128xf32>,
    %c0_88 = arith.constant 0 : index
    %c0_89 = arith.constant 0 : index
    %282 = vector.load %arg13[%c0_88, %c0_89] : memref<8x128xf32, #tpu.memory_space<vmem>>, vector<8x128xf32>
    tpu.vector_store %arg13[%c0_88, %c0_89], %249 {strides = array<i32>} : memref<8x128xf32, #tpu.memory_space<vmem>>, vector<8x128xf32>,
    %c0_90 = arith.constant 0 : index
    %c0_91 = arith.constant 0 : index
    %283 = vector.load %arg14[%c0_90, %c0_91] : memref<8x128xf32, #tpu.memory_space<vmem>>, vector<8x128xf32>
    tpu.vector_store %arg14[%c0_90, %c0_91], %280 {strides = array<i32>} : memref<8x128xf32, #tpu.memory_space<vmem>>, vector<8x128xf32>,
    %c0_92 = arith.constant 0 : index
    %c0_93 = arith.constant 0 : index
    %284 = vector.load %arg15[%c0_92, %c0_93] : memref<8x128xf32, #tpu.memory_space<vmem>>, vector<8x128xf32>
    tpu.vector_store %arg15[%c0_92, %c0_93], %278 {strides = array<i32>} : memref<8x128xf32, #tpu.memory_space<vmem>>, vector<8x128xf32>,
    %c1_i32_94 = arith.constant 1 : i32
    %285 = arith.cmpi eq, %arg0, %c1_i32_94 : i32
    %286 = arith.extui %285 : i1 to i32
    %c0_i32_95 = arith.constant 0 : i32
    %287 = arith.cmpi ne, %286, %c0_i32_95 : i32
    scf.if %287 {
      %288 = arith.truncf %280 : vector<8x128xf32> to vector<8x128xbf16>
      %c0_96 = arith.constant 0 : index
      %c0_97 = arith.constant 0 : index
      %289 = vector.load %arg8[%c0_96, %c0_97] : memref<128x128xbf16, #tpu.memory_space<vmem>>, vector<128x128xbf16>
      %cst_98 = arith.constant dense<0.000000e+00> : vector<8x128xf32>
      %290 = tpu.matmul %288, %289, %cst_98 {dimension_numbers = #tpu.dot_dimension_numbers<[1], [0], [0], [1], [0, 0, 1, 1], [], []>} : vector<8x128xbf16>, vector<128x128xbf16>, vector<8x128xf32> -> vector<8x128xf32>
      %c0_99 = arith.constant 0 : index
      %c0_100 = arith.constant 0 : index
      %291 = vector.load %arg9[%c0_99, %c0_100] : memref<1x128xf32, #tpu.memory_space<vmem>>, vector<1x128xf32>
      %292 = vector.broadcast %291 : vector<1x128xf32> to vector<8x128xf32>
      %293 = arith.addf %290, %292 : vector<8x128xf32>
      %c0_101 = arith.constant 0 : index
      %c0_102 = arith.constant 0 : index
      %294 = vector.load %arg10[%c0_101, %c0_102] : memref<8x128xf32, #tpu.memory_space<vmem>>, vector<8x128xf32>
      tpu.vector_store %arg10[%c0_101, %c0_102], %293 {strides = array<i32>} : memref<8x128xf32, #tpu.memory_space<vmem>>, vector<8x128xf32>,
    } else {
    }
    return
  }
  func.func @transform_0(%arg0: i32) -> (i32, i32) {
    %c0_i32 = arith.constant 0 : i32
    %c0_i32_0 = arith.constant 0 : i32
    return %arg0, %c0_i32 : i32, i32
  }
  func.func @transform_1(%arg0: i32) -> (i32, i32) {
    %c0_i32 = arith.constant 0 : i32
    %c0_i32_0 = arith.constant 0 : i32
    %c0_i32_1 = arith.constant 0 : i32
    return %c0_i32, %c0_i32_0 : i32, i32
  }
  func.func @transform_2(%arg0: i32) -> (i32, i32) {
    %c0_i32 = arith.constant 0 : i32
    %c0_i32_0 = arith.constant 0 : i32
    %c0_i32_1 = arith.constant 0 : i32
    return %c0_i32, %c0_i32_0 : i32, i32
  }
  func.func @transform_3(%arg0: i32) -> (i32, i32) {
    %c0_i32 = arith.constant 0 : i32
    %c0_i32_0 = arith.constant 0 : i32
    %c0_i32_1 = arith.constant 0 : i32
    return %c0_i32, %c0_i32_0 : i32, i32
  }
  func.func @transform_4(%arg0: i32) -> (i32, i32) {
    %c0_i32 = arith.constant 0 : i32
    %c0_i32_0 = arith.constant 0 : i32
    %c0_i32_1 = arith.constant 0 : i32
    return %c0_i32, %c0_i32_0 : i32, i32
  }
  func.func @transform_5(%arg0: i32) -> (i32, i32) {
    %c0_i32 = arith.constant 0 : i32
    %c0_i32_0 = arith.constant 0 : i32
    %c0_i32_1 = arith.constant 0 : i32
    return %c0_i32, %c0_i32_0 : i32, i32
  }
  func.func @transform_6(%arg0: i32) -> (i32, i32) {
    %c0_i32 = arith.constant 0 : i32
    %c0_i32_0 = arith.constant 0 : i32
    %c0_i32_1 = arith.constant 0 : i32
    return %c0_i32, %c0_i32_0 : i32, i32
  }
  func.func @transform_7(%arg0: i32) -> (i32, i32) {
    %c0_i32 = arith.constant 0 : i32
    %c0_i32_0 = arith.constant 0 : i32
    %c0_i32_1 = arith.constant 0 : i32
    return %c0_i32, %c0_i32_0 : i32, i32
  }
  func.func @transform_8(%arg0: i32) -> (i32, i32) {
    %c0_i32 = arith.constant 0 : i32
    %c0_i32_0 = arith.constant 0 : i32
    %c0_i32_1 = arith.constant 0 : i32
    return %c0_i32, %c0_i32_0 : i32, i32
  }
  func.func @transform_9(%arg0: i32) -> (i32, i32) {
    %c0_i32 = arith.constant 0 : i32
    %c0_i32_0 = arith.constant 0 : i32
    %c0_i32_1 = arith.constant 0 : i32
    return %c0_i32, %c0_i32_0 : i32, i32
  }
}

</mosaic_0001>

<llo_original>
// kernel: tpu_custom_call.1
$region0: #{tpu_custom_call.1}
  #allocation0 [shape = 'u32[]', space=smem, size = 0x4, offset = 0x4, fixed_abs, tag = 'smem constant byte address 0x4 - core index']
  #allocation1 [shape = 'u32[144,128]{1,0:T(1,128)}', space=vmem, size = 0x12000, scoped, tag = 'internal scratch']
  #allocation2 [shape = 'f32[32,512]{1,0:T(8,128)}', space=vmem, size = 0x10000, scoped, tag = 'scratch operand']
  #allocation3 [shape = 'f32[8,128]{1,0:T(8,128)}', space=vmem, size = 0x1000, scoped, tag = 'scratch operand']
  #allocation4 [shape = 'f32[8,128]{1,0:T(8,128)}', space=vmem, size = 0x1000, scoped, tag = 'scratch operand']
  #allocation5 [shape = 'f32[8,128]{1,0:T(8,128)}', space=vmem, size = 0x1000, scoped, tag = 'scratch operand']
  #allocation6 [shape = 'f32[8,128]{1,0:T(8,128)}', space=vmem, size = 0x1000, scoped, tag = 'scratch operand']
  %s0 = inlined_call_operand.hbm [shape: bf16[64,128], index: 0, kind: input, shape index: {}]
  %s1 = inlined_call_operand.hbm [shape: bf16[128,512], index: 1, kind: input, shape index: {}]
  %s2 = inlined_call_operand.hbm [shape: bf16[128,512], index: 2, kind: input, shape index: {}]
  %s3 = inlined_call_operand.vmem [shape: f32[1,512], index: 3, kind: input, shape index: {}]
  %s4 = inlined_call_operand.hbm [shape: bf16[128,512], index: 4, kind: input, shape index: {}]
  %s5 = inlined_call_operand.hbm [shape: bf16[128,512], index: 5, kind: input, shape index: {}]
  %s6 = inlined_call_operand.vmem [shape: f32[1,512], index: 6, kind: input, shape index: {}]
  %s7 = inlined_call_operand.hbm [shape: bf16[128,128], index: 7, kind: input, shape index: {}]
  %s8 = inlined_call_operand.vmem [shape: f32[1,128], index: 8, kind: input, shape index: {}]
  %s9 = inlined_call_operand.hbm [shape: f32[8,128], index: 9, kind: output, shape index: {}]
  %s10 = sld [smem:[#allocation0]]
  $region101: #{tpu_custom_call.1} parent=0
    _
  %s12 = ssub.s32 1, %s10
  %s13 = scalar_select 0, %s12, %s10
  $region1: #{tpu_custom_call.1} parent=0
    #allocation7 [shape = 'u8[16384]{0}', space=vmem, size = 0x4000, scoped, tag = 'input window, operand 0']
    #allocation8 [shape = 's32[2]{0}', space=sflag, size = 0x8, scoped, tag = 'scoped memory for tpu_custom_call.1']
    #allocation9 [shape = 's32[2]{0}', space=sflag, size = 0x8, scoped, tag = 'scoped memory for tpu_custom_call.1']
    #allocation10 [shape = 'u8[131072]{0}', space=vmem, size = 0x20000, scoped, tag = 'input window, operand 1, single buffered']
    #allocation11 [shape = 's32[1]{0}', space=sflag, size = 0x4, scoped, tag = 'scoped memory for tpu_custom_call.1']
    #allocation12 [shape = 'u8[131072]{0}', space=vmem, size = 0x20000, scoped, tag = 'input window, operand 2, single buffered']
    #allocation13 [shape = 'u8[131072]{0}', space=vmem, size = 0x20000, scoped, tag = 'input window, operand 4, single buffered']
    #allocation14 [shape = 's32[1]{0}', space=sflag, size = 0x4, scoped, tag = 'scoped memory for tpu_custom_call.1']
    #allocation15 [shape = 'u8[131072]{0}', space=vmem, size = 0x20000, scoped, tag = 'input window, operand 5, single buffered']
    #allocation16 [shape = 'u8[32768]{0}', space=vmem, size = 0x8000, scoped, tag = 'input window, operand 7, single buffered']
    #allocation17 [shape = 's32[1]{0}', space=sflag, size = 0x4, scoped, tag = 'scoped memory for tpu_custom_call.1']
    #allocation18 [shape = 'u8[4096]{0}', space=vmem, size = 0x1000, scoped, tag = 'output window, operand 0, single buffered']
    %14 = vsyncpa [#allocation8], 0
    %s15 = scalar_lea.sflag [#allocation8], 1
    %16 = vsyncpa %s15, 0
    %17 = vsyncpa [#allocation11], 0
    %18 = vsyncpa [#allocation14], 0
    %19 = vsyncpa [#allocation17], 0
    %20 = vsyncpa [#allocation9], 0
    loop: start=0, step=1, limit=4
    $region2: #{tpu_custom_call.1} parent=1 // loop_pre_header
      _
    $region3: #{tpu_custom_call.1} parent=1 // loop_header
      %s22 = sphi 0, %s26
      %p23 = scmp.ge.s32.totalorder %s22, 4
      %s32 = sphi 0, %s34
      %s35 = sphi 0, %s32
      %s36 = sphi 0, %s35
      %s52 = sphi 0, %s36
      %s56 = sphi 0, %s56
      %s58 = sphi 0, %s56
      %s59 = sphi 0, %s58
      %s73 = sphi 0, %s59
      %s77 = sphi 0, %s77
      %s79 = sphi 0, %s77
      %s80 = sphi 0, %s79
      %s94 = sphi 0, %s80
      %s98 = sphi 0, %s98
      %s100 = sphi 0, %s98
      %s101 = sphi 0, %s100
      %s115 = sphi 0, %s101
      %s119 = sphi 0, %s119
      %s121 = sphi 0, %s119
      %s122 = sphi 0, %s121
      %s136 = sphi 0, %s122
      %s140 = sphi 0, %s140
      %s142 = sphi 0, %s140
      %s143 = sphi 0, %s142
      %s157 = sphi 0, %s143
      %s161 = sphi 0, %s161
      %s163 = sphi 0, %s161
      %s164 = sphi 0, %s163
      %s178 = sphi 0, %s164
      %s182 = sphi 0, %s182
      %s184 = sphi 0, %s182
      %s185 = sphi 0, %s184
      %s199 = sphi 0, %s185
      %s203 = sphi 0, %s203
      %s205 = sphi 0, %s203
      %s206 = sphi 0, %s205
      %s220 = sphi 0, %s206
      %s224 = sphi 0, %s224
      %s226 = sphi 0, %s224
      %s227 = sphi 0, %s226
      %s241 = sphi 0, %s227
    $region4: #{tpu_custom_call.1} parent=1 // loop_header_branch
      %25 = sbr.rel (%p23) target = $region8
    $region5: #{tpu_custom_call.1} parent=1 // loop_body
      %s27 = ssub.s32 %s22, 1
      %s28 = ssub.s32 %s22, 2
      %s29 = sadd.s32 %s22, 1
      %s30 = ssub.s32 %s22, %s29
      %p31 = scmp.eq.s32.totalorder %s30, 0
      %s33 = sadd.s32 %s32, 1
      %s34 = scalar_select %p31, %s32, %s33
      %p37 = pneg %p31
      %p38 = scmp.eq.s32.totalorder %s22, 1
      %p39 = por %p37, %p38
      %p40 = scmp.ne.s32.totalorder %s32, %s35
      %p41 = scmp.eq.s32.totalorder %s22, 0
      %p42 = por %p40, %p41
      %p43 = scmp.ne.s32.totalorder %s32, %s35
      %p44 = scmp.eq.s32.totalorder %s27, 1
      %p45 = por %p43, %p44
      %p46 = scmp.ne.s32.totalorder %s35, %s36
      %p47 = scmp.eq.s32.totalorder %s27, 0
      %p48 = por %p46, %p47
      %p49 = scmp.ne.s32.totalorder %s35, %s36
      %p50 = scmp.eq.s32.totalorder %s28, 1
      %p51 = por %p49, %p50
      %p53 = scmp.ne.s32.totalorder %s36, %s52
      %p54 = scmp.eq.s32.totalorder %s28, 0
      %p55 = por %p53, %p54
      %s57 = sadd.s32 %s56, 1
      %p60 = scmp.eq.s32.totalorder %s22, 1
      %p61 = scmp.ne.s32.totalorder %s56, %s58
      %p62 = scmp.eq.s32.totalorder %s22, 0
      %p63 = por %p61, %p62
      %p64 = scmp.ne.s32.totalorder %s56, %s58
      %p65 = scmp.eq.s32.totalorder %s27, 1
      %p66 = por %p64, %p65
      %p67 = scmp.ne.s32.totalorder %s58, %s59
      %p68 = scmp.eq.s32.totalorder %s27, 0
      %p69 = por %p67, %p68
      %p70 = scmp.ne.s32.totalorder %s58, %s59
      %p71 = scmp.eq.s32.totalorder %s28, 1
      %p72 = por %p70, %p71
      %p74 = scmp.ne.s32.totalorder %s59, %s73
      %p75 = scmp.eq.s32.totalorder %s28, 0
      %p76 = por %p74, %p75
      %s78 = sadd.s32 %s77, 1
      %p81 = scmp.eq.s32.totalorder %s22, 1
      %p82 = scmp.ne.s32.totalorder %s77, %s79
      %p83 = scmp.eq.s32.totalorder %s22, 0
      %p84 = por %p82, %p83
      %p85 = scmp.ne.s32.totalorder %s77, %s79
      %p86 = scmp.eq.s32.totalorder %s27, 1
      %p87 = por %p85, %p86
      %p88 = scmp.ne.s32.totalorder %s79, %s80
      %p89 = scmp.eq.s32.totalorder %s27, 0
      %p90 = por %p88, %p89
      %p91 = scmp.ne.s32.totalorder %s79, %s80
      %p92 = scmp.eq.s32.totalorder %s28, 1
      %p93 = por %p91, %p92
      %p95 = scmp.ne.s32.totalorder %s80, %s94
      %p96 = scmp.eq.s32.totalorder %s28, 0
      %p97 = por %p95, %p96
      %s99 = sadd.s32 %s98, 1
      %p102 = scmp.eq.s32.totalorder %s22, 1
      %p103 = scmp.ne.s32.totalorder %s98, %s100
      %p104 = scmp.eq.s32.totalorder %s22, 0
      %p105 = por %p103, %p104
      %p106 = scmp.ne.s32.totalorder %s98, %s100
      %p107 = scmp.eq.s32.totalorder %s27, 1
      %p108 = por %p106, %p107
      %p109 = scmp.ne.s32.totalorder %s100, %s101
      %p110 = scmp.eq.s32.totalorder %s27, 0
      %p111 = por %p109, %p110
      %p112 = scmp.ne.s32.totalorder %s100, %s101
      %p113 = scmp.eq.s32.totalorder %s28, 1
      %p114 = por %p112, %p113
      %p116 = scmp.ne.s32.totalorder %s101, %s115
      %p117 = scmp.eq.s32.totalorder %s28, 0
      %p118 = por %p116, %p117
      %s120 = sadd.s32 %s119, 1
      %p123 = scmp.eq.s32.totalorder %s22, 1
      %p124 = scmp.ne.s32.totalorder %s119, %s121
      %p125 = scmp.eq.s32.totalorder %s22, 0
      %p126 = por %p124, %p125
      %p127 = scmp.ne.s32.totalorder %s119, %s121
      %p128 = scmp.eq.s32.totalorder %s27, 1
      %p129 = por %p127, %p128
      %p130 = scmp.ne.s32.totalorder %s121, %s122
      %p131 = scmp.eq.s32.totalorder %s27, 0
      %p132 = por %p130, %p131
      %p133 = scmp.ne.s32.totalorder %s121, %s122
      %p134 = scmp.eq.s32.totalorder %s28, 1
      %p135 = por %p133, %p134
      %p137 = scmp.ne.s32.totalorder %s122, %s136
      %p138 = scmp.eq.s32.totalorder %s28, 0
      %p139 = por %p137, %p138
      %s141 = sadd.s32 %s140, 1
      %p144 = scmp.eq.s32.totalorder %s22, 1
      %p145 = scmp.ne.s32.totalorder %s140, %s142
      %p146 = scmp.eq.s32.totalorder %s22, 0
      %p147 = por %p145, %p146
      %p148 = scmp.ne.s32.totalorder %s140, %s142
      %p149 = scmp.eq.s32.totalorder %s27, 1
      %p150 = por %p148, %p149
      %p151 = scmp.ne.s32.totalorder %s142, %s143
      %p152 = scmp.eq.s32.totalorder %s27, 0
      %p153 = por %p151, %p152
      %p154 = scmp.ne.s32.totalorder %s142, %s143
      %p155 = scmp.eq.s32.totalorder %s28, 1
      %p156 = por %p154, %p155
      %p158 = scmp.ne.s32.totalorder %s143, %s157
      %p159 = scmp.eq.s32.totalorder %s28, 0
      %p160 = por %p158, %p159
      %s162 = sadd.s32 %s161, 1
      %p165 = scmp.eq.s32.totalorder %s22, 1
      %p166 = scmp.ne.s32.totalorder %s161, %s163
      %p167 = scmp.eq.s32.totalorder %s22, 0
      %p168 = por %p166, %p167
      %p169 = scmp.ne.s32.totalorder %s161, %s163
      %p170 = scmp.eq.s32.totalorder %s27, 1
      %p171 = por %p169, %p170
      %p172 = scmp.ne.s32.totalorder %s163, %s164
      %p173 = scmp.eq.s32.totalorder %s27, 0
      %p174 = por %p172, %p173
      %p175 = scmp.ne.s32.totalorder %s163, %s164
      %p176 = scmp.eq.s32.totalorder %s28, 1
      %p177 = por %p175, %p176
      %p179 = scmp.ne.s32.totalorder %s164, %s178
      %p180 = scmp.eq.s32.totalorder %s28, 0
      %p181 = por %p179, %p180
      %s183 = sadd.s32 %s182, 1
      %p186 = scmp.eq.s32.totalorder %s22, 1
      %p187 = scmp.ne.s32.totalorder %s182, %s184
      %p188 = scmp.eq.s32.totalorder %s22, 0
      %p189 = por %p187, %p188
      %p190 = scmp.ne.s32.totalorder %s182, %s184
      %p191 = scmp.eq.s32.totalorder %s27, 1
      %p192 = por %p190, %p191
      %p193 = scmp.ne.s32.totalorder %s184, %s185
      %p194 = scmp.eq.s32.totalorder %s27, 0
      %p195 = por %p193, %p194
      %p196 = scmp.ne.s32.totalorder %s184, %s185
      %p197 = scmp.eq.s32.totalorder %s28, 1
      %p198 = por %p196, %p197
      %p200 = scmp.ne.s32.totalorder %s185, %s199
      %p201 = scmp.eq.s32.totalorder %s28, 0
      %p202 = por %p200, %p201
      %s204 = sadd.s32 %s203, 1
      %p207 = scmp.eq.s32.totalorder %s22, 1
      %p208 = scmp.ne.s32.totalorder %s203, %s205
      %p209 = scmp.eq.s32.totalorder %s22, 0
      %p210 = por %p208, %p209
      %p211 = scmp.ne.s32.totalorder %s203, %s205
      %p212 = scmp.eq.s32.totalorder %s27, 1
      %p213 = por %p211, %p212
      %p214 = scmp.ne.s32.totalorder %s205, %s206
      %p215 = scmp.eq.s32.totalorder %s27, 0
      %p216 = por %p214, %p215
      %p217 = scmp.ne.s32.totalorder %s205, %s206
      %p218 = scmp.eq.s32.totalorder %s28, 1
      %p219 = por %p217, %p218
      %p221 = scmp.ne.s32.totalorder %s206, %s220
      %p222 = scmp.eq.s32.totalorder %s28, 0
      %p223 = por %p221, %p222
      %s225 = sadd.s32 %s224, 1
      %p228 = scmp.eq.s32.totalorder %s22, 1
      %p229 = scmp.ne.s32.totalorder %s224, %s226
      %p230 = scmp.eq.s32.totalorder %s22, 0
      %p231 = por %p229, %p230
      %p232 = scmp.ne.s32.totalorder %s224, %s226
      %p233 = scmp.eq.s32.totalorder %s27, 1
      %p234 = por %p232, %p233
      %p235 = scmp.ne.s32.totalorder %s226, %s227
      %p236 = scmp.eq.s32.totalorder %s27, 0
      %p237 = por %p235, %p236
      %p238 = scmp.ne.s32.totalorder %s226, %s227
      %p239 = scmp.eq.s32.totalorder %s28, 1
      %p240 = por %p238, %p239
      %p242 = scmp.ne.s32.totalorder %s227, %s241
      %p243 = scmp.eq.s32.totalorder %s28, 0
      %p244 = por %p242, %p243
      %p245 = scmp.le.s32.totalorder 1, %s22
      %p246 = scmp.lt.s32.totalorder %s22, 3
      %p247 = pnand %p245, %p246
      %p248 = pneg %p247
      // Predicated region
      $region9: #{tpu_custom_call.1} parent=5 // pred_check
        _
      $region10: #{tpu_custom_call.1} parent=5 // pred_check_branch
        %250 = sbr.rel (%p247) target = $region12
      $region11: #{tpu_custom_call.1} parent=5 // pred_region
        %s251 = ssub.s32 %s22, 1
        // Predicated region
        $region13: #{tpu_custom_call.1} parent=11 // pred_check
          %p252 = pneg %p69
        $region14: #{tpu_custom_call.1} parent=11 // pred_check_branch
          %254 = sbr.rel (%p252) target = $region16
        $region15: #{tpu_custom_call.1} parent=11 // pred_region
          %s256 = ssub.s32 4096, 4096
          %257 = vsyncadd [#allocation11], %s256
          %s258 = sshll.u32 [#allocation10], 4
          %s259 = int_to_ptr.vmem [resolvable:$true] %s258
          %264 = dma.hbm_to_vmem [thread:$0]  %s1, 4096, %s259, [#allocation11], 256, 256, 16
        $region16: #{tpu_custom_call.1} parent=11 // pred_fallthru
          _
        // Predicated region
        $region17: #{tpu_custom_call.1} parent=11 // pred_check
          %p265 = pneg %p90
        $region18: #{tpu_custom_call.1} parent=11 // pred_check_branch
          %267 = sbr.rel (%p265) target = $region20
        $region19: #{tpu_custom_call.1} parent=11 // pred_region
          %s269 = ssub.s32 4096, 4096
          %270 = vsyncadd [#allocation11], %s269
          %s271 = sshll.u32 [#allocation12], 4
          %s272 = int_to_ptr.vmem [resolvable:$true] %s271
          %277 = dma.hbm_to_vmem [thread:$0]  %s2, 4096, %s272, [#allocation11], 256, 256, 16
        $region20: #{tpu_custom_call.1} parent=11 // pred_fallthru
          _
        // Predicated region
        $region21: #{tpu_custom_call.1} parent=11 // pred_check
          %p278 = pneg %p111
        $region22: #{tpu_custom_call.1} parent=11 // pred_check_branch
          %280 = sbr.rel (%p278) target = $region24
        $region23: #{tpu_custom_call.1} parent=11 // pred_region
          _
        $region24: #{tpu_custom_call.1} parent=11 // pred_fallthru
          _
        // Predicated region
        $region25: #{tpu_custom_call.1} parent=11 // pred_check
          %p281 = pneg %p132
        $region26: #{tpu_custom_call.1} parent=11 // pred_check_branch
          %283 = sbr.rel (%p281) target = $region28
        $region27: #{tpu_custom_call.1} parent=11 // pred_region
          %s285 = ssub.s32 4096, 4096
          %286 = vsyncadd [#allocation14], %s285
          %s287 = sshll.u32 [#allocation13], 4
          %s288 = int_to_ptr.vmem [resolvable:$true] %s287
          %293 = dma.hbm_to_vmem [thread:$0]  %s4, 4096, %s288, [#allocation14], 256, 256, 16
        $region28: #{tpu_custom_call.1} parent=11 // pred_fallthru
          _
        // Predicated region
        $region29: #{tpu_custom_call.1} parent=11 // pred_check
          %p294 = pneg %p153
        $region30: #{tpu_custom_call.1} parent=11 // pred_check_branch
          %296 = sbr.rel (%p294) target = $region32
        $region31: #{tpu_custom_call.1} parent=11 // pred_region
          %s298 = ssub.s32 4096, 4096
          %299 = vsyncadd [#allocation14], %s298
          %s300 = sshll.u32 [#allocation15], 4
          %s301 = int_to_ptr.vmem [resolvable:$true] %s300
          %306 = dma.hbm_to_vmem [thread:$0]  %s5, 4096, %s301, [#allocation14], 256, 256, 16
        $region32: #{tpu_custom_call.1} parent=11 // pred_fallthru
          _
        // Predicated region
        $region33: #{tpu_custom_call.1} parent=11 // pred_check
          %p307 = pneg %p174
        $region34: #{tpu_custom_call.1} parent=11 // pred_check_branch
          %309 = sbr.rel (%p307) target = $region36
        $region35: #{tpu_custom_call.1} parent=11 // pred_region
          _
        $region36: #{tpu_custom_call.1} parent=11 // pred_fallthru
          _
        // Predicated region
        $region37: #{tpu_custom_call.1} parent=11 // pred_check
          %p310 = pneg %p195
        $region38: #{tpu_custom_call.1} parent=11 // pred_check_branch
          %312 = sbr.rel (%p310) target = $region40
        $region39: #{tpu_custom_call.1} parent=11 // pred_region
          %s314 = ssub.s32 1024, 1024
          %315 = vsyncadd [#allocation17], %s314
          %s316 = sshll.u32 [#allocation16], 4
          %s317 = int_to_ptr.vmem [resolvable:$true] %s316
          %322 = dma.hbm_to_vmem [thread:$0]  %s7, 1024, %s317, [#allocation17], 64, 64, 4
        $region40: #{tpu_custom_call.1} parent=11 // pred_fallthru
          _
        // Predicated region
        $region41: #{tpu_custom_call.1} parent=11 // pred_check
          %p323 = pneg %p216
        $region42: #{tpu_custom_call.1} parent=11 // pred_check_branch
          %325 = sbr.rel (%p323) target = $region44
        $region43: #{tpu_custom_call.1} parent=11 // pred_region
          _
        $region44: #{tpu_custom_call.1} parent=11 // pred_fallthru
          _
      $region12: #{tpu_custom_call.1} parent=5 // pred_fallthru
        _
      %p326 = scmp.lt.s32.totalorder %s22, 2
      // Predicated region
      $region45: #{tpu_custom_call.1} parent=5 // pred_check
        %p327 = pneg %p326
      $region46: #{tpu_custom_call.1} parent=5 // pred_check_branch
        %329 = sbr.rel (%p327) target = $region48
      $region47: #{tpu_custom_call.1} parent=5 // pred_region
        // Predicated region
        $region49: #{tpu_custom_call.1} parent=47 // pred_check
          %p330 = pneg %p42
        $region50: #{tpu_custom_call.1} parent=47 // pred_check_branch
          %332 = sbr.rel (%p330) target = $region52
        $region51: #{tpu_custom_call.1} parent=47 // pred_region
          %s333 = sand.u32 %s32, 1
          %s334 = scalar_lea.sflag [#allocation8], %s333
          %s335 = sand.u32 %s32, 1
          %s336 = smul.addr %s335, 16
          %s337 = scalar_lea.vmem [#allocation7], %s336
          %s338 = smul.u32 4, %s22
          %s340 = ssub.s32 256, 256
          %341 = vsyncadd %s334, %s340
          %s342 = smul.addr %s338, 64
          %s343 = scalar_lea.hbm %s0, %s342
          %s344 = sshll.u32 %s337, 4
          %s345 = int_to_ptr.vmem [resolvable:$true] %s344
          %350 = dma.hbm_to_vmem [thread:$0]  %s343, 256, %s345, %s334, 64, 64, 4
        $region52: #{tpu_custom_call.1} parent=47 // pred_fallthru
          _
      $region48: #{tpu_custom_call.1} parent=5 // pred_fallthru
        _
      %p351 = scmp.le.s32.totalorder 1, %s22
      %p352 = scmp.lt.s32.totalorder %s22, 3
      %p353 = pnand %p351, %p352
      %p354 = pneg %p353
      // Predicated region
      $region53: #{tpu_custom_call.1} parent=5 // pred_check
        _
      $region54: #{tpu_custom_call.1} parent=5 // pred_check_branch
        %356 = sbr.rel (%p353) target = $region56
      $region55: #{tpu_custom_call.1} parent=5 // pred_region
        %s357 = ssub.s32 %s22, 1
        %s358 = sand.u32 %s35, 1
        %s359 = scalar_lea.sflag [#allocation8], %s358
        %s360 = sand.u32 %s35, 1
        %s361 = smul.addr %s360, 16
        %s362 = scalar_lea.vmem [#allocation7], %s361
        // Predicated region
        $region57: #{tpu_custom_call.1} parent=55 // pred_check
          %p363 = pneg %p48
        $region58: #{tpu_custom_call.1} parent=55 // pred_check_branch
          %365 = sbr.rel (%p363) target = $region60
        $region59: #{tpu_custom_call.1} parent=55 // pred_region
          %366 = dma.done %s359, 256
        $region60: #{tpu_custom_call.1} parent=55 // pred_fallthru
          _
        // Predicated region
        $region61: #{tpu_custom_call.1} parent=55 // pred_check
          %p367 = pneg %p69
        $region62: #{tpu_custom_call.1} parent=55 // pred_check_branch
          %369 = sbr.rel (%p367) target = $region64
        $region63: #{tpu_custom_call.1} parent=55 // pred_region
          %370 = dma.done [#allocation11], 4096
        $region64: #{tpu_custom_call.1} parent=55 // pred_fallthru
          _
        // Predicated region
        $region65: #{tpu_custom_call.1} parent=55 // pred_check
          %p371 = pneg %p90
        $region66: #{tpu_custom_call.1} parent=55 // pred_check_branch
          %373 = sbr.rel (%p371) target = $region68
        $region67: #{tpu_custom_call.1} parent=55 // pred_region
          %374 = dma.done [#allocation11], 4096
        $region68: #{tpu_custom_call.1} parent=55 // pred_fallthru
          _
        // Predicated region
        $region69: #{tpu_custom_call.1} parent=55 // pred_check
          %p375 = pneg %p132
        $region70: #{tpu_custom_call.1} parent=55 // pred_check_branch
          %377 = sbr.rel (%p375) target = $region72
        $region71: #{tpu_custom_call.1} parent=55 // pred_region
          %378 = dma.done [#allocation14], 4096
        $region72: #{tpu_custom_call.1} parent=55 // pred_fallthru
          _
        // Predicated region
        $region73: #{tpu_custom_call.1} parent=55 // pred_check
          %p379 = pneg %p153
        $region74: #{tpu_custom_call.1} parent=55 // pred_check_branch
          %381 = sbr.rel (%p379) target = $region76
        $region75: #{tpu_custom_call.1} parent=55 // pred_region
          %382 = dma.done [#allocation14], 4096
        $region76: #{tpu_custom_call.1} parent=55 // pred_fallthru
          _
        // Predicated region
        $region77: #{tpu_custom_call.1} parent=55 // pred_check
          %p383 = pneg %p195
        $region78: #{tpu_custom_call.1} parent=55 // pred_check_branch
          %385 = sbr.rel (%p383) target = $region80
        $region79: #{tpu_custom_call.1} parent=55 // pred_region
          %386 = dma.done [#allocation17], 1024
        $region80: #{tpu_custom_call.1} parent=55 // pred_fallthru
          _
        %s387 = sand.u32 %s35, 1
        %s388 = scalar_lea.sflag [#allocation8], %s387
        %s389 = sand.u32 %s35, 1
        %s390 = smul.addr %s389, 16
        %s391 = scalar_lea.vmem [#allocation7], %s390
        %p392 = pneg %p48
        %p393 = pneg %p45
        %p394 = pneg %p69
        %p395 = pneg %p66
        %p396 = pneg %p90
        %p397 = pneg %p87
        %p398 = pneg %p111
        %p399 = pneg %p108
        %p400 = pneg %p132
        %p401 = pneg %p129
        %p402 = pneg %p153
        %p403 = pneg %p150
        %p404 = pneg %p174
        %p405 = pneg %p171
        %p406 = pneg %p195
        %p407 = pneg %p192
        %p408 = pneg %p216
        %p409 = pneg %p213
        %p410 = pneg %p237
        %p411 = pneg %p234
        %s412 = smul.u32 4, %s27
        %p414 = scmp.eq.s32.totalorder %s27, 0
        // Predicated region
        $region81: #{tpu_custom_call.1} parent=55 // pred_check
          %p415 = pneg %p414
        $region82: #{tpu_custom_call.1} parent=55 // pred_check_branch
          %417 = sbr.rel (%p415) target = $region84
        $region83: #{tpu_custom_call.1} parent=55 // pred_region
          %418 = vst [vmem:[#allocation3] sm:$0xff] 0.0
          %419 = vst [vmem:[#allocation4] sm:$0xff] 0.0
          %420 = vst [vmem:[#allocation5] sm:$0xff] 0.0
          %421 = vst [vmem:[#allocation6] sm:$0xff] 0.0
        $region84: #{tpu_custom_call.1} parent=55 // pred_fallthru
          _
        %v422 = vld [vmem:[%s362] sm:$0xf]
        %v423 = vld [vmem:[%s362 + $0x4] sm:$0xf]
        %v424 = vld [vmem:[%s362 + $0x8] sm:$0xf]
        %v425 = vld [vmem:[%s362 + $0xc] sm:$0xf]
        %v426 = vld [vmem:[#allocation10] sm:$0xff]
        %v427 = vld [vmem:[#allocation10 + $0x8] sm:$0xff]
        %v428 = vld [vmem:[#allocation10 + $0x10] sm:$0xff]
        %v429 = vld [vmem:[#allocation10 + $0x18] sm:$0xff]
        %v430 = vld [vmem:[#allocation10 + $0x20] sm:$0xff]
        %v431 = vld [vmem:[#allocation10 + $0x28] sm:$0xff]
        %v432 = vld [vmem:[#allocation10 + $0x30] sm:$0xff]
        %v433 = vld [vmem:[#allocation10 + $0x38] sm:$0xff]
        %v434 = vld [vmem:[#allocation10 + $0x40] sm:$0xff]
        %v435 = vld [vmem:[#allocation10 + $0x48] sm:$0xff]
        %v436 = vld [vmem:[#allocation10 + $0x50] sm:$0xff]
        %v437 = vld [vmem:[#allocation10 + $0x58] sm:$0xff]
        %v438 = vld [vmem:[#allocation10 + $0x60] sm:$0xff]
        %v439 = vld [vmem:[#allocation10 + $0x68] sm:$0xff]
        %v440 = vld [vmem:[#allocation10 + $0x70] sm:$0xff]
        %v441 = vld [vmem:[#allocation10 + $0x78] sm:$0xff]
        %v442 = vld [vmem:[#allocation10 + $0x80] sm:$0xff]
        %v443 = vld [vmem:[#allocation10 + $0x88] sm:$0xff]
        %v444 = vld [vmem:[#allocation10 + $0x90] sm:$0xff]
        %v445 = vld [vmem:[#allocation10 + $0x98] sm:$0xff]
        %v446 = vld [vmem:[#allocation10 + $0xa0] sm:$0xff]
        %v447 = vld [vmem:[#allocation10 + $0xa8] sm:$0xff]
        %v448 = vld [vmem:[#allocation10 + $0xb0] sm:$0xff]
        %v449 = vld [vmem:[#allocation10 + $0xb8] sm:$0xff]
        %v450 = vld [vmem:[#allocation10 + $0xc0] sm:$0xff]
        %v451 = vld [vmem:[#allocation10 + $0xc8] sm:$0xff]
        %v452 = vld [vmem:[#allocation10 + $0xd0] sm:$0xff]
        %v453 = vld [vmem:[#allocation10 + $0xd8] sm:$0xff]
        %v454 = vld [vmem:[#allocation10 + $0xe0] sm:$0xff]
        %v455 = vld [vmem:[#allocation10 + $0xe8] sm:$0xff]
        %v456 = vld [vmem:[#allocation10 + $0xf0] sm:$0xff]
        %v457 = vld [vmem:[#allocation10 + $0xf8] sm:$0xff]
        %v458 = vld [vmem:[%s3] sm:$0xf]
        %v460 = vlaneseq
        %v461 = vshrl.u32 %v460, 7
        %v462 = vsub.s32 0, %v461
        %v463 = vrot.slane %v458, %v462
        %v464 = vlaneseq
        %v465 = vshrl.u32 %v464, 7
        %v466 = vsub.s32 1, %v465
        %v467 = vrot.slane %v458, %v466
        %v468 = vlaneseq
        %v469 = vshrl.u32 %v468, 7
        %v470 = vsub.s32 2, %v469
        %v471 = vrot.slane %v458, %v470
        %v472 = vlaneseq
        %v473 = vshrl.u32 %v472, 7
        %v474 = vsub.s32 3, %v473
        %v475 = vrot.slane %v458, %v474
        %v484 = vunpack.c.l.b16 %v422
        %v485 = vunpack.c.l.b16 %v423
        %v486 = vunpack.c.l.b16 %v424
        %v487 = vunpack.c.l.b16 %v425
        %v488 = vpack.c.b16 %v485, %v484
        %v489 = vpack.c.b16 %v487, %v486
        %v524 = vunpack.c.l.b16 %v426
        %v525 = vunpack.c.h.b16 %v426
        %v526 = vunpack.c.l.b16 %v427
        %v527 = vunpack.c.h.b16 %v427
        %v528 = vunpack.c.l.b16 %v428
        %v529 = vunpack.c.h.b16 %v428
        %v530 = vunpack.c.l.b16 %v429
        %v531 = vunpack.c.h.b16 %v429
        %v532 = vunpack.c.l.b16 %v430
        %v533 = vunpack.c.h.b16 %v430
        %v534 = vunpack.c.l.b16 %v431
        %v535 = vunpack.c.h.b16 %v431
        %v536 = vunpack.c.l.b16 %v432
        %v537 = vunpack.c.h.b16 %v432
        %v538 = vunpack.c.l.b16 %v433
        %v539 = vunpack.c.h.b16 %v433
        %v540 = vunpack.c.l.b16 %v434
        %v541 = vunpack.c.h.b16 %v434
        %v542 = vunpack.c.l.b16 %v435
        %v543 = vunpack.c.h.b16 %v435
        %v544 = vunpack.c.l.b16 %v436
        %v545 = vunpack.c.h.b16 %v436
        %v546 = vunpack.c.l.b16 %v437
        %v547 = vunpack.c.h.b16 %v437
        %v548 = vunpack.c.l.b16 %v438
        %v549 = vunpack.c.h.b16 %v438
        %v550 = vunpack.c.l.b16 %v439
        %v551 = vunpack.c.h.b16 %v439
        %v552 = vunpack.c.l.b16 %v440
        %v553 = vunpack.c.h.b16 %v440
        %v554 = vunpack.c.l.b16 %v441
        %v555 = vunpack.c.h.b16 %v441
        %v556 = vunpack.c.l.b16 %v442
        %v557 = vunpack.c.h.b16 %v442
        %v558 = vunpack.c.l.b16 %v443
        %v559 = vunpack.c.h.b16 %v443
        %v560 = vunpack.c.l.b16 %v444
        %v561 = vunpack.c.h.b16 %v444
        %v562 = vunpack.c.l.b16 %v445
        %v563 = vunpack.c.h.b16 %v445
        %v564 = vunpack.c.l.b16 %v446
        %v565 = vunpack.c.h.b16 %v446
        %v566 = vunpack.c.l.b16 %v447
        %v567 = vunpack.c.h.b16 %v447
        %v568 = vunpack.c.l.b16 %v448
        %v569 = vunpack.c.h.b16 %v448
        %v570 = vunpack.c.l.b16 %v449
        %v571 = vunpack.c.h.b16 %v449
        %v572 = vunpack.c.l.b16 %v450
        %v573 = vunpack.c.h.b16 %v450
        %v574 = vunpack.c.l.b16 %v451
        %v575 = vunpack.c.h.b16 %v451
        %v576 = vunpack.c.l.b16 %v452
        %v577 = vunpack.c.h.b16 %v452
        %v578 = vunpack.c.l.b16 %v453
        %v579 = vunpack.c.h.b16 %v453
        %v580 = vunpack.c.l.b16 %v454
        %v581 = vunpack.c.h.b16 %v454
        %v582 = vunpack.c.l.b16 %v455
        %v583 = vunpack.c.h.b16 %v455
        %v584 = vunpack.c.l.b16 %v456
        %v585 = vunpack.c.h.b16 %v456
        %v586 = vunpack.c.l.b16 %v457
        %v587 = vunpack.c.h.b16 %v457
        %v588 = vpack.c.b16 %v528, %v524
        %v589 = vpack.c.b16 %v529, %v525
        %v590 = vpack.c.b16 %v530, %v526
        %v591 = vpack.c.b16 %v531, %v527
        %v592 = vpack.c.b16 %v536, %v532
        %v593 = vpack.c.b16 %v537, %v533
        %v594 = vpack.c.b16 %v538, %v534
        %v595 = vpack.c.b16 %v539, %v535
        %v596 = vpack.c.b16 %v544, %v540
        %v597 = vpack.c.b16 %v545, %v541
        %v598 = vpack.c.b16 %v546, %v542
        %v599 = vpack.c.b16 %v547, %v543
        %v600 = vpack.c.b16 %v552, %v548
        %v601 = vpack.c.b16 %v553, %v549
        %v602 = vpack.c.b16 %v554, %v550
        %v603 = vpack.c.b16 %v555, %v551
        %v604 = vpack.c.b16 %v560, %v556
        %v605 = vpack.c.b16 %v561, %v557
        %v606 = vpack.c.b16 %v562, %v558
        %v607 = vpack.c.b16 %v563, %v559
        %v608 = vpack.c.b16 %v568, %v564
        %v609 = vpack.c.b16 %v569, %v565
        %v610 = vpack.c.b16 %v570, %v566
        %v611 = vpack.c.b16 %v571, %v567
        %v612 = vpack.c.b16 %v576, %v572
        %v613 = vpack.c.b16 %v577, %v573
        %v614 = vpack.c.b16 %v578, %v574
        %v615 = vpack.c.b16 %v579, %v575
        %v616 = vpack.c.b16 %v584, %v580
        %v617 = vpack.c.b16 %v585, %v581
        %v618 = vpack.c.b16 %v586, %v582
        %v619 = vpack.c.b16 %v587, %v583
        %652 = vmatprep.subr.bf16.mxu0 %v589
        %653 = vmatpush1.bf16.msra.mxu0 %v588
        %654 = vmatprep.subr.bf16.mxu0 %v593
        %655 = vmatpush1.bf16.msra.mxu0 %v592
        %656 = vmatprep.subr.bf16.mxu0 %v597
        %657 = vmatpush1.bf16.msra.mxu0 %v596
        %658 = vmatprep.subr.bf16.mxu0 %v601
        %659 = vmatpush1.bf16.msra.mxu0 %v600
        %660 = vmatprep.subr.bf16.mxu0 %v605
        %661 = vmatpush1.bf16.msra.mxu0 %v604
        %662 = vmatprep.subr.bf16.mxu0 %v609
        %663 = vmatpush1.bf16.msra.mxu0 %v608
        %664 = vmatprep.subr.bf16.mxu0 %v613
        %665 = vmatpush1.bf16.msra.mxu0 %v612
        %666 = vmatprep.subr.bf16.mxu0 %v617
        %667 = vmatpush1.bf16.msra.mxu0 %v616
        %668 = vmatprep.subr.bf16.mxu0 0
        %669 = vmatpush1.bf16.msra.mxu0 0
        %670 = vmatprep.subr.bf16.mxu0 0
        %671 = vmatpush1.bf16.msra.mxu0 0
        %672 = vmatprep.subr.bf16.mxu0 0
        %673 = vmatpush1.bf16.msra.mxu0 0
        %674 = vmatprep.subr.bf16.mxu0 0
        %675 = vmatpush1.bf16.msra.mxu0 0
        %676 = vmatprep.subr.bf16.mxu0 0
        %677 = vmatpush1.bf16.msra.mxu0 0
        %678 = vmatprep.subr.bf16.mxu0 0
        %679 = vmatpush1.bf16.msra.mxu0 0
        %680 = vmatprep.subr.bf16.mxu0 0
        %681 = vmatpush1.bf16.msra.mxu0 0
        %682 = vmatprep.subr.bf16.mxu0 0
        %683 = vmatpush1.bf16.msra.mxu0 0
        %684 = vmatprep.mubr.bf16.mxu0 0
        %685 = vmatmul.mubr.bf16.gmra.mrb[0].mxu0 %v488
        %v686 = vpop.f32.mrb[0].mxu0
        %v687 = vadd.f32 %v463, %v686
        %v688 = vpop.f32.mrb[0].mxu0
        %v689 = vadd.f32 %v467, %v688
        %v690 = vpop.f32.mrb[0].mxu0
        %v691 = vadd.f32 %v463, %v690
        %v692 = vpop.f32.mrb[0].mxu0
        %v693 = vadd.f32 %v467, %v692
        %694 = vmatprep.mubr.bf16.mxu0 0
        %695 = vmatmul.mubr.bf16.gmra.mrb[0].mxu0 %v489
        %v696 = vpop.f32.mrb[0].mxu0
        %v697 = vadd.f32 %v463, %v696
        %v698 = vpop.f32.mrb[0].mxu0
        %v699 = vadd.f32 %v467, %v698
        %v700 = vpop.f32.mrb[0].mxu0
        %v701 = vadd.f32 %v463, %v700
        %v702 = vpop.f32.mrb[0].mxu0
        %v703 = vadd.f32 %v467, %v702
        %704 = vdwg.mxu0
        %705 = vmatprep.subr.bf16.mxu0 %v591
        %706 = vmatpush1.bf16.msra.mxu0 %v590
        %707 = vmatprep.subr.bf16.mxu0 %v595
        %708 = vmatpush1.bf16.msra.mxu0 %v594
        %709 = vmatprep.subr.bf16.mxu0 %v599
        %710 = vmatpush1.bf16.msra.mxu0 %v598
        %711 = vmatprep.subr.bf16.mxu0 %v603
        %712 = vmatpush1.bf16.msra.mxu0 %v602
        %713 = vmatprep.subr.bf16.mxu0 %v607
        %714 = vmatpush1.bf16.msra.mxu0 %v606
        %715 = vmatprep.subr.bf16.mxu0 %v611
        %716 = vmatpush1.bf16.msra.mxu0 %v610
        %717 = vmatprep.subr.bf16.mxu0 %v615
        %718 = vmatpush1.bf16.msra.mxu0 %v614
        %719 = vmatprep.subr.bf16.mxu0 %v619
        %720 = vmatpush1.bf16.msra.mxu0 %v618
        %721 = vmatprep.subr.bf16.mxu0 0
        %722 = vmatpush1.bf16.msra.mxu0 0
        %723 = vmatprep.subr.bf16.mxu0 0
        %724 = vmatpush1.bf16.msra.mxu0 0
        %725 = vmatprep.subr.bf16.mxu0 0
        %726 = vmatpush1.bf16.msra.mxu0 0
        %727 = vmatprep.subr.bf16.mxu0 0
        %728 = vmatpush1.bf16.msra.mxu0 0
        %729 = vmatprep.subr.bf16.mxu0 0
        %730 = vmatpush1.bf16.msra.mxu0 0
        %731 = vmatprep.subr.bf16.mxu0 0
        %732 = vmatpush1.bf16.msra.mxu0 0
        %733 = vmatprep.subr.bf16.mxu0 0
        %734 = vmatpush1.bf16.msra.mxu0 0
        %735 = vmatprep.subr.bf16.mxu0 0
        %736 = vmatpush1.bf16.msra.mxu0 0
        %737 = vmatprep.mubr.bf16.mxu0 0
        %738 = vmatmul.mubr.bf16.gmra.mrb[0].mxu0 %v488
        %v739 = vpop.f32.mrb[0].mxu0
        %v740 = vadd.f32 %v471, %v739
        %v741 = vpop.f32.mrb[0].mxu0
        %v742 = vadd.f32 %v475, %v741
        %v743 = vpop.f32.mrb[0].mxu0
        %v744 = vadd.f32 %v471, %v743
        %v745 = vpop.f32.mrb[0].mxu0
        %v746 = vadd.f32 %v475, %v745
        %747 = vmatprep.mubr.bf16.mxu0 0
        %748 = vmatmul.mubr.bf16.gmra.mrb[0].mxu0 %v489
        %v749 = vpop.f32.mrb[0].mxu0
        %v750 = vadd.f32 %v471, %v749
        %v751 = vpop.f32.mrb[0].mxu0
        %v752 = vadd.f32 %v475, %v751
        %v753 = vpop.f32.mrb[0].mxu0
        %v754 = vadd.f32 %v471, %v753
        %v755 = vpop.f32.mrb[0].mxu0
        %v756 = vadd.f32 %v475, %v755
        %757 = vdwg.mxu0
        %758 = vst [vmem:[#allocation2] sm:$0xff] %v687
        %759 = vst [vmem:[#allocation2 + $0x8] sm:$0xff] %v689
        %760 = vst [vmem:[#allocation2 + $0x10] sm:$0xff] %v740
        %761 = vst [vmem:[#allocation2 + $0x18] sm:$0xff] %v742
        %762 = vst [vmem:[#allocation2 + $0x20] sm:$0xff] %v691
        %763 = vst [vmem:[#allocation2 + $0x28] sm:$0xff] %v693
        %764 = vst [vmem:[#allocation2 + $0x30] sm:$0xff] %v744
        %765 = vst [vmem:[#allocation2 + $0x38] sm:$0xff] %v746
        %766 = vst [vmem:[#allocation2 + $0x40] sm:$0xff] %v697
        %767 = vst [vmem:[#allocation2 + $0x48] sm:$0xff] %v699
        %768 = vst [vmem:[#allocation2 + $0x50] sm:$0xff] %v750
        %769 = vst [vmem:[#allocation2 + $0x58] sm:$0xff] %v752
        %770 = vst [vmem:[#allocation2 + $0x60] sm:$0xff] %v701
        %771 = vst [vmem:[#allocation2 + $0x68] sm:$0xff] %v703
        %772 = vst [vmem:[#allocation2 + $0x70] sm:$0xff] %v754
        %773 = vst [vmem:[#allocation2 + $0x78] sm:$0xff] %v756
        %v774 = vld [vmem:[%s6] sm:$0xf]
        %v776 = vlaneseq
        %v777 = vshrl.u32 %v776, 7
        %v778 = vsub.s32 0, %v777
        %v779 = vrot.slane %v774, %v778
        %v780 = vlaneseq
        %v781 = vshrl.u32 %v780, 7
        %v782 = vsub.s32 1, %v781
        %v783 = vrot.slane %v774, %v782
        %v784 = vlaneseq
        %v785 = vshrl.u32 %v784, 7
        %v786 = vsub.s32 2, %v785
        %v787 = vrot.slane %v774, %v786
        %v788 = vlaneseq
        %v789 = vshrl.u32 %v788, 7
        %v790 = vsub.s32 3, %v789
        %v791 = vrot.slane %v774, %v790
        %v796 = vld [vmem:[#allocation3] sm:$0xff]
        %v797 = vld [vmem:[#allocation4] sm:$0xff]
        %v798 = vld [vmem:[#allocation5] sm:$0xff]
        %v799 = vld [vmem:[#allocation6] sm:$0xff]
        %v800 = vpack.c.bf16 %v798, %v798
        %v801 = vld [vmem:[#allocation15] sm:$0xff]
        %v802 = vld [vmem:[#allocation15 + $0x8] sm:$0xff]
        %v803 = vld [vmem:[#allocation15 + $0x10] sm:$0xff]
        %v804 = vld [vmem:[#allocation15 + $0x18] sm:$0xff]
        %v805 = vld [vmem:[#allocation15 + $0x20] sm:$0xff]
        %v806 = vld [vmem:[#allocation15 + $0x28] sm:$0xff]
        %v807 = vld [vmem:[#allocation15 + $0x30] sm:$0xff]
        %v808 = vld [vmem:[#allocation15 + $0x38] sm:$0xff]
        %v809 = vld [vmem:[#allocation15 + $0x40] sm:$0xff]
        %v810 = vld [vmem:[#allocation15 + $0x48] sm:$0xff]
        %v811 = vld [vmem:[#allocation15 + $0x50] sm:$0xff]
        %v812 = vld [vmem:[#allocation15 + $0x58] sm:$0xff]
        %v813 = vld [vmem:[#allocation15 + $0x60] sm:$0xff]
        %v814 = vld [vmem:[#allocation15 + $0x68] sm:$0xff]
        %v815 = vld [vmem:[#allocation15 + $0x70] sm:$0xff]
        %v816 = vld [vmem:[#allocation15 + $0x78] sm:$0xff]
        %v817 = vld [vmem:[#allocation15 + $0x80] sm:$0xff]
        %v818 = vld [vmem:[#allocation15 + $0x88] sm:$0xff]
        %v819 = vld [vmem:[#allocation15 + $0x90] sm:$0xff]
        %v820 = vld [vmem:[#allocation15 + $0x98] sm:$0xff]
        %v821 = vld [vmem:[#allocation15 + $0xa0] sm:$0xff]
        %v822 = vld [vmem:[#allocation15 + $0xa8] sm:$0xff]
        %v823 = vld [vmem:[#allocation15 + $0xb0] sm:$0xff]
        %v824 = vld [vmem:[#allocation15 + $0xb8] sm:$0xff]
        %v825 = vld [vmem:[#allocation15 + $0xc0] sm:$0xff]
        %v826 = vld [vmem:[#allocation15 + $0xc8] sm:$0xff]
        %v827 = vld [vmem:[#allocation15 + $0xd0] sm:$0xff]
        %v828 = vld [vmem:[#allocation15 + $0xd8] sm:$0xff]
        %v829 = vld [vmem:[#allocation15 + $0xe0] sm:$0xff]
        %v830 = vld [vmem:[#allocation15 + $0xe8] sm:$0xff]
        %v831 = vld [vmem:[#allocation15 + $0xf0] sm:$0xff]
        %v832 = vld [vmem:[#allocation15 + $0xf8] sm:$0xff]
        %v865 = vunpack.c.l.b16 %v801
        %v866 = vunpack.c.h.b16 %v801
        %v867 = vunpack.c.l.b16 %v802
        %v868 = vunpack.c.h.b16 %v802
        %v869 = vunpack.c.l.b16 %v803
        %v870 = vunpack.c.h.b16 %v803
        %v871 = vunpack.c.l.b16 %v804
        %v872 = vunpack.c.h.b16 %v804
        %v873 = vunpack.c.l.b16 %v805
        %v874 = vunpack.c.h.b16 %v805
        %v875 = vunpack.c.l.b16 %v806
        %v876 = vunpack.c.h.b16 %v806
        %v877 = vunpack.c.l.b16 %v807
        %v878 = vunpack.c.h.b16 %v807
        %v879 = vunpack.c.l.b16 %v808
        %v880 = vunpack.c.h.b16 %v808
        %v881 = vunpack.c.l.b16 %v809
        %v882 = vunpack.c.h.b16 %v809
        %v883 = vunpack.c.l.b16 %v810
        %v884 = vunpack.c.h.b16 %v810
        %v885 = vunpack.c.l.b16 %v811
        %v886 = vunpack.c.h.b16 %v811
        %v887 = vunpack.c.l.b16 %v812
        %v888 = vunpack.c.h.b16 %v812
        %v889 = vunpack.c.l.b16 %v813
        %v890 = vunpack.c.h.b16 %v813
        %v891 = vunpack.c.l.b16 %v814
        %v892 = vunpack.c.h.b16 %v814
        %v893 = vunpack.c.l.b16 %v815
        %v894 = vunpack.c.h.b16 %v815
        %v895 = vunpack.c.l.b16 %v816
        %v896 = vunpack.c.h.b16 %v816
        %v897 = vunpack.c.l.b16 %v817
        %v898 = vunpack.c.h.b16 %v817
        %v899 = vunpack.c.l.b16 %v818
        %v900 = vunpack.c.h.b16 %v818
        %v901 = vunpack.c.l.b16 %v819
        %v902 = vunpack.c.h.b16 %v819
        %v903 = vunpack.c.l.b16 %v820
        %v904 = vunpack.c.h.b16 %v820
        %v905 = vunpack.c.l.b16 %v821
        %v906 = vunpack.c.h.b16 %v821
        %v907 = vunpack.c.l.b16 %v822
        %v908 = vunpack.c.h.b16 %v822
        %v909 = vunpack.c.l.b16 %v823
        %v910 = vunpack.c.h.b16 %v823
        %v911 = vunpack.c.l.b16 %v824
        %v912 = vunpack.c.h.b16 %v824
        %v913 = vunpack.c.l.b16 %v825
        %v914 = vunpack.c.h.b16 %v825
        %v915 = vunpack.c.l.b16 %v826
        %v916 = vunpack.c.h.b16 %v826
        %v917 = vunpack.c.l.b16 %v827
        %v918 = vunpack.c.h.b16 %v827
        %v919 = vunpack.c.l.b16 %v828
        %v920 = vunpack.c.h.b16 %v828
        %v921 = vunpack.c.l.b16 %v829
        %v922 = vunpack.c.h.b16 %v829
        %v923 = vunpack.c.l.b16 %v830
        %v924 = vunpack.c.h.b16 %v830
        %v925 = vunpack.c.l.b16 %v831
        %v926 = vunpack.c.h.b16 %v831
        %v927 = vunpack.c.l.b16 %v832
        %v928 = vunpack.c.h.b16 %v832
        %v929 = vpack.c.b16 %v869, %v865
        %v930 = vpack.c.b16 %v870, %v866
        %v931 = vpack.c.b16 %v871, %v867
        %v932 = vpack.c.b16 %v872, %v868
        %v933 = vpack.c.b16 %v877, %v873
        %v934 = vpack.c.b16 %v878, %v874
        %v935 = vpack.c.b16 %v879, %v875
        %v936 = vpack.c.b16 %v880, %v876
        %v937 = vpack.c.b16 %v885, %v881
        %v938 = vpack.c.b16 %v886, %v882
        %v939 = vpack.c.b16 %v887, %v883
        %v940 = vpack.c.b16 %v888, %v884
        %v941 = vpack.c.b16 %v893, %v889
        %v942 = vpack.c.b16 %v894, %v890
        %v943 = vpack.c.b16 %v895, %v891
        %v944 = vpack.c.b16 %v896, %v892
        %v945 = vpack.c.b16 %v901, %v897
        %v946 = vpack.c.b16 %v902, %v898
        %v947 = vpack.c.b16 %v903, %v899
        %v948 = vpack.c.b16 %v904, %v900
        %v949 = vpack.c.b16 %v909, %v905
        %v950 = vpack.c.b16 %v910, %v906
        %v951 = vpack.c.b16 %v911, %v907
        %v952 = vpack.c.b16 %v912, %v908
        %v953 = vpack.c.b16 %v917, %v913
        %v954 = vpack.c.b16 %v918, %v914
        %v955 = vpack.c.b16 %v919, %v915
        %v956 = vpack.c.b16 %v920, %v916
        %v957 = vpack.c.b16 %v925, %v921
        %v958 = vpack.c.b16 %v926, %v922
        %v959 = vpack.c.b16 %v927, %v923
        %v960 = vpack.c.b16 %v928, %v924
        %993 = vmatprep.subr.bf16.mxu0 %v930
        %994 = vmatpush1.bf16.msra.mxu0 %v929
        %995 = vmatprep.subr.bf16.mxu0 %v934
        %996 = vmatpush1.bf16.msra.mxu0 %v933
        %997 = vmatprep.subr.bf16.mxu0 %v938
        %998 = vmatpush1.bf16.msra.mxu0 %v937
        %999 = vmatprep.subr.bf16.mxu0 %v942
        %1000 = vmatpush1.bf16.msra.mxu0 %v941
        %1001 = vmatprep.subr.bf16.mxu0 %v946
        %1002 = vmatpush1.bf16.msra.mxu0 %v945
        %1003 = vmatprep.subr.bf16.mxu0 %v950
        %1004 = vmatpush1.bf16.msra.mxu0 %v949
        %1005 = vmatprep.subr.bf16.mxu0 %v954
        %1006 = vmatpush1.bf16.msra.mxu0 %v953
        %1007 = vmatprep.subr.bf16.mxu0 %v958
        %1008 = vmatpush1.bf16.msra.mxu0 %v957
        %1009 = vmatprep.subr.bf16.mxu0 0
        %1010 = vmatpush1.bf16.msra.mxu0 0
        %1011 = vmatprep.subr.bf16.mxu0 0
        %1012 = vmatpush1.bf16.msra.mxu0 0
        %1013 = vmatprep.subr.bf16.mxu0 0
        %1014 = vmatpush1.bf16.msra.mxu0 0
        %1015 = vmatprep.subr.bf16.mxu0 0
        %1016 = vmatpush1.bf16.msra.mxu0 0
        %1017 = vmatprep.subr.bf16.mxu0 0
        %1018 = vmatpush1.bf16.msra.mxu0 0
        %1019 = vmatprep.subr.bf16.mxu0 0
        %1020 = vmatpush1.bf16.msra.mxu0 0
        %1021 = vmatprep.subr.bf16.mxu0 0
        %1022 = vmatpush1.bf16.msra.mxu0 0
        %1023 = vmatprep.subr.bf16.mxu0 0
        %1024 = vmatpush1.bf16.msra.mxu0 0
        %1025 = vmatprep.mubr.bf16.mxu0 0
        %1026 = vmatmul.mubr.bf16.gmra.mrb[0].mxu0 %v800
        %v1027 = vpop.f32.mrb[0].mxu0
        %v1028 = vadd.f32 %v779, %v1027
        %v1029 = vpop.f32.mrb[0].mxu0
        %v1030 = vadd.f32 %v783, %v1029
        %v1031 = vpop.f32.mrb[0].mxu0
        %v1032 = vpop.f32.mrb[0].mxu0
        %1033 = vdwg.mxu0
        %1034 = vmatprep.subr.bf16.mxu0 %v932
        %1035 = vmatpush1.bf16.msra.mxu0 %v931
        %1036 = vmatprep.subr.bf16.mxu0 %v936
        %1037 = vmatpush1.bf16.msra.mxu0 %v935
        %1038 = vmatprep.subr.bf16.mxu0 %v940
        %1039 = vmatpush1.bf16.msra.mxu0 %v939
        %1040 = vmatprep.subr.bf16.mxu0 %v944
        %1041 = vmatpush1.bf16.msra.mxu0 %v943
        %1042 = vmatprep.subr.bf16.mxu0 %v948
        %1043 = vmatpush1.bf16.msra.mxu0 %v947
        %1044 = vmatprep.subr.bf16.mxu0 %v952
        %1045 = vmatpush1.bf16.msra.mxu0 %v951
        %1046 = vmatprep.subr.bf16.mxu0 %v956
        %1047 = vmatpush1.bf16.msra.mxu0 %v955
        %1048 = vmatprep.subr.bf16.mxu0 %v960
        %1049 = vmatpush1.bf16.msra.mxu0 %v959
        %1050 = vmatprep.subr.bf16.mxu0 0
        %1051 = vmatpush1.bf16.msra.mxu0 0
        %1052 = vmatprep.subr.bf16.mxu0 0
        %1053 = vmatpush1.bf16.msra.mxu0 0
        %1054 = vmatprep.subr.bf16.mxu0 0
        %1055 = vmatpush1.bf16.msra.mxu0 0
        %1056 = vmatprep.subr.bf16.mxu0 0
        %1057 = vmatpush1.bf16.msra.mxu0 0
        %1058 = vmatprep.subr.bf16.mxu0 0
        %1059 = vmatpush1.bf16.msra.mxu0 0
        %1060 = vmatprep.subr.bf16.mxu0 0
        %1061 = vmatpush1.bf16.msra.mxu0 0
        %1062 = vmatprep.subr.bf16.mxu0 0
        %1063 = vmatpush1.bf16.msra.mxu0 0
        %1064 = vmatprep.subr.bf16.mxu0 0
        %1065 = vmatpush1.bf16.msra.mxu0 0
        %1066 = vmatprep.mubr.bf16.mxu0 0
        %1067 = vmatmul.mubr.bf16.gmra.mrb[0].mxu0 %v800
        %v1068 = vpop.f32.mrb[0].mxu0
        %v1069 = vadd.f32 %v787, %v1068
        %v1070 = vpop.f32.mrb[0].mxu0
        %v1071 = vadd.f32 %v791, %v1070
        %v1072 = vpop.f32.mrb[0].mxu0
        %v1073 = vpop.f32.mrb[0].mxu0
        %1074 = vdwg.mxu0
        %s1075 = smul.u32 0, 4
        %s1076 = smul.addr %s1075, 8
        %s1077 = scalar_lea.vmem [#allocation2], %s1076
        %v1078 = vld [vmem:[%s1077] sm:$0xff]
        %v1079 = vld [vmem:[%s1077 + $0x8] sm:$0xff]
        %v1080 = vld [vmem:[%s1077 + $0x10] sm:$0xff]
        %v1081 = vld [vmem:[%s1077 + $0x18] sm:$0xff]
        %v1082 = vpack.c.bf16 %v796, %v796
        %v1083 = vld [vmem:[#allocation12] sm:$0xff]
        %v1084 = vld [vmem:[#allocation12 + $0x8] sm:$0xff]
        %v1085 = vld [vmem:[#allocation12 + $0x10] sm:$0xff]
        %v1086 = vld [vmem:[#allocation12 + $0x18] sm:$0xff]
        %v1087 = vld [vmem:[#allocation12 + $0x20] sm:$0xff]
        %v1088 = vld [vmem:[#allocation12 + $0x28] sm:$0xff]
        %v1089 = vld [vmem:[#allocation12 + $0x30] sm:$0xff]
        %v1090 = vld [vmem:[#allocation12 + $0x38] sm:$0xff]
        %v1091 = vld [vmem:[#allocation12 + $0x40] sm:$0xff]
        %v1092 = vld [vmem:[#allocation12 + $0x48] sm:$0xff]
        %v1093 = vld [vmem:[#allocation12 + $0x50] sm:$0xff]
        %v1094 = vld [vmem:[#allocation12 + $0x58] sm:$0xff]
        %v1095 = vld [vmem:[#allocation12 + $0x60] sm:$0xff]
        %v1096 = vld [vmem:[#allocation12 + $0x68] sm:$0xff]
        %v1097 = vld [vmem:[#allocation12 + $0x70] sm:$0xff]
        %v1098 = vld [vmem:[#allocation12 + $0x78] sm:$0xff]
        %v1099 = vld [vmem:[#allocation12 + $0x80] sm:$0xff]
        %v1100 = vld [vmem:[#allocation12 + $0x88] sm:$0xff]
        %v1101 = vld [vmem:[#allocation12 + $0x90] sm:$0xff]
        %v1102 = vld [vmem:[#allocation12 + $0x98] sm:$0xff]
        %v1103 = vld [vmem:[#allocation12 + $0xa0] sm:$0xff]
        %v1104 = vld [vmem:[#allocation12 + $0xa8] sm:$0xff]
        %v1105 = vld [vmem:[#allocation12 + $0xb0] sm:$0xff]
        %v1106 = vld [vmem:[#allocation12 + $0xb8] sm:$0xff]
        %v1107 = vld [vmem:[#allocation12 + $0xc0] sm:$0xff]
        %v1108 = vld [vmem:[#allocation12 + $0xc8] sm:$0xff]
        %v1109 = vld [vmem:[#allocation12 + $0xd0] sm:$0xff]
        %v1110 = vld [vmem:[#allocation12 + $0xd8] sm:$0xff]
        %v1111 = vld [vmem:[#allocation12 + $0xe0] sm:$0xff]
        %v1112 = vld [vmem:[#allocation12 + $0xe8] sm:$0xff]
        %v1113 = vld [vmem:[#allocation12 + $0xf0] sm:$0xff]
        %v1114 = vld [vmem:[#allocation12 + $0xf8] sm:$0xff]
        %v1147 = vunpack.c.l.b16 %v1083
        %v1148 = vunpack.c.h.b16 %v1083
        %v1149 = vunpack.c.l.b16 %v1084
        %v1150 = vunpack.c.h.b16 %v1084
        %v1151 = vunpack.c.l.b16 %v1085
        %v1152 = vunpack.c.h.b16 %v1085
        %v1153 = vunpack.c.l.b16 %v1086
        %v1154 = vunpack.c.h.b16 %v1086
        %v1155 = vunpack.c.l.b16 %v1087
        %v1156 = vunpack.c.h.b16 %v1087
        %v1157 = vunpack.c.l.b16 %v1088
        %v1158 = vunpack.c.h.b16 %v1088
        %v1159 = vunpack.c.l.b16 %v1089
        %v1160 = vunpack.c.h.b16 %v1089
        %v1161 = vunpack.c.l.b16 %v1090
        %v1162 = vunpack.c.h.b16 %v1090
        %v1163 = vunpack.c.l.b16 %v1091
        %v1164 = vunpack.c.h.b16 %v1091
        %v1165 = vunpack.c.l.b16 %v1092
        %v1166 = vunpack.c.h.b16 %v1092
        %v1167 = vunpack.c.l.b16 %v1093
        %v1168 = vunpack.c.h.b16 %v1093
        %v1169 = vunpack.c.l.b16 %v1094
        %v1170 = vunpack.c.h.b16 %v1094
        %v1171 = vunpack.c.l.b16 %v1095
        %v1172 = vunpack.c.h.b16 %v1095
        %v1173 = vunpack.c.l.b16 %v1096
        %v1174 = vunpack.c.h.b16 %v1096
        %v1175 = vunpack.c.l.b16 %v1097
        %v1176 = vunpack.c.h.b16 %v1097
        %v1177 = vunpack.c.l.b16 %v1098
        %v1178 = vunpack.c.h.b16 %v1098
        %v1179 = vunpack.c.l.b16 %v1099
        %v1180 = vunpack.c.h.b16 %v1099
        %v1181 = vunpack.c.l.b16 %v1100
        %v1182 = vunpack.c.h.b16 %v1100
        %v1183 = vunpack.c.l.b16 %v1101
        %v1184 = vunpack.c.h.b16 %v1101
        %v1185 = vunpack.c.l.b16 %v1102
        %v1186 = vunpack.c.h.b16 %v1102
        %v1187 = vunpack.c.l.b16 %v1103
        %v1188 = vunpack.c.h.b16 %v1103
        %v1189 = vunpack.c.l.b16 %v1104
        %v1190 = vunpack.c.h.b16 %v1104
        %v1191 = vunpack.c.l.b16 %v1105
        %v1192 = vunpack.c.h.b16 %v1105
        %v1193 = vunpack.c.l.b16 %v1106
        %v1194 = vunpack.c.h.b16 %v1106
        %v1195 = vunpack.c.l.b16 %v1107
        %v1196 = vunpack.c.h.b16 %v1107
        %v1197 = vunpack.c.l.b16 %v1108
        %v1198 = vunpack.c.h.b16 %v1108
        %v1199 = vunpack.c.l.b16 %v1109
        %v1200 = vunpack.c.h.b16 %v1109
        %v1201 = vunpack.c.l.b16 %v1110
        %v1202 = vunpack.c.h.b16 %v1110
        %v1203 = vunpack.c.l.b16 %v1111
        %v1204 = vunpack.c.h.b16 %v1111
        %v1205 = vunpack.c.l.b16 %v1112
        %v1206 = vunpack.c.h.b16 %v1112
        %v1207 = vunpack.c.l.b16 %v1113
        %v1208 = vunpack.c.h.b16 %v1113
        %v1209 = vunpack.c.l.b16 %v1114
        %v1210 = vunpack.c.h.b16 %v1114
        %v1211 = vpack.c.b16 %v1151, %v1147
        %v1212 = vpack.c.b16 %v1152, %v1148
        %v1213 = vpack.c.b16 %v1153, %v1149
        %v1214 = vpack.c.b16 %v1154, %v1150
        %v1215 = vpack.c.b16 %v1159, %v1155
        %v1216 = vpack.c.b16 %v1160, %v1156
        %v1217 = vpack.c.b16 %v1161, %v1157
        %v1218 = vpack.c.b16 %v1162, %v1158
        %v1219 = vpack.c.b16 %v1167, %v1163
        %v1220 = vpack.c.b16 %v1168, %v1164
        %v1221 = vpack.c.b16 %v1169, %v1165
        %v1222 = vpack.c.b16 %v1170, %v1166
        %v1223 = vpack.c.b16 %v1175, %v1171
        %v1224 = vpack.c.b16 %v1176, %v1172
        %v1225 = vpack.c.b16 %v1177, %v1173
        %v1226 = vpack.c.b16 %v1178, %v1174
        %v1227 = vpack.c.b16 %v1183, %v1179
        %v1228 = vpack.c.b16 %v1184, %v1180
        %v1229 = vpack.c.b16 %v1185, %v1181
        %v1230 = vpack.c.b16 %v1186, %v1182
        %v1231 = vpack.c.b16 %v1191, %v1187
        %v1232 = vpack.c.b16 %v1192, %v1188
        %v1233 = vpack.c.b16 %v1193, %v1189
        %v1234 = vpack.c.b16 %v1194, %v1190
        %v1235 = vpack.c.b16 %v1199, %v1195
        %v1236 = vpack.c.b16 %v1200, %v1196
        %v1237 = vpack.c.b16 %v1201, %v1197
        %v1238 = vpack.c.b16 %v1202, %v1198
        %v1239 = vpack.c.b16 %v1207, %v1203
        %v1240 = vpack.c.b16 %v1208, %v1204
        %v1241 = vpack.c.b16 %v1209, %v1205
        %v1242 = vpack.c.b16 %v1210, %v1206
        %1275 = vmatprep.subr.bf16.mxu0 %v1212
        %1276 = vmatpush1.bf16.msra.mxu0 %v1211
        %1277 = vmatprep.subr.bf16.mxu0 %v1216
        %1278 = vmatpush1.bf16.msra.mxu0 %v1215
        %1279 = vmatprep.subr.bf16.mxu0 %v1220
        %1280 = vmatpush1.bf16.msra.mxu0 %v1219
        %1281 = vmatprep.subr.bf16.mxu0 %v1224
        %1282 = vmatpush1.bf16.msra.mxu0 %v1223
        %1283 = vmatprep.subr.bf16.mxu0 %v1228
        %1284 = vmatpush1.bf16.msra.mxu0 %v1227
        %1285 = vmatprep.subr.bf16.mxu0 %v1232
        %1286 = vmatpush1.bf16.msra.mxu0 %v1231
        %1287 = vmatprep.subr.bf16.mxu0 %v1236
        %1288 = vmatpush1.bf16.msra.mxu0 %v1235
        %1289 = vmatprep.subr.bf16.mxu0 %v1240
        %1290 = vmatpush1.bf16.msra.mxu0 %v1239
        %1291 = vmatprep.subr.bf16.mxu0 0
        %1292 = vmatpush1.bf16.msra.mxu0 0
        %1293 = vmatprep.subr.bf16.mxu0 0
        %1294 = vmatpush1.bf16.msra.mxu0 0
        %1295 = vmatprep.subr.bf16.mxu0 0
        %1296 = vmatpush1.bf16.msra.mxu0 0
        %1297 = vmatprep.subr.bf16.mxu0 0
        %1298 = vmatpush1.bf16.msra.mxu0 0
        %1299 = vmatprep.subr.bf16.mxu0 0
        %1300 = vmatpush1.bf16.msra.mxu0 0
        %1301 = vmatprep.subr.bf16.mxu0 0
        %1302 = vmatpush1.bf16.msra.mxu0 0
        %1303 = vmatprep.subr.bf16.mxu0 0
        %1304 = vmatpush1.bf16.msra.mxu0 0
        %1305 = vmatprep.subr.bf16.mxu0 0
        %1306 = vmatpush1.bf16.msra.mxu0 0
        %1307 = vmatprep.mubr.bf16.mxu0 0
        %1308 = vmatmul.mubr.bf16.gmra.mrb[0].mxu0 %v1082
        %v1309 = vpop.f32.mrb[0].mxu0
        %v1310 = vadd.f32 0.0, %v1309
        %v1311 = vpop.f32.mrb[0].mxu0
        %v1312 = vadd.f32 0.0, %v1311
        %v1313 = vpop.f32.mrb[0].mxu0
        %v1314 = vpop.f32.mrb[0].mxu0
        %1315 = vdwg.mxu0
        %1316 = vmatprep.subr.bf16.mxu0 %v1214
        %1317 = vmatpush1.bf16.msra.mxu0 %v1213
        %1318 = vmatprep.subr.bf16.mxu0 %v1218
        %1319 = vmatpush1.bf16.msra.mxu0 %v1217
        %1320 = vmatprep.subr.bf16.mxu0 %v1222
        %1321 = vmatpush1.bf16.msra.mxu0 %v1221
        %1322 = vmatprep.subr.bf16.mxu0 %v1226
        %1323 = vmatpush1.bf16.msra.mxu0 %v1225
        %1324 = vmatprep.subr.bf16.mxu0 %v1230
        %1325 = vmatpush1.bf16.msra.mxu0 %v1229
        %1326 = vmatprep.subr.bf16.mxu0 %v1234
        %1327 = vmatpush1.bf16.msra.mxu0 %v1233
        %1328 = vmatprep.subr.bf16.mxu0 %v1238
        %1329 = vmatpush1.bf16.msra.mxu0 %v1237
        %1330 = vmatprep.subr.bf16.mxu0 %v1242
        %1331 = vmatpush1.bf16.msra.mxu0 %v1241
        %1332 = vmatprep.subr.bf16.mxu0 0
        %1333 = vmatpush1.bf16.msra.mxu0 0
        %1334 = vmatprep.subr.bf16.mxu0 0
        %1335 = vmatpush1.bf16.msra.mxu0 0
        %1336 = vmatprep.subr.bf16.mxu0 0
        %1337 = vmatpush1.bf16.msra.mxu0 0
        %1338 = vmatprep.subr.bf16.mxu0 0
        %1339 = vmatpush1.bf16.msra.mxu0 0
        %1340 = vmatprep.subr.bf16.mxu0 0
        %1341 = vmatpush1.bf16.msra.mxu0 0
        %1342 = vmatprep.subr.bf16.mxu0 0
        %1343 = vmatpush1.bf16.msra.mxu0 0
        %1344 = vmatprep.subr.bf16.mxu0 0
        %1345 = vmatpush1.bf16.msra.mxu0 0
        %1346 = vmatprep.subr.bf16.mxu0 0
        %1347 = vmatpush1.bf16.msra.mxu0 0
        %1348 = vmatprep.mubr.bf16.mxu0 0
        %1349 = vmatmul.mubr.bf16.gmra.mrb[0].mxu0 %v1082
        %v1350 = vpop.f32.mrb[0].mxu0
        %v1351 = vadd.f32 0.0, %v1350
        %v1352 = vpop.f32.mrb[0].mxu0
        %v1353 = vadd.f32 0.0, %v1352
        %v1354 = vpop.f32.mrb[0].mxu0
        %v1355 = vpop.f32.mrb[0].mxu0
        %1356 = vdwg.mxu0
        %v1357 = vadd.f32 %v1078, %v1310
        %v1358 = vadd.f32 %v1079, %v1312
        %v1359 = vadd.f32 %v1080, %v1351
        %v1360 = vadd.f32 %v1081, %v1353
        %v1361 = vxor.u32 %v1357, 2147483648
        %v1362 = vmul.f32 %v1361, 1.442695
        %v1363 = vpow.pop %v1362
        %v1364 = vadd.f32 %v1363, 1.0
        %v1365 = vrcp.pop %v1364
        %v1366 = vmul.f32 1.0, %v1365
        %v1367 = vxor.u32 %v1358, 2147483648
        %v1368 = vmul.f32 %v1367, 1.442695
        %v1369 = vpow.pop %v1368
        %v1370 = vadd.f32 %v1369, 1.0
        %v1371 = vrcp.pop %v1370
        %v1372 = vmul.f32 1.0, %v1371
        %v1373 = vtanh.pop %v1359
        %v1374 = vxor.u32 %v1360, 2147483648
        %v1375 = vmul.f32 %v1374, 1.442695
        %v1376 = vpow.pop %v1375
        %v1377 = vadd.f32 %v1376, 1.0
        %v1378 = vrcp.pop %v1377
        %v1379 = vmul.f32 1.0, %v1378
        %v1380 = vmul.f32 %v1372, %v797
        %v1381 = vmul.f32 %v1366, %v1373
        %v1382 = vadd.f32 %v1380, %v1381
        %v1383 = vtanh.pop %v1382
        %v1384 = vmul.f32 %v1379, %v1383
        %v1385 = vpack.c.bf16 %v1384, %v1384
        %v1386 = vld [vmem:[#allocation13] sm:$0xff]
        %v1387 = vld [vmem:[#allocation13 + $0x8] sm:$0xff]
        %v1388 = vld [vmem:[#allocation13 + $0x10] sm:$0xff]
        %v1389 = vld [vmem:[#allocation13 + $0x18] sm:$0xff]
        %v1390 = vld [vmem:[#allocation13 + $0x20] sm:$0xff]
        %v1391 = vld [vmem:[#allocation13 + $0x28] sm:$0xff]
        %v1392 = vld [vmem:[#allocation13 + $0x30] sm:$0xff]
        %v1393 = vld [vmem:[#allocation13 + $0x38] sm:$0xff]
        %v1394 = vld [vmem:[#allocation13 + $0x40] sm:$0xff]
        %v1395 = vld [vmem:[#allocation13 + $0x48] sm:$0xff]
        %v1396 = vld [vmem:[#allocation13 + $0x50] sm:$0xff]
        %v1397 = vld [vmem:[#allocation13 + $0x58] sm:$0xff]
        %v1398 = vld [vmem:[#allocation13 + $0x60] sm:$0xff]
        %v1399 = vld [vmem:[#allocation13 + $0x68] sm:$0xff]
        %v1400 = vld [vmem:[#allocation13 + $0x70] sm:$0xff]
        %v1401 = vld [vmem:[#allocation13 + $0x78] sm:$0xff]
        %v1402 = vld [vmem:[#allocation13 + $0x80] sm:$0xff]
        %v1403 = vld [vmem:[#allocation13 + $0x88] sm:$0xff]
        %v1404 = vld [vmem:[#allocation13 + $0x90] sm:$0xff]
        %v1405 = vld [vmem:[#allocation13 + $0x98] sm:$0xff]
        %v1406 = vld [vmem:[#allocation13 + $0xa0] sm:$0xff]
        %v1407 = vld [vmem:[#allocation13 + $0xa8] sm:$0xff]
        %v1408 = vld [vmem:[#allocation13 + $0xb0] sm:$0xff]
        %v1409 = vld [vmem:[#allocation13 + $0xb8] sm:$0xff]
        %v1410 = vld [vmem:[#allocation13 + $0xc0] sm:$0xff]
        %v1411 = vld [vmem:[#allocation13 + $0xc8] sm:$0xff]
        %v1412 = vld [vmem:[#allocation13 + $0xd0] sm:$0xff]
        %v1413 = vld [vmem:[#allocation13 + $0xd8] sm:$0xff]
        %v1414 = vld [vmem:[#allocation13 + $0xe0] sm:$0xff]
        %v1415 = vld [vmem:[#allocation13 + $0xe8] sm:$0xff]
        %v1416 = vld [vmem:[#allocation13 + $0xf0] sm:$0xff]
        %v1417 = vld [vmem:[#allocation13 + $0xf8] sm:$0xff]
        %v1450 = vunpack.c.l.b16 %v1386
        %v1451 = vunpack.c.h.b16 %v1386
        %v1452 = vunpack.c.l.b16 %v1387
        %v1453 = vunpack.c.h.b16 %v1387
        %v1454 = vunpack.c.l.b16 %v1388
        %v1455 = vunpack.c.h.b16 %v1388
        %v1456 = vunpack.c.l.b16 %v1389
        %v1457 = vunpack.c.h.b16 %v1389
        %v1458 = vunpack.c.l.b16 %v1390
        %v1459 = vunpack.c.h.b16 %v1390
        %v1460 = vunpack.c.l.b16 %v1391
        %v1461 = vunpack.c.h.b16 %v1391
        %v1462 = vunpack.c.l.b16 %v1392
        %v1463 = vunpack.c.h.b16 %v1392
        %v1464 = vunpack.c.l.b16 %v1393
        %v1465 = vunpack.c.h.b16 %v1393
        %v1466 = vunpack.c.l.b16 %v1394
        %v1467 = vunpack.c.h.b16 %v1394
        %v1468 = vunpack.c.l.b16 %v1395
        %v1469 = vunpack.c.h.b16 %v1395
        %v1470 = vunpack.c.l.b16 %v1396
        %v1471 = vunpack.c.h.b16 %v1396
        %v1472 = vunpack.c.l.b16 %v1397
        %v1473 = vunpack.c.h.b16 %v1397
        %v1474 = vunpack.c.l.b16 %v1398
        %v1475 = vunpack.c.h.b16 %v1398
        %v1476 = vunpack.c.l.b16 %v1399
        %v1477 = vunpack.c.h.b16 %v1399
        %v1478 = vunpack.c.l.b16 %v1400
        %v1479 = vunpack.c.h.b16 %v1400
        %v1480 = vunpack.c.l.b16 %v1401
        %v1481 = vunpack.c.h.b16 %v1401
        %v1482 = vunpack.c.l.b16 %v1402
        %v1483 = vunpack.c.h.b16 %v1402
        %v1484 = vunpack.c.l.b16 %v1403
        %v1485 = vunpack.c.h.b16 %v1403
        %v1486 = vunpack.c.l.b16 %v1404
        %v1487 = vunpack.c.h.b16 %v1404
        %v1488 = vunpack.c.l.b16 %v1405
        %v1489 = vunpack.c.h.b16 %v1405
        %v1490 = vunpack.c.l.b16 %v1406
        %v1491 = vunpack.c.h.b16 %v1406
        %v1492 = vunpack.c.l.b16 %v1407
        %v1493 = vunpack.c.h.b16 %v1407
        %v1494 = vunpack.c.l.b16 %v1408
        %v1495 = vunpack.c.h.b16 %v1408
        %v1496 = vunpack.c.l.b16 %v1409
        %v1497 = vunpack.c.h.b16 %v1409
        %v1498 = vunpack.c.l.b16 %v1410
        %v1499 = vunpack.c.h.b16 %v1410
        %v1500 = vunpack.c.l.b16 %v1411
        %v1501 = vunpack.c.h.b16 %v1411
        %v1502 = vunpack.c.l.b16 %v1412
        %v1503 = vunpack.c.h.b16 %v1412
        %v1504 = vunpack.c.l.b16 %v1413
        %v1505 = vunpack.c.h.b16 %v1413
        %v1506 = vunpack.c.l.b16 %v1414
        %v1507 = vunpack.c.h.b16 %v1414
        %v1508 = vunpack.c.l.b16 %v1415
        %v1509 = vunpack.c.h.b16 %v1415
        %v1510 = vunpack.c.l.b16 %v1416
        %v1511 = vunpack.c.h.b16 %v1416
        %v1512 = vunpack.c.l.b16 %v1417
        %v1513 = vunpack.c.h.b16 %v1417
        %v1514 = vpack.c.b16 %v1454, %v1450
        %v1515 = vpack.c.b16 %v1455, %v1451
        %v1516 = vpack.c.b16 %v1456, %v1452
        %v1517 = vpack.c.b16 %v1457, %v1453
        %v1518 = vpack.c.b16 %v1462, %v1458
        %v1519 = vpack.c.b16 %v1463, %v1459
        %v1520 = vpack.c.b16 %v1464, %v1460
        %v1521 = vpack.c.b16 %v1465, %v1461
        %v1522 = vpack.c.b16 %v1470, %v1466
        %v1523 = vpack.c.b16 %v1471, %v1467
        %v1524 = vpack.c.b16 %v1472, %v1468
        %v1525 = vpack.c.b16 %v1473, %v1469
        %v1526 = vpack.c.b16 %v1478, %v1474
        %v1527 = vpack.c.b16 %v1479, %v1475
        %v1528 = vpack.c.b16 %v1480, %v1476
        %v1529 = vpack.c.b16 %v1481, %v1477
        %v1530 = vpack.c.b16 %v1486, %v1482
        %v1531 = vpack.c.b16 %v1487, %v1483
        %v1532 = vpack.c.b16 %v1488, %v1484
        %v1533 = vpack.c.b16 %v1489, %v1485
        %v1534 = vpack.c.b16 %v1494, %v1490
        %v1535 = vpack.c.b16 %v1495, %v1491
        %v1536 = vpack.c.b16 %v1496, %v1492
        %v1537 = vpack.c.b16 %v1497, %v1493
        %v1538 = vpack.c.b16 %v1502, %v1498
        %v1539 = vpack.c.b16 %v1503, %v1499
        %v1540 = vpack.c.b16 %v1504, %v1500
        %v1541 = vpack.c.b16 %v1505, %v1501
        %v1542 = vpack.c.b16 %v1510, %v1506
        %v1543 = vpack.c.b16 %v1511, %v1507
        %v1544 = vpack.c.b16 %v1512, %v1508
        %v1545 = vpack.c.b16 %v1513, %v1509
        %1578 = vmatprep.subr.bf16.mxu0 %v1515
        %1579 = vmatpush1.bf16.msra.mxu0 %v1514
        %1580 = vmatprep.subr.bf16.mxu0 %v1519
        %1581 = vmatpush1.bf16.msra.mxu0 %v1518
        %1582 = vmatprep.subr.bf16.mxu0 %v1523
        %1583 = vmatpush1.bf16.msra.mxu0 %v1522
        %1584 = vmatprep.subr.bf16.mxu0 %v1527
        %1585 = vmatpush1.bf16.msra.mxu0 %v1526
        %1586 = vmatprep.subr.bf16.mxu0 %v1531
        %1587 = vmatpush1.bf16.msra.mxu0 %v1530
        %1588 = vmatprep.subr.bf16.mxu0 %v1535
        %1589 = vmatpush1.bf16.msra.mxu0 %v1534
        %1590 = vmatprep.subr.bf16.mxu0 %v1539
        %1591 = vmatpush1.bf16.msra.mxu0 %v1538
        %1592 = vmatprep.subr.bf16.mxu0 %v1543
        %1593 = vmatpush1.bf16.msra.mxu0 %v1542
        %1594 = vmatprep.subr.bf16.mxu0 0
        %1595 = vmatpush1.bf16.msra.mxu0 0
        %1596 = vmatprep.subr.bf16.mxu0 0
        %1597 = vmatpush1.bf16.msra.mxu0 0
        %1598 = vmatprep.subr.bf16.mxu0 0
        %1599 = vmatpush1.bf16.msra.mxu0 0
        %1600 = vmatprep.subr.bf16.mxu0 0
        %1601 = vmatpush1.bf16.msra.mxu0 0
        %1602 = vmatprep.subr.bf16.mxu0 0
        %1603 = vmatpush1.bf16.msra.mxu0 0
        %1604 = vmatprep.subr.bf16.mxu0 0
        %1605 = vmatpush1.bf16.msra.mxu0 0
        %1606 = vmatprep.subr.bf16.mxu0 0
        %1607 = vmatpush1.bf16.msra.mxu0 0
        %1608 = vmatprep.subr.bf16.mxu0 0
        %1609 = vmatpush1.bf16.msra.mxu0 0
        %1610 = vmatprep.mubr.bf16.mxu0 0
        %1611 = vmatmul.mubr.bf16.gmra.mrb[0].mxu0 %v1385
        %v1612 = vpop.f32.mrb[0].mxu0
        %v1613 = vadd.f32 0.0, %v1612
        %v1614 = vpop.f32.mrb[0].mxu0
        %v1615 = vadd.f32 0.0, %v1614
        %v1616 = vpop.f32.mrb[0].mxu0
        %v1617 = vpop.f32.mrb[0].mxu0
        %1618 = vdwg.mxu0
        %1619 = vmatprep.subr.bf16.mxu0 %v1517
        %1620 = vmatpush1.bf16.msra.mxu0 %v1516
        %1621 = vmatprep.subr.bf16.mxu0 %v1521
        %1622 = vmatpush1.bf16.msra.mxu0 %v1520
        %1623 = vmatprep.subr.bf16.mxu0 %v1525
        %1624 = vmatpush1.bf16.msra.mxu0 %v1524
        %1625 = vmatprep.subr.bf16.mxu0 %v1529
        %1626 = vmatpush1.bf16.msra.mxu0 %v1528
        %1627 = vmatprep.subr.bf16.mxu0 %v1533
        %1628 = vmatpush1.bf16.msra.mxu0 %v1532
        %1629 = vmatprep.subr.bf16.mxu0 %v1537
        %1630 = vmatpush1.bf16.msra.mxu0 %v1536
        %1631 = vmatprep.subr.bf16.mxu0 %v1541
        %1632 = vmatpush1.bf16.msra.mxu0 %v1540
        %1633 = vmatprep.subr.bf16.mxu0 %v1545
        %1634 = vmatpush1.bf16.msra.mxu0 %v1544
        %1635 = vmatprep.subr.bf16.mxu0 0
        %1636 = vmatpush1.bf16.msra.mxu0 0
        %1637 = vmatprep.subr.bf16.mxu0 0
        %1638 = vmatpush1.bf16.msra.mxu0 0
        %1639 = vmatprep.subr.bf16.mxu0 0
        %1640 = vmatpush1.bf16.msra.mxu0 0
        %1641 = vmatprep.subr.bf16.mxu0 0
        %1642 = vmatpush1.bf16.msra.mxu0 0
        %1643 = vmatprep.subr.bf16.mxu0 0
        %1644 = vmatpush1.bf16.msra.mxu0 0
        %1645 = vmatprep.subr.bf16.mxu0 0
        %1646 = vmatpush1.bf16.msra.mxu0 0
        %1647 = vmatprep.subr.bf16.mxu0 0
        %1648 = vmatpush1.bf16.msra.mxu0 0
        %1649 = vmatprep.subr.bf16.mxu0 0
        %1650 = vmatpush1.bf16.msra.mxu0 0
        %1651 = vmatprep.mubr.bf16.mxu0 0
        %1652 = vmatmul.mubr.bf16.gmra.mrb[0].mxu0 %v1385
        %v1653 = vpop.f32.mrb[0].mxu0
        %v1654 = vadd.f32 0.0, %v1653
        %v1655 = vpop.f32.mrb[0].mxu0
        %v1656 = vadd.f32 0.0, %v1655
        %v1657 = vpop.f32.mrb[0].mxu0
        %v1658 = vpop.f32.mrb[0].mxu0
        %1659 = vdwg.mxu0
        %v1660 = vadd.f32 %v1028, %v1613
        %v1661 = vadd.f32 %v1030, %v1615
        %v1662 = vadd.f32 %v1069, %v1654
        %v1663 = vadd.f32 %v1071, %v1656
        %v1664 = vxor.u32 %v1660, 2147483648
        %v1665 = vmul.f32 %v1664, 1.442695
        %v1666 = vpow.pop %v1665
        %v1667 = vadd.f32 %v1666, 1.0
        %v1668 = vrcp.pop %v1667
        %v1669 = vmul.f32 1.0, %v1668
        %v1670 = vxor.u32 %v1661, 2147483648
        %v1671 = vmul.f32 %v1670, 1.442695
        %v1672 = vpow.pop %v1671
        %v1673 = vadd.f32 %v1672, 1.0
        %v1674 = vrcp.pop %v1673
        %v1675 = vmul.f32 1.0, %v1674
        %v1676 = vtanh.pop %v1662
        %v1677 = vxor.u32 %v1663, 2147483648
        %v1678 = vmul.f32 %v1677, 1.442695
        %v1679 = vpow.pop %v1678
        %v1680 = vadd.f32 %v1679, 1.0
        %v1681 = vrcp.pop %v1680
        %v1682 = vmul.f32 1.0, %v1681
        %v1683 = vmul.f32 %v1675, %v799
        %v1684 = vmul.f32 %v1669, %v1676
        %v1685 = vadd.f32 %v1683, %v1684
        %v1686 = vtanh.pop %v1685
        %v1687 = vmul.f32 %v1682, %v1686
        %v1688 = vpack.c.bf16 %v1687, %v1687
        %1689 = vmatprep.subr.bf16.mxu0 %v930
        %1690 = vmatpush1.bf16.msra.mxu0 %v929
        %1691 = vmatprep.subr.bf16.mxu0 %v934
        %1692 = vmatpush1.bf16.msra.mxu0 %v933
        %1693 = vmatprep.subr.bf16.mxu0 %v938
        %1694 = vmatpush1.bf16.msra.mxu0 %v937
        %1695 = vmatprep.subr.bf16.mxu0 %v942
        %1696 = vmatpush1.bf16.msra.mxu0 %v941
        %1697 = vmatprep.subr.bf16.mxu0 %v946
        %1698 = vmatpush1.bf16.msra.mxu0 %v945
        %1699 = vmatprep.subr.bf16.mxu0 %v950
        %1700 = vmatpush1.bf16.msra.mxu0 %v949
        %1701 = vmatprep.subr.bf16.mxu0 %v954
        %1702 = vmatpush1.bf16.msra.mxu0 %v953
        %1703 = vmatprep.subr.bf16.mxu0 %v958
        %1704 = vmatpush1.bf16.msra.mxu0 %v957
        %1705 = vmatprep.subr.bf16.mxu0 0
        %1706 = vmatpush1.bf16.msra.mxu0 0
        %1707 = vmatprep.subr.bf16.mxu0 0
        %1708 = vmatpush1.bf16.msra.mxu0 0
        %1709 = vmatprep.subr.bf16.mxu0 0
        %1710 = vmatpush1.bf16.msra.mxu0 0
        %1711 = vmatprep.subr.bf16.mxu0 0
        %1712 = vmatpush1.bf16.msra.mxu0 0
        %1713 = vmatprep.subr.bf16.mxu0 0
        %1714 = vmatpush1.bf16.msra.mxu0 0
        %1715 = vmatprep.subr.bf16.mxu0 0
        %1716 = vmatpush1.bf16.msra.mxu0 0
        %1717 = vmatprep.subr.bf16.mxu0 0
        %1718 = vmatpush1.bf16.msra.mxu0 0
        %1719 = vmatprep.subr.bf16.mxu0 0
        %1720 = vmatpush1.bf16.msra.mxu0 0
        %1721 = vmatprep.mubr.bf16.mxu0 0
        %1722 = vmatmul.mubr.bf16.gmra.mrb[0].mxu0 %v1688
        %v1723 = vpop.f32.mrb[0].mxu0
        %v1724 = vadd.f32 %v779, %v1723
        %v1725 = vpop.f32.mrb[0].mxu0
        %v1726 = vadd.f32 %v783, %v1725
        %v1727 = vpop.f32.mrb[0].mxu0
        %v1728 = vpop.f32.mrb[0].mxu0
        %1729 = vdwg.mxu0
        %1730 = vmatprep.subr.bf16.mxu0 %v932
        %1731 = vmatpush1.bf16.msra.mxu0 %v931
        %1732 = vmatprep.subr.bf16.mxu0 %v936
        %1733 = vmatpush1.bf16.msra.mxu0 %v935
        %1734 = vmatprep.subr.bf16.mxu0 %v940
        %1735 = vmatpush1.bf16.msra.mxu0 %v939
        %1736 = vmatprep.subr.bf16.mxu0 %v944
        %1737 = vmatpush1.bf16.msra.mxu0 %v943
        %1738 = vmatprep.subr.bf16.mxu0 %v948
        %1739 = vmatpush1.bf16.msra.mxu0 %v947
        %1740 = vmatprep.subr.bf16.mxu0 %v952
        %1741 = vmatpush1.bf16.msra.mxu0 %v951
        %1742 = vmatprep.subr.bf16.mxu0 %v956
        %1743 = vmatpush1.bf16.msra.mxu0 %v955
        %1744 = vmatprep.subr.bf16.mxu0 %v960
        %1745 = vmatpush1.bf16.msra.mxu0 %v959
        %1746 = vmatprep.subr.bf16.mxu0 0
        %1747 = vmatpush1.bf16.msra.mxu0 0
        %1748 = vmatprep.subr.bf16.mxu0 0
        %1749 = vmatpush1.bf16.msra.mxu0 0
        %1750 = vmatprep.subr.bf16.mxu0 0
        %1751 = vmatpush1.bf16.msra.mxu0 0
        %1752 = vmatprep.subr.bf16.mxu0 0
        %1753 = vmatpush1.bf16.msra.mxu0 0
        %1754 = vmatprep.subr.bf16.mxu0 0
        %1755 = vmatpush1.bf16.msra.mxu0 0
        %1756 = vmatprep.subr.bf16.mxu0 0
        %1757 = vmatpush1.bf16.msra.mxu0 0
        %1758 = vmatprep.subr.bf16.mxu0 0
        %1759 = vmatpush1.bf16.msra.mxu0 0
        %1760 = vmatprep.subr.bf16.mxu0 0
        %1761 = vmatpush1.bf16.msra.mxu0 0
        %1762 = vmatprep.mubr.bf16.mxu0 0
        %1763 = vmatmul.mubr.bf16.gmra.mrb[0].mxu0 %v1688
        %v1764 = vpop.f32.mrb[0].mxu0
        %v1765 = vadd.f32 %v787, %v1764
        %v1766 = vpop.f32.mrb[0].mxu0
        %v1767 = vadd.f32 %v791, %v1766
        %v1768 = vpop.f32.mrb[0].mxu0
        %v1769 = vpop.f32.mrb[0].mxu0
        %1770 = vdwg.mxu0
        %s1771 = smul.u32 1, 4
        %s1772 = smul.addr %s1771, 8
        %s1773 = scalar_lea.vmem [#allocation2], %s1772
        %v1774 = vld [vmem:[%s1773] sm:$0xff]
        %v1775 = vld [vmem:[%s1773 + $0x8] sm:$0xff]
        %v1776 = vld [vmem:[%s1773 + $0x10] sm:$0xff]
        %v1777 = vld [vmem:[%s1773 + $0x18] sm:$0xff]
        %1778 = vmatprep.subr.bf16.mxu0 %v1212
        %1779 = vmatpush1.bf16.msra.mxu0 %v1211
        %1780 = vmatprep.subr.bf16.mxu0 %v1216
        %1781 = vmatpush1.bf16.msra.mxu0 %v1215
        %1782 = vmatprep.subr.bf16.mxu0 %v1220
        %1783 = vmatpush1.bf16.msra.mxu0 %v1219
        %1784 = vmatprep.subr.bf16.mxu0 %v1224
        %1785 = vmatpush1.bf16.msra.mxu0 %v1223
        %1786 = vmatprep.subr.bf16.mxu0 %v1228
        %1787 = vmatpush1.bf16.msra.mxu0 %v1227
        %1788 = vmatprep.subr.bf16.mxu0 %v1232
        %1789 = vmatpush1.bf16.msra.mxu0 %v1231
        %1790 = vmatprep.subr.bf16.mxu0 %v1236
        %1791 = vmatpush1.bf16.msra.mxu0 %v1235
        %1792 = vmatprep.subr.bf16.mxu0 %v1240
        %1793 = vmatpush1.bf16.msra.mxu0 %v1239
        %1794 = vmatprep.subr.bf16.mxu0 0
        %1795 = vmatpush1.bf16.msra.mxu0 0
        %1796 = vmatprep.subr.bf16.mxu0 0
        %1797 = vmatpush1.bf16.msra.mxu0 0
        %1798 = vmatprep.subr.bf16.mxu0 0
        %1799 = vmatpush1.bf16.msra.mxu0 0
        %1800 = vmatprep.subr.bf16.mxu0 0
        %1801 = vmatpush1.bf16.msra.mxu0 0
        %1802 = vmatprep.subr.bf16.mxu0 0
        %1803 = vmatpush1.bf16.msra.mxu0 0
        %1804 = vmatprep.subr.bf16.mxu0 0
        %1805 = vmatpush1.bf16.msra.mxu0 0
        %1806 = vmatprep.subr.bf16.mxu0 0
        %1807 = vmatpush1.bf16.msra.mxu0 0
        %1808 = vmatprep.subr.bf16.mxu0 0
        %1809 = vmatpush1.bf16.msra.mxu0 0
        %1810 = vmatprep.mubr.bf16.mxu0 0
        %1811 = vmatmul.mubr.bf16.gmra.mrb[0].mxu0 %v1385
        %v1812 = vpop.f32.mrb[0].mxu0
        %v1813 = vadd.f32 0.0, %v1812
        %v1814 = vpop.f32.mrb[0].mxu0
        %v1815 = vadd.f32 0.0, %v1814
        %v1816 = vpop.f32.mrb[0].mxu0
        %v1817 = vpop.f32.mrb[0].mxu0
        %1818 = vdwg.mxu0
        %1819 = vmatprep.subr.bf16.mxu0 %v1214
        %1820 = vmatpush1.bf16.msra.mxu0 %v1213
        %1821 = vmatprep.subr.bf16.mxu0 %v1218
        %1822 = vmatpush1.bf16.msra.mxu0 %v1217
        %1823 = vmatprep.subr.bf16.mxu0 %v1222
        %1824 = vmatpush1.bf16.msra.mxu0 %v1221
        %1825 = vmatprep.subr.bf16.mxu0 %v1226
        %1826 = vmatpush1.bf16.msra.mxu0 %v1225
        %1827 = vmatprep.subr.bf16.mxu0 %v1230
        %1828 = vmatpush1.bf16.msra.mxu0 %v1229
        %1829 = vmatprep.subr.bf16.mxu0 %v1234
        %1830 = vmatpush1.bf16.msra.mxu0 %v1233
        %1831 = vmatprep.subr.bf16.mxu0 %v1238
        %1832 = vmatpush1.bf16.msra.mxu0 %v1237
        %1833 = vmatprep.subr.bf16.mxu0 %v1242
        %1834 = vmatpush1.bf16.msra.mxu0 %v1241
        %1835 = vmatprep.subr.bf16.mxu0 0
        %1836 = vmatpush1.bf16.msra.mxu0 0
        %1837 = vmatprep.subr.bf16.mxu0 0
        %1838 = vmatpush1.bf16.msra.mxu0 0
        %1839 = vmatprep.subr.bf16.mxu0 0
        %1840 = vmatpush1.bf16.msra.mxu0 0
        %1841 = vmatprep.subr.bf16.mxu0 0
        %1842 = vmatpush1.bf16.msra.mxu0 0
        %1843 = vmatprep.subr.bf16.mxu0 0
        %1844 = vmatpush1.bf16.msra.mxu0 0
        %1845 = vmatprep.subr.bf16.mxu0 0
        %1846 = vmatpush1.bf16.msra.mxu0 0
        %1847 = vmatprep.subr.bf16.mxu0 0
        %1848 = vmatpush1.bf16.msra.mxu0 0
        %1849 = vmatprep.subr.bf16.mxu0 0
        %1850 = vmatpush1.bf16.msra.mxu0 0
        %1851 = vmatprep.mubr.bf16.mxu0 0
        %1852 = vmatmul.mubr.bf16.gmra.mrb[0].mxu0 %v1385
        %v1853 = vpop.f32.mrb[0].mxu0
        %v1854 = vadd.f32 0.0, %v1853
        %v1855 = vpop.f32.mrb[0].mxu0
        %v1856 = vadd.f32 0.0, %v1855
        %v1857 = vpop.f32.mrb[0].mxu0
        %v1858 = vpop.f32.mrb[0].mxu0
        %1859 = vdwg.mxu0
        %v1860 = vadd.f32 %v1774, %v1813
        %v1861 = vadd.f32 %v1775, %v1815
        %v1862 = vadd.f32 %v1776, %v1854
        %v1863 = vadd.f32 %v1777, %v1856
        %v1864 = vxor.u32 %v1860, 2147483648
        %v1865 = vmul.f32 %v1864, 1.442695
        %v1866 = vpow.pop %v1865
        %v1867 = vadd.f32 %v1866, 1.0
        %v1868 = vrcp.pop %v1867
        %v1869 = vmul.f32 1.0, %v1868
        %v1870 = vxor.u32 %v1861, 2147483648
        %v1871 = vmul.f32 %v1870, 1.442695
        %v1872 = vpow.pop %v1871
        %v1873 = vadd.f32 %v1872, 1.0
        %v1874 = vrcp.pop %v1873
        %v1875 = vmul.f32 1.0, %v1874
        %v1876 = vtanh.pop %v1862
        %v1877 = vxor.u32 %v1863, 2147483648
        %v1878 = vmul.f32 %v1877, 1.442695
        %v1879 = vpow.pop %v1878
        %v1880 = vadd.f32 %v1879, 1.0
        %v1881 = vrcp.pop %v1880
        %v1882 = vmul.f32 1.0, %v1881
        %v1883 = vmul.f32 %v1875, %v1382
        %v1884 = vmul.f32 %v1869, %v1876
        %v1885 = vadd.f32 %v1883, %v1884
        %v1886 = vtanh.pop %v1885
        %v1887 = vmul.f32 %v1882, %v1886
        %v1888 = vpack.c.bf16 %v1887, %v1887
        %1889 = vmatprep.subr.bf16.mxu0 %v1515
        %1890 = vmatpush1.bf16.msra.mxu0 %v1514
        %1891 = vmatprep.subr.bf16.mxu0 %v1519
        %1892 = vmatpush1.bf16.msra.mxu0 %v1518
        %1893 = vmatprep.subr.bf16.mxu0 %v1523
        %1894 = vmatpush1.bf16.msra.mxu0 %v1522
        %1895 = vmatprep.subr.bf16.mxu0 %v1527
        %1896 = vmatpush1.bf16.msra.mxu0 %v1526
        %1897 = vmatprep.subr.bf16.mxu0 %v1531
        %1898 = vmatpush1.bf16.msra.mxu0 %v1530
        %1899 = vmatprep.subr.bf16.mxu0 %v1535
        %1900 = vmatpush1.bf16.msra.mxu0 %v1534
        %1901 = vmatprep.subr.bf16.mxu0 %v1539
        %1902 = vmatpush1.bf16.msra.mxu0 %v1538
        %1903 = vmatprep.subr.bf16.mxu0 %v1543
        %1904 = vmatpush1.bf16.msra.mxu0 %v1542
        %1905 = vmatprep.subr.bf16.mxu0 0
        %1906 = vmatpush1.bf16.msra.mxu0 0
        %1907 = vmatprep.subr.bf16.mxu0 0
        %1908 = vmatpush1.bf16.msra.mxu0 0
        %1909 = vmatprep.subr.bf16.mxu0 0
        %1910 = vmatpush1.bf16.msra.mxu0 0
        %1911 = vmatprep.subr.bf16.mxu0 0
        %1912 = vmatpush1.bf16.msra.mxu0 0
        %1913 = vmatprep.subr.bf16.mxu0 0
        %1914 = vmatpush1.bf16.msra.mxu0 0
        %1915 = vmatprep.subr.bf16.mxu0 0
        %1916 = vmatpush1.bf16.msra.mxu0 0
        %1917 = vmatprep.subr.bf16.mxu0 0
        %1918 = vmatpush1.bf16.msra.mxu0 0
        %1919 = vmatprep.subr.bf16.mxu0 0
        %1920 = vmatpush1.bf16.msra.mxu0 0
        %1921 = vmatprep.mubr.bf16.mxu0 0
        %1922 = vmatmul.mubr.bf16.gmra.mrb[0].mxu0 %v1888
        %v1923 = vpop.f32.mrb[0].mxu0
        %v1924 = vadd.f32 0.0, %v1923
        %v1925 = vpop.f32.mrb[0].mxu0
        %v1926 = vadd.f32 0.0, %v1925
        %v1927 = vpop.f32.mrb[0].mxu0
        %v1928 = vpop.f32.mrb[0].mxu0
        %1929 = vdwg.mxu0
        %1930 = vmatprep.subr.bf16.mxu0 %v1517
        %1931 = vmatpush1.bf16.msra.mxu0 %v1516
        %1932 = vmatprep.subr.bf16.mxu0 %v1521
        %1933 = vmatpush1.bf16.msra.mxu0 %v1520
        %1934 = vmatprep.subr.bf16.mxu0 %v1525
        %1935 = vmatpush1.bf16.msra.mxu0 %v1524
        %1936 = vmatprep.subr.bf16.mxu0 %v1529
        %1937 = vmatpush1.bf16.msra.mxu0 %v1528
        %1938 = vmatprep.subr.bf16.mxu0 %v1533
        %1939 = vmatpush1.bf16.msra.mxu0 %v1532
        %1940 = vmatprep.subr.bf16.mxu0 %v1537
        %1941 = vmatpush1.bf16.msra.mxu0 %v1536
        %1942 = vmatprep.subr.bf16.mxu0 %v1541
        %1943 = vmatpush1.bf16.msra.mxu0 %v1540
        %1944 = vmatprep.subr.bf16.mxu0 %v1545
        %1945 = vmatpush1.bf16.msra.mxu0 %v1544
        %1946 = vmatprep.subr.bf16.mxu0 0
        %1947 = vmatpush1.bf16.msra.mxu0 0
        %1948 = vmatprep.subr.bf16.mxu0 0
        %1949 = vmatpush1.bf16.msra.mxu0 0
        %1950 = vmatprep.subr.bf16.mxu0 0
        %1951 = vmatpush1.bf16.msra.mxu0 0
        %1952 = vmatprep.subr.bf16.mxu0 0
        %1953 = vmatpush1.bf16.msra.mxu0 0
        %1954 = vmatprep.subr.bf16.mxu0 0
        %1955 = vmatpush1.bf16.msra.mxu0 0
        %1956 = vmatprep.subr.bf16.mxu0 0
        %1957 = vmatpush1.bf16.msra.mxu0 0
        %1958 = vmatprep.subr.bf16.mxu0 0
        %1959 = vmatpush1.bf16.msra.mxu0 0
        %1960 = vmatprep.subr.bf16.mxu0 0
        %1961 = vmatpush1.bf16.msra.mxu0 0
        %1962 = vmatprep.mubr.bf16.mxu0 0
        %1963 = vmatmul.mubr.bf16.gmra.mrb[0].mxu0 %v1888
        %v1964 = vpop.f32.mrb[0].mxu0
        %v1965 = vadd.f32 0.0, %v1964
        %v1966 = vpop.f32.mrb[0].mxu0
        %v1967 = vadd.f32 0.0, %v1966
        %v1968 = vpop.f32.mrb[0].mxu0
        %v1969 = vpop.f32.mrb[0].mxu0
        %1970 = vdwg.mxu0
        %v1971 = vadd.f32 %v1724, %v1924
        %v1972 = vadd.f32 %v1726, %v1926
        %v1973 = vadd.f32 %v1765, %v1965
        %v1974 = vadd.f32 %v1767, %v1967
        %v1975 = vxor.u32 %v1971, 2147483648
        %v1976 = vmul.f32 %v1975, 1.442695
        %v1977 = vpow.pop %v1976
        %v1978 = vadd.f32 %v1977, 1.0
        %v1979 = vrcp.pop %v1978
        %v1980 = vmul.f32 1.0, %v1979
        %v1981 = vxor.u32 %v1972, 2147483648
        %v1982 = vmul.f32 %v1981, 1.442695
        %v1983 = vpow.pop %v1982
        %v1984 = vadd.f32 %v1983, 1.0
        %v1985 = vrcp.pop %v1984
        %v1986 = vmul.f32 1.0, %v1985
        %v1987 = vtanh.pop %v1973
        %v1988 = vxor.u32 %v1974, 2147483648
        %v1989 = vmul.f32 %v1988, 1.442695
        %v1990 = vpow.pop %v1989
        %v1991 = vadd.f32 %v1990, 1.0
        %v1992 = vrcp.pop %v1991
        %v1993 = vmul.f32 1.0, %v1992
        %v1994 = vmul.f32 %v1986, %v1685
        %v1995 = vmul.f32 %v1980, %v1987
        %v1996 = vadd.f32 %v1994, %v1995
        %v1997 = vtanh.pop %v1996
        %v1998 = vmul.f32 %v1993, %v1997
        %v1999 = vpack.c.bf16 %v1998, %v1998
        %2000 = vmatprep.subr.bf16.mxu0 %v930
        %2001 = vmatpush1.bf16.msra.mxu0 %v929
        %2002 = vmatprep.subr.bf16.mxu0 %v934
        %2003 = vmatpush1.bf16.msra.mxu0 %v933
        %2004 = vmatprep.subr.bf16.mxu0 %v938
        %2005 = vmatpush1.bf16.msra.mxu0 %v937
        %2006 = vmatprep.subr.bf16.mxu0 %v942
        %2007 = vmatpush1.bf16.msra.mxu0 %v941
        %2008 = vmatprep.subr.bf16.mxu0 %v946
        %2009 = vmatpush1.bf16.msra.mxu0 %v945
        %2010 = vmatprep.subr.bf16.mxu0 %v950
        %2011 = vmatpush1.bf16.msra.mxu0 %v949
        %2012 = vmatprep.subr.bf16.mxu0 %v954
        %2013 = vmatpush1.bf16.msra.mxu0 %v953
        %2014 = vmatprep.subr.bf16.mxu0 %v958
        %2015 = vmatpush1.bf16.msra.mxu0 %v957
        %2016 = vmatprep.subr.bf16.mxu0 0
        %2017 = vmatpush1.bf16.msra.mxu0 0
        %2018 = vmatprep.subr.bf16.mxu0 0
        %2019 = vmatpush1.bf16.msra.mxu0 0
        %2020 = vmatprep.subr.bf16.mxu0 0
        %2021 = vmatpush1.bf16.msra.mxu0 0
        %2022 = vmatprep.subr.bf16.mxu0 0
        %2023 = vmatpush1.bf16.msra.mxu0 0
        %2024 = vmatprep.subr.bf16.mxu0 0
        %2025 = vmatpush1.bf16.msra.mxu0 0
        %2026 = vmatprep.subr.bf16.mxu0 0
        %2027 = vmatpush1.bf16.msra.mxu0 0
        %2028 = vmatprep.subr.bf16.mxu0 0
        %2029 = vmatpush1.bf16.msra.mxu0 0
        %2030 = vmatprep.subr.bf16.mxu0 0
        %2031 = vmatpush1.bf16.msra.mxu0 0
        %2032 = vmatprep.mubr.bf16.mxu0 0
        %2033 = vmatmul.mubr.bf16.gmra.mrb[0].mxu0 %v1999
        %v2034 = vpop.f32.mrb[0].mxu0
        %v2035 = vadd.f32 %v779, %v2034
        %v2036 = vpop.f32.mrb[0].mxu0
        %v2037 = vadd.f32 %v783, %v2036
        %v2038 = vpop.f32.mrb[0].mxu0
        %v2039 = vpop.f32.mrb[0].mxu0
        %2040 = vdwg.mxu0
        %2041 = vmatprep.subr.bf16.mxu0 %v932
        %2042 = vmatpush1.bf16.msra.mxu0 %v931
        %2043 = vmatprep.subr.bf16.mxu0 %v936
        %2044 = vmatpush1.bf16.msra.mxu0 %v935
        %2045 = vmatprep.subr.bf16.mxu0 %v940
        %2046 = vmatpush1.bf16.msra.mxu0 %v939
        %2047 = vmatprep.subr.bf16.mxu0 %v944
        %2048 = vmatpush1.bf16.msra.mxu0 %v943
        %2049 = vmatprep.subr.bf16.mxu0 %v948
        %2050 = vmatpush1.bf16.msra.mxu0 %v947
        %2051 = vmatprep.subr.bf16.mxu0 %v952
        %2052 = vmatpush1.bf16.msra.mxu0 %v951
        %2053 = vmatprep.subr.bf16.mxu0 %v956
        %2054 = vmatpush1.bf16.msra.mxu0 %v955
        %2055 = vmatprep.subr.bf16.mxu0 %v960
        %2056 = vmatpush1.bf16.msra.mxu0 %v959
        %2057 = vmatprep.subr.bf16.mxu0 0
        %2058 = vmatpush1.bf16.msra.mxu0 0
        %2059 = vmatprep.subr.bf16.mxu0 0
        %2060 = vmatpush1.bf16.msra.mxu0 0
        %2061 = vmatprep.subr.bf16.mxu0 0
        %2062 = vmatpush1.bf16.msra.mxu0 0
        %2063 = vmatprep.subr.bf16.mxu0 0
        %2064 = vmatpush1.bf16.msra.mxu0 0
        %2065 = vmatprep.subr.bf16.mxu0 0
        %2066 = vmatpush1.bf16.msra.mxu0 0
        %2067 = vmatprep.subr.bf16.mxu0 0
        %2068 = vmatpush1.bf16.msra.mxu0 0
        %2069 = vmatprep.subr.bf16.mxu0 0
        %2070 = vmatpush1.bf16.msra.mxu0 0
        %2071 = vmatprep.subr.bf16.mxu0 0
        %2072 = vmatpush1.bf16.msra.mxu0 0
        %2073 = vmatprep.mubr.bf16.mxu0 0
        %2074 = vmatmul.mubr.bf16.gmra.mrb[0].mxu0 %v1999
        %v2075 = vpop.f32.mrb[0].mxu0
        %v2076 = vadd.f32 %v787, %v2075
        %v2077 = vpop.f32.mrb[0].mxu0
        %v2078 = vadd.f32 %v791, %v2077
        %v2079 = vpop.f32.mrb[0].mxu0
        %v2080 = vpop.f32.mrb[0].mxu0
        %2081 = vdwg.mxu0
        %s2082 = smul.u32 2, 4
        %s2083 = smul.addr %s2082, 8
        %s2084 = scalar_lea.vmem [#allocation2], %s2083
        %v2085 = vld [vmem:[%s2084] sm:$0xff]
        %v2086 = vld [vmem:[%s2084 + $0x8] sm:$0xff]
        %v2087 = vld [vmem:[%s2084 + $0x10] sm:$0xff]
        %v2088 = vld [vmem:[%s2084 + $0x18] sm:$0xff]
        %2089 = vmatprep.subr.bf16.mxu0 %v1212
        %2090 = vmatpush1.bf16.msra.mxu0 %v1211
        %2091 = vmatprep.subr.bf16.mxu0 %v1216
        %2092 = vmatpush1.bf16.msra.mxu0 %v1215
        %2093 = vmatprep.subr.bf16.mxu0 %v1220
        %2094 = vmatpush1.bf16.msra.mxu0 %v1219
        %2095 = vmatprep.subr.bf16.mxu0 %v1224
        %2096 = vmatpush1.bf16.msra.mxu0 %v1223
        %2097 = vmatprep.subr.bf16.mxu0 %v1228
        %2098 = vmatpush1.bf16.msra.mxu0 %v1227
        %2099 = vmatprep.subr.bf16.mxu0 %v1232
        %2100 = vmatpush1.bf16.msra.mxu0 %v1231
        %2101 = vmatprep.subr.bf16.mxu0 %v1236
        %2102 = vmatpush1.bf16.msra.mxu0 %v1235
        %2103 = vmatprep.subr.bf16.mxu0 %v1240
        %2104 = vmatpush1.bf16.msra.mxu0 %v1239
        %2105 = vmatprep.subr.bf16.mxu0 0
        %2106 = vmatpush1.bf16.msra.mxu0 0
        %2107 = vmatprep.subr.bf16.mxu0 0
        %2108 = vmatpush1.bf16.msra.mxu0 0
        %2109 = vmatprep.subr.bf16.mxu0 0
        %2110 = vmatpush1.bf16.msra.mxu0 0
        %2111 = vmatprep.subr.bf16.mxu0 0
        %2112 = vmatpush1.bf16.msra.mxu0 0
        %2113 = vmatprep.subr.bf16.mxu0 0
        %2114 = vmatpush1.bf16.msra.mxu0 0
        %2115 = vmatprep.subr.bf16.mxu0 0
        %2116 = vmatpush1.bf16.msra.mxu0 0
        %2117 = vmatprep.subr.bf16.mxu0 0
        %2118 = vmatpush1.bf16.msra.mxu0 0
        %2119 = vmatprep.subr.bf16.mxu0 0
        %2120 = vmatpush1.bf16.msra.mxu0 0
        %2121 = vmatprep.mubr.bf16.mxu0 0
        %2122 = vmatmul.mubr.bf16.gmra.mrb[0].mxu0 %v1888
        %v2123 = vpop.f32.mrb[0].mxu0
        %v2124 = vadd.f32 0.0, %v2123
        %v2125 = vpop.f32.mrb[0].mxu0
        %v2126 = vadd.f32 0.0, %v2125
        %v2127 = vpop.f32.mrb[0].mxu0
        %v2128 = vpop.f32.mrb[0].mxu0
        %2129 = vdwg.mxu0
        %2130 = vmatprep.subr.bf16.mxu0 %v1214
        %2131 = vmatpush1.bf16.msra.mxu0 %v1213
        %2132 = vmatprep.subr.bf16.mxu0 %v1218
        %2133 = vmatpush1.bf16.msra.mxu0 %v1217
        %2134 = vmatprep.subr.bf16.mxu0 %v1222
        %2135 = vmatpush1.bf16.msra.mxu0 %v1221
        %2136 = vmatprep.subr.bf16.mxu0 %v1226
        %2137 = vmatpush1.bf16.msra.mxu0 %v1225
        %2138 = vmatprep.subr.bf16.mxu0 %v1230
        %2139 = vmatpush1.bf16.msra.mxu0 %v1229
        %2140 = vmatprep.subr.bf16.mxu0 %v1234
        %2141 = vmatpush1.bf16.msra.mxu0 %v1233
        %2142 = vmatprep.subr.bf16.mxu0 %v1238
        %2143 = vmatpush1.bf16.msra.mxu0 %v1237
        %2144 = vmatprep.subr.bf16.mxu0 %v1242
        %2145 = vmatpush1.bf16.msra.mxu0 %v1241
        %2146 = vmatprep.subr.bf16.mxu0 0
        %2147 = vmatpush1.bf16.msra.mxu0 0
        %2148 = vmatprep.subr.bf16.mxu0 0
        %2149 = vmatpush1.bf16.msra.mxu0 0
        %2150 = vmatprep.subr.bf16.mxu0 0
        %2151 = vmatpush1.bf16.msra.mxu0 0
        %2152 = vmatprep.subr.bf16.mxu0 0
        %2153 = vmatpush1.bf16.msra.mxu0 0
        %2154 = vmatprep.subr.bf16.mxu0 0
        %2155 = vmatpush1.bf16.msra.mxu0 0
        %2156 = vmatprep.subr.bf16.mxu0 0
        %2157 = vmatpush1.bf16.msra.mxu0 0
        %2158 = vmatprep.subr.bf16.mxu0 0
        %2159 = vmatpush1.bf16.msra.mxu0 0
        %2160 = vmatprep.subr.bf16.mxu0 0
        %2161 = vmatpush1.bf16.msra.mxu0 0
        %2162 = vmatprep.mubr.bf16.mxu0 0
        %2163 = vmatmul.mubr.bf16.gmra.mrb[0].mxu0 %v1888
        %v2164 = vpop.f32.mrb[0].mxu0
        %v2165 = vadd.f32 0.0, %v2164
        %v2166 = vpop.f32.mrb[0].mxu0
        %v2167 = vadd.f32 0.0, %v2166
        %v2168 = vpop.f32.mrb[0].mxu0
        %v2169 = vpop.f32.mrb[0].mxu0
        %2170 = vdwg.mxu0
        %v2171 = vadd.f32 %v2085, %v2124
        %v2172 = vadd.f32 %v2086, %v2126
        %v2173 = vadd.f32 %v2087, %v2165
        %v2174 = vadd.f32 %v2088, %v2167
        %v2175 = vxor.u32 %v2171, 2147483648
        %v2176 = vmul.f32 %v2175, 1.442695
        %v2177 = vpow.pop %v2176
        %v2178 = vadd.f32 %v2177, 1.0
        %v2179 = vrcp.pop %v2178
        %v2180 = vmul.f32 1.0, %v2179
        %v2181 = vxor.u32 %v2172, 2147483648
        %v2182 = vmul.f32 %v2181, 1.442695
        %v2183 = vpow.pop %v2182
        %v2184 = vadd.f32 %v2183, 1.0
        %v2185 = vrcp.pop %v2184
        %v2186 = vmul.f32 1.0, %v2185
        %v2187 = vtanh.pop %v2173
        %v2188 = vxor.u32 %v2174, 2147483648
        %v2189 = vmul.f32 %v2188, 1.442695
        %v2190 = vpow.pop %v2189
        %v2191 = vadd.f32 %v2190, 1.0
        %v2192 = vrcp.pop %v2191
        %v2193 = vmul.f32 1.0, %v2192
        %v2194 = vmul.f32 %v2186, %v1885
        %v2195 = vmul.f32 %v2180, %v2187
        %v2196 = vadd.f32 %v2194, %v2195
        %v2197 = vtanh.pop %v2196
        %v2198 = vmul.f32 %v2193, %v2197
        %v2199 = vpack.c.bf16 %v2198, %v2198
        %2200 = vmatprep.subr.bf16.mxu0 %v1515
        %2201 = vmatpush1.bf16.msra.mxu0 %v1514
        %2202 = vmatprep.subr.bf16.mxu0 %v1519
        %2203 = vmatpush1.bf16.msra.mxu0 %v1518
        %2204 = vmatprep.subr.bf16.mxu0 %v1523
        %2205 = vmatpush1.bf16.msra.mxu0 %v1522
        %2206 = vmatprep.subr.bf16.mxu0 %v1527
        %2207 = vmatpush1.bf16.msra.mxu0 %v1526
        %2208 = vmatprep.subr.bf16.mxu0 %v1531
        %2209 = vmatpush1.bf16.msra.mxu0 %v1530
        %2210 = vmatprep.subr.bf16.mxu0 %v1535
        %2211 = vmatpush1.bf16.msra.mxu0 %v1534
        %2212 = vmatprep.subr.bf16.mxu0 %v1539
        %2213 = vmatpush1.bf16.msra.mxu0 %v1538
        %2214 = vmatprep.subr.bf16.mxu0 %v1543
        %2215 = vmatpush1.bf16.msra.mxu0 %v1542
        %2216 = vmatprep.subr.bf16.mxu0 0
        %2217 = vmatpush1.bf16.msra.mxu0 0
        %2218 = vmatprep.subr.bf16.mxu0 0
        %2219 = vmatpush1.bf16.msra.mxu0 0
        %2220 = vmatprep.subr.bf16.mxu0 0
        %2221 = vmatpush1.bf16.msra.mxu0 0
        %2222 = vmatprep.subr.bf16.mxu0 0
        %2223 = vmatpush1.bf16.msra.mxu0 0
        %2224 = vmatprep.subr.bf16.mxu0 0
        %2225 = vmatpush1.bf16.msra.mxu0 0
        %2226 = vmatprep.subr.bf16.mxu0 0
        %2227 = vmatpush1.bf16.msra.mxu0 0
        %2228 = vmatprep.subr.bf16.mxu0 0
        %2229 = vmatpush1.bf16.msra.mxu0 0
        %2230 = vmatprep.subr.bf16.mxu0 0
        %2231 = vmatpush1.bf16.msra.mxu0 0
        %2232 = vmatprep.mubr.bf16.mxu0 0
        %2233 = vmatmul.mubr.bf16.gmra.mrb[0].mxu0 %v2199
        %v2234 = vpop.f32.mrb[0].mxu0
        %v2235 = vadd.f32 0.0, %v2234
        %v2236 = vpop.f32.mrb[0].mxu0
        %v2237 = vadd.f32 0.0, %v2236
        %v2238 = vpop.f32.mrb[0].mxu0
        %v2239 = vpop.f32.mrb[0].mxu0
        %2240 = vdwg.mxu0
        %2241 = vmatprep.subr.bf16.mxu0 %v1517
        %2242 = vmatpush1.bf16.msra.mxu0 %v1516
        %2243 = vmatprep.subr.bf16.mxu0 %v1521
        %2244 = vmatpush1.bf16.msra.mxu0 %v1520
        %2245 = vmatprep.subr.bf16.mxu0 %v1525
        %2246 = vmatpush1.bf16.msra.mxu0 %v1524
        %2247 = vmatprep.subr.bf16.mxu0 %v1529
        %2248 = vmatpush1.bf16.msra.mxu0 %v1528
        %2249 = vmatprep.subr.bf16.mxu0 %v1533
        %2250 = vmatpush1.bf16.msra.mxu0 %v1532
        %2251 = vmatprep.subr.bf16.mxu0 %v1537
        %2252 = vmatpush1.bf16.msra.mxu0 %v1536
        %2253 = vmatprep.subr.bf16.mxu0 %v1541
        %2254 = vmatpush1.bf16.msra.mxu0 %v1540
        %2255 = vmatprep.subr.bf16.mxu0 %v1545
        %2256 = vmatpush1.bf16.msra.mxu0 %v1544
        %2257 = vmatprep.subr.bf16.mxu0 0
        %2258 = vmatpush1.bf16.msra.mxu0 0
        %2259 = vmatprep.subr.bf16.mxu0 0
        %2260 = vmatpush1.bf16.msra.mxu0 0
        %2261 = vmatprep.subr.bf16.mxu0 0
        %2262 = vmatpush1.bf16.msra.mxu0 0
        %2263 = vmatprep.subr.bf16.mxu0 0
        %2264 = vmatpush1.bf16.msra.mxu0 0
        %2265 = vmatprep.subr.bf16.mxu0 0
        %2266 = vmatpush1.bf16.msra.mxu0 0
        %2267 = vmatprep.subr.bf16.mxu0 0
        %2268 = vmatpush1.bf16.msra.mxu0 0
        %2269 = vmatprep.subr.bf16.mxu0 0
        %2270 = vmatpush1.bf16.msra.mxu0 0
        %2271 = vmatprep.subr.bf16.mxu0 0
        %2272 = vmatpush1.bf16.msra.mxu0 0
        %2273 = vmatprep.mubr.bf16.mxu0 0
        %2274 = vmatmul.mubr.bf16.gmra.mrb[0].mxu0 %v2199
        %v2275 = vpop.f32.mrb[0].mxu0
        %v2276 = vadd.f32 0.0, %v2275
        %v2277 = vpop.f32.mrb[0].mxu0
        %v2278 = vadd.f32 0.0, %v2277
        %v2279 = vpop.f32.mrb[0].mxu0
        %v2280 = vpop.f32.mrb[0].mxu0
        %2281 = vdwg.mxu0
        %v2282 = vadd.f32 %v2035, %v2235
        %v2283 = vadd.f32 %v2037, %v2237
        %v2284 = vadd.f32 %v2076, %v2276
        %v2285 = vadd.f32 %v2078, %v2278
        %v2286 = vxor.u32 %v2282, 2147483648
        %v2287 = vmul.f32 %v2286, 1.442695
        %v2288 = vpow.pop %v2287
        %v2289 = vadd.f32 %v2288, 1.0
        %v2290 = vrcp.pop %v2289
        %v2291 = vmul.f32 1.0, %v2290
        %v2292 = vxor.u32 %v2283, 2147483648
        %v2293 = vmul.f32 %v2292, 1.442695
        %v2294 = vpow.pop %v2293
        %v2295 = vadd.f32 %v2294, 1.0
        %v2296 = vrcp.pop %v2295
        %v2297 = vmul.f32 1.0, %v2296
        %v2298 = vtanh.pop %v2284
        %v2299 = vxor.u32 %v2285, 2147483648
        %v2300 = vmul.f32 %v2299, 1.442695
        %v2301 = vpow.pop %v2300
        %v2302 = vadd.f32 %v2301, 1.0
        %v2303 = vrcp.pop %v2302
        %v2304 = vmul.f32 1.0, %v2303
        %v2305 = vmul.f32 %v2297, %v1996
        %v2306 = vmul.f32 %v2291, %v2298
        %v2307 = vadd.f32 %v2305, %v2306
        %v2308 = vtanh.pop %v2307
        %v2309 = vmul.f32 %v2304, %v2308
        %v2310 = vpack.c.bf16 %v2309, %v2309
        %2311 = vmatprep.subr.bf16.mxu0 %v930
        %2312 = vmatpush1.bf16.msra.mxu0 %v929
        %2313 = vmatprep.subr.bf16.mxu0 %v934
        %2314 = vmatpush1.bf16.msra.mxu0 %v933
        %2315 = vmatprep.subr.bf16.mxu0 %v938
        %2316 = vmatpush1.bf16.msra.mxu0 %v937
        %2317 = vmatprep.subr.bf16.mxu0 %v942
        %2318 = vmatpush1.bf16.msra.mxu0 %v941
        %2319 = vmatprep.subr.bf16.mxu0 %v946
        %2320 = vmatpush1.bf16.msra.mxu0 %v945
        %2321 = vmatprep.subr.bf16.mxu0 %v950
        %2322 = vmatpush1.bf16.msra.mxu0 %v949
        %2323 = vmatprep.subr.bf16.mxu0 %v954
        %2324 = vmatpush1.bf16.msra.mxu0 %v953
        %2325 = vmatprep.subr.bf16.mxu0 %v958
        %2326 = vmatpush1.bf16.msra.mxu0 %v957
        %2327 = vmatprep.subr.bf16.mxu0 0
        %2328 = vmatpush1.bf16.msra.mxu0 0
        %2329 = vmatprep.subr.bf16.mxu0 0
        %2330 = vmatpush1.bf16.msra.mxu0 0
        %2331 = vmatprep.subr.bf16.mxu0 0
        %2332 = vmatpush1.bf16.msra.mxu0 0
        %2333 = vmatprep.subr.bf16.mxu0 0
        %2334 = vmatpush1.bf16.msra.mxu0 0
        %2335 = vmatprep.subr.bf16.mxu0 0
        %2336 = vmatpush1.bf16.msra.mxu0 0
        %2337 = vmatprep.subr.bf16.mxu0 0
        %2338 = vmatpush1.bf16.msra.mxu0 0
        %2339 = vmatprep.subr.bf16.mxu0 0
        %2340 = vmatpush1.bf16.msra.mxu0 0
        %2341 = vmatprep.subr.bf16.mxu0 0
        %2342 = vmatpush1.bf16.msra.mxu0 0
        %2343 = vmatprep.mubr.bf16.mxu0 0
        %2344 = vmatmul.mubr.bf16.gmra.mrb[0].mxu0 %v2310
        %v2345 = vpop.f32.mrb[0].mxu0
        %v2346 = vadd.f32 %v779, %v2345
        %v2347 = vpop.f32.mrb[0].mxu0
        %v2348 = vadd.f32 %v783, %v2347
        %v2349 = vpop.f32.mrb[0].mxu0
        %v2350 = vpop.f32.mrb[0].mxu0
        %2351 = vdwg.mxu0
        %2352 = vmatprep.subr.bf16.mxu0 %v932
        %2353 = vmatpush1.bf16.msra.mxu0 %v931
        %2354 = vmatprep.subr.bf16.mxu0 %v936
        %2355 = vmatpush1.bf16.msra.mxu0 %v935
        %2356 = vmatprep.subr.bf16.mxu0 %v940
        %2357 = vmatpush1.bf16.msra.mxu0 %v939
        %2358 = vmatprep.subr.bf16.mxu0 %v944
        %2359 = vmatpush1.bf16.msra.mxu0 %v943
        %2360 = vmatprep.subr.bf16.mxu0 %v948
        %2361 = vmatpush1.bf16.msra.mxu0 %v947
        %2362 = vmatprep.subr.bf16.mxu0 %v952
        %2363 = vmatpush1.bf16.msra.mxu0 %v951
        %2364 = vmatprep.subr.bf16.mxu0 %v956
        %2365 = vmatpush1.bf16.msra.mxu0 %v955
        %2366 = vmatprep.subr.bf16.mxu0 %v960
        %2367 = vmatpush1.bf16.msra.mxu0 %v959
        %2368 = vmatprep.subr.bf16.mxu0 0
        %2369 = vmatpush1.bf16.msra.mxu0 0
        %2370 = vmatprep.subr.bf16.mxu0 0
        %2371 = vmatpush1.bf16.msra.mxu0 0
        %2372 = vmatprep.subr.bf16.mxu0 0
        %2373 = vmatpush1.bf16.msra.mxu0 0
        %2374 = vmatprep.subr.bf16.mxu0 0
        %2375 = vmatpush1.bf16.msra.mxu0 0
        %2376 = vmatprep.subr.bf16.mxu0 0
        %2377 = vmatpush1.bf16.msra.mxu0 0
        %2378 = vmatprep.subr.bf16.mxu0 0
        %2379 = vmatpush1.bf16.msra.mxu0 0
        %2380 = vmatprep.subr.bf16.mxu0 0
        %2381 = vmatpush1.bf16.msra.mxu0 0
        %2382 = vmatprep.subr.bf16.mxu0 0
        %2383 = vmatpush1.bf16.msra.mxu0 0
        %2384 = vmatprep.mubr.bf16.mxu0 0
        %2385 = vmatmul.mubr.bf16.gmra.mrb[0].mxu0 %v2310
        %v2386 = vpop.f32.mrb[0].mxu0
        %v2387 = vadd.f32 %v787, %v2386
        %v2388 = vpop.f32.mrb[0].mxu0
        %v2389 = vadd.f32 %v791, %v2388
        %v2390 = vpop.f32.mrb[0].mxu0
        %v2391 = vpop.f32.mrb[0].mxu0
        %2392 = vdwg.mxu0
        %s2393 = smul.u32 3, 4
        %s2394 = smul.addr %s2393, 8
        %s2395 = scalar_lea.vmem [#allocation2], %s2394
        %v2396 = vld [vmem:[%s2395] sm:$0xff]
        %v2397 = vld [vmem:[%s2395 + $0x8] sm:$0xff]
        %v2398 = vld [vmem:[%s2395 + $0x10] sm:$0xff]
        %v2399 = vld [vmem:[%s2395 + $0x18] sm:$0xff]
        %2400 = vmatprep.subr.bf16.mxu0 %v1212
        %2401 = vmatpush1.bf16.msra.mxu0 %v1211
        %2402 = vmatprep.subr.bf16.mxu0 %v1216
        %2403 = vmatpush1.bf16.msra.mxu0 %v1215
        %2404 = vmatprep.subr.bf16.mxu0 %v1220
        %2405 = vmatpush1.bf16.msra.mxu0 %v1219
        %2406 = vmatprep.subr.bf16.mxu0 %v1224
        %2407 = vmatpush1.bf16.msra.mxu0 %v1223
        %2408 = vmatprep.subr.bf16.mxu0 %v1228
        %2409 = vmatpush1.bf16.msra.mxu0 %v1227
        %2410 = vmatprep.subr.bf16.mxu0 %v1232
        %2411 = vmatpush1.bf16.msra.mxu0 %v1231
        %2412 = vmatprep.subr.bf16.mxu0 %v1236
        %2413 = vmatpush1.bf16.msra.mxu0 %v1235
        %2414 = vmatprep.subr.bf16.mxu0 %v1240
        %2415 = vmatpush1.bf16.msra.mxu0 %v1239
        %2416 = vmatprep.subr.bf16.mxu0 0
        %2417 = vmatpush1.bf16.msra.mxu0 0
        %2418 = vmatprep.subr.bf16.mxu0 0
        %2419 = vmatpush1.bf16.msra.mxu0 0
        %2420 = vmatprep.subr.bf16.mxu0 0
        %2421 = vmatpush1.bf16.msra.mxu0 0
        %2422 = vmatprep.subr.bf16.mxu0 0
        %2423 = vmatpush1.bf16.msra.mxu0 0
        %2424 = vmatprep.subr.bf16.mxu0 0
        %2425 = vmatpush1.bf16.msra.mxu0 0
        %2426 = vmatprep.subr.bf16.mxu0 0
        %2427 = vmatpush1.bf16.msra.mxu0 0
        %2428 = vmatprep.subr.bf16.mxu0 0
        %2429 = vmatpush1.bf16.msra.mxu0 0
        %2430 = vmatprep.subr.bf16.mxu0 0
        %2431 = vmatpush1.bf16.msra.mxu0 0
        %2432 = vmatprep.mubr.bf16.mxu0 0
        %2433 = vmatmul.mubr.bf16.gmra.mrb[0].mxu0 %v2199
        %v2434 = vpop.f32.mrb[0].mxu0
        %v2435 = vadd.f32 0.0, %v2434
        %v2436 = vpop.f32.mrb[0].mxu0
        %v2437 = vadd.f32 0.0, %v2436
        %v2438 = vpop.f32.mrb[0].mxu0
        %v2439 = vpop.f32.mrb[0].mxu0
        %2440 = vdwg.mxu0
        %2441 = vmatprep.subr.bf16.mxu0 %v1214
        %2442 = vmatpush1.bf16.msra.mxu0 %v1213
        %2443 = vmatprep.subr.bf16.mxu0 %v1218
        %2444 = vmatpush1.bf16.msra.mxu0 %v1217
        %2445 = vmatprep.subr.bf16.mxu0 %v1222
        %2446 = vmatpush1.bf16.msra.mxu0 %v1221
        %2447 = vmatprep.subr.bf16.mxu0 %v1226
        %2448 = vmatpush1.bf16.msra.mxu0 %v1225
        %2449 = vmatprep.subr.bf16.mxu0 %v1230
        %2450 = vmatpush1.bf16.msra.mxu0 %v1229
        %2451 = vmatprep.subr.bf16.mxu0 %v1234
        %2452 = vmatpush1.bf16.msra.mxu0 %v1233
        %2453 = vmatprep.subr.bf16.mxu0 %v1238
        %2454 = vmatpush1.bf16.msra.mxu0 %v1237
        %2455 = vmatprep.subr.bf16.mxu0 %v1242
        %2456 = vmatpush1.bf16.msra.mxu0 %v1241
        %2457 = vmatprep.subr.bf16.mxu0 0
        %2458 = vmatpush1.bf16.msra.mxu0 0
        %2459 = vmatprep.subr.bf16.mxu0 0
        %2460 = vmatpush1.bf16.msra.mxu0 0
        %2461 = vmatprep.subr.bf16.mxu0 0
        %2462 = vmatpush1.bf16.msra.mxu0 0
        %2463 = vmatprep.subr.bf16.mxu0 0
        %2464 = vmatpush1.bf16.msra.mxu0 0
        %2465 = vmatprep.subr.bf16.mxu0 0
        %2466 = vmatpush1.bf16.msra.mxu0 0
        %2467 = vmatprep.subr.bf16.mxu0 0
        %2468 = vmatpush1.bf16.msra.mxu0 0
        %2469 = vmatprep.subr.bf16.mxu0 0
        %2470 = vmatpush1.bf16.msra.mxu0 0
        %2471 = vmatprep.subr.bf16.mxu0 0
        %2472 = vmatpush1.bf16.msra.mxu0 0
        %2473 = vmatprep.mubr.bf16.mxu0 0
        %2474 = vmatmul.mubr.bf16.gmra.mrb[0].mxu0 %v2199
        %v2475 = vpop.f32.mrb[0].mxu0
        %v2476 = vadd.f32 0.0, %v2475
        %v2477 = vpop.f32.mrb[0].mxu0
        %v2478 = vadd.f32 0.0, %v2477
        %v2479 = vpop.f32.mrb[0].mxu0
        %v2480 = vpop.f32.mrb[0].mxu0
        %2481 = vdwg.mxu0
        %v2482 = vadd.f32 %v2396, %v2435
        %v2483 = vadd.f32 %v2397, %v2437
        %v2484 = vadd.f32 %v2398, %v2476
        %v2485 = vadd.f32 %v2399, %v2478
        %v2486 = vxor.u32 %v2482, 2147483648
        %v2487 = vmul.f32 %v2486, 1.442695
        %v2488 = vpow.pop %v2487
        %v2489 = vadd.f32 %v2488, 1.0
        %v2490 = vrcp.pop %v2489
        %v2491 = vmul.f32 1.0, %v2490
        %v2492 = vxor.u32 %v2483, 2147483648
        %v2493 = vmul.f32 %v2492, 1.442695
        %v2494 = vpow.pop %v2493
        %v2495 = vadd.f32 %v2494, 1.0
        %v2496 = vrcp.pop %v2495
        %v2497 = vmul.f32 1.0, %v2496
        %v2498 = vtanh.pop %v2484
        %v2499 = vxor.u32 %v2485, 2147483648
        %v2500 = vmul.f32 %v2499, 1.442695
        %v2501 = vpow.pop %v2500
        %v2502 = vadd.f32 %v2501, 1.0
        %v2503 = vrcp.pop %v2502
        %v2504 = vmul.f32 1.0, %v2503
        %v2505 = vmul.f32 %v2497, %v2196
        %v2506 = vmul.f32 %v2491, %v2498
        %v2507 = vadd.f32 %v2505, %v2506
        %v2508 = vtanh.pop %v2507
        %v2509 = vmul.f32 %v2504, %v2508
        %v2510 = vpack.c.bf16 %v2509, %v2509
        %2511 = vmatprep.subr.bf16.mxu0 %v1515
        %2512 = vmatpush1.bf16.msra.mxu0 %v1514
        %2513 = vmatprep.subr.bf16.mxu0 %v1519
        %2514 = vmatpush1.bf16.msra.mxu0 %v1518
        %2515 = vmatprep.subr.bf16.mxu0 %v1523
        %2516 = vmatpush1.bf16.msra.mxu0 %v1522
        %2517 = vmatprep.subr.bf16.mxu0 %v1527
        %2518 = vmatpush1.bf16.msra.mxu0 %v1526
        %2519 = vmatprep.subr.bf16.mxu0 %v1531
        %2520 = vmatpush1.bf16.msra.mxu0 %v1530
        %2521 = vmatprep.subr.bf16.mxu0 %v1535
        %2522 = vmatpush1.bf16.msra.mxu0 %v1534
        %2523 = vmatprep.subr.bf16.mxu0 %v1539
        %2524 = vmatpush1.bf16.msra.mxu0 %v1538
        %2525 = vmatprep.subr.bf16.mxu0 %v1543
        %2526 = vmatpush1.bf16.msra.mxu0 %v1542
        %2527 = vmatprep.subr.bf16.mxu0 0
        %2528 = vmatpush1.bf16.msra.mxu0 0
        %2529 = vmatprep.subr.bf16.mxu0 0
        %2530 = vmatpush1.bf16.msra.mxu0 0
        %2531 = vmatprep.subr.bf16.mxu0 0
        %2532 = vmatpush1.bf16.msra.mxu0 0
        %2533 = vmatprep.subr.bf16.mxu0 0
        %2534 = vmatpush1.bf16.msra.mxu0 0
        %2535 = vmatprep.subr.bf16.mxu0 0
        %2536 = vmatpush1.bf16.msra.mxu0 0
        %2537 = vmatprep.subr.bf16.mxu0 0
        %2538 = vmatpush1.bf16.msra.mxu0 0
        %2539 = vmatprep.subr.bf16.mxu0 0
        %2540 = vmatpush1.bf16.msra.mxu0 0
        %2541 = vmatprep.subr.bf16.mxu0 0
        %2542 = vmatpush1.bf16.msra.mxu0 0
        %2543 = vmatprep.mubr.bf16.mxu0 0
        %2544 = vmatmul.mubr.bf16.gmra.mrb[0].mxu0 %v2510
        %v2545 = vpop.f32.mrb[0].mxu0
        %v2546 = vadd.f32 0.0, %v2545
        %v2547 = vpop.f32.mrb[0].mxu0
        %v2548 = vadd.f32 0.0, %v2547
        %v2549 = vpop.f32.mrb[0].mxu0
        %v2550 = vpop.f32.mrb[0].mxu0
        %2551 = vdwg.mxu0
        %2552 = vmatprep.subr.bf16.mxu0 %v1517
        %2553 = vmatpush1.bf16.msra.mxu0 %v1516
        %2554 = vmatprep.subr.bf16.mxu0 %v1521
        %2555 = vmatpush1.bf16.msra.mxu0 %v1520
        %2556 = vmatprep.subr.bf16.mxu0 %v1525
        %2557 = vmatpush1.bf16.msra.mxu0 %v1524
        %2558 = vmatprep.subr.bf16.mxu0 %v1529
        %2559 = vmatpush1.bf16.msra.mxu0 %v1528
        %2560 = vmatprep.subr.bf16.mxu0 %v1533
        %2561 = vmatpush1.bf16.msra.mxu0 %v1532
        %2562 = vmatprep.subr.bf16.mxu0 %v1537
        %2563 = vmatpush1.bf16.msra.mxu0 %v1536
        %2564 = vmatprep.subr.bf16.mxu0 %v1541
        %2565 = vmatpush1.bf16.msra.mxu0 %v1540
        %2566 = vmatprep.subr.bf16.mxu0 %v1545
        %2567 = vmatpush1.bf16.msra.mxu0 %v1544
        %2568 = vmatprep.subr.bf16.mxu0 0
        %2569 = vmatpush1.bf16.msra.mxu0 0
        %2570 = vmatprep.subr.bf16.mxu0 0
        %2571 = vmatpush1.bf16.msra.mxu0 0
        %2572 = vmatprep.subr.bf16.mxu0 0
        %2573 = vmatpush1.bf16.msra.mxu0 0
        %2574 = vmatprep.subr.bf16.mxu0 0
        %2575 = vmatpush1.bf16.msra.mxu0 0
        %2576 = vmatprep.subr.bf16.mxu0 0
        %2577 = vmatpush1.bf16.msra.mxu0 0
        %2578 = vmatprep.subr.bf16.mxu0 0
        %2579 = vmatpush1.bf16.msra.mxu0 0
        %2580 = vmatprep.subr.bf16.mxu0 0
        %2581 = vmatpush1.bf16.msra.mxu0 0
        %2582 = vmatprep.subr.bf16.mxu0 0
        %2583 = vmatpush1.bf16.msra.mxu0 0
        %2584 = vmatprep.mubr.bf16.mxu0 0
        %2585 = vmatmul.mubr.bf16.gmra.mrb[0].mxu0 %v2510
        %v2586 = vpop.f32.mrb[0].mxu0
        %v2587 = vadd.f32 0.0, %v2586
        %v2588 = vpop.f32.mrb[0].mxu0
        %v2589 = vadd.f32 0.0, %v2588
        %v2590 = vpop.f32.mrb[0].mxu0
        %v2591 = vpop.f32.mrb[0].mxu0
        %2592 = vdwg.mxu0
        %v2593 = vadd.f32 %v2346, %v2546
        %v2594 = vadd.f32 %v2348, %v2548
        %v2595 = vadd.f32 %v2387, %v2587
        %v2596 = vadd.f32 %v2389, %v2589
        %v2597 = vxor.u32 %v2593, 2147483648
        %v2598 = vmul.f32 %v2597, 1.442695
        %v2599 = vpow.pop %v2598
        %v2600 = vadd.f32 %v2599, 1.0
        %v2601 = vrcp.pop %v2600
        %v2602 = vmul.f32 1.0, %v2601
        %v2603 = vxor.u32 %v2594, 2147483648
        %v2604 = vmul.f32 %v2603, 1.442695
        %v2605 = vpow.pop %v2604
        %v2606 = vadd.f32 %v2605, 1.0
        %v2607 = vrcp.pop %v2606
        %v2608 = vmul.f32 1.0, %v2607
        %v2609 = vtanh.pop %v2595
        %v2610 = vxor.u32 %v2596, 2147483648
        %v2611 = vmul.f32 %v2610, 1.442695
        %v2612 = vpow.pop %v2611
        %v2613 = vadd.f32 %v2612, 1.0
        %v2614 = vrcp.pop %v2613
        %v2615 = vmul.f32 1.0, %v2614
        %v2616 = vmul.f32 %v2608, %v2307
        %v2617 = vmul.f32 %v2602, %v2609
        %v2618 = vadd.f32 %v2616, %v2617
        %v2619 = vtanh.pop %v2618
        %v2620 = vmul.f32 %v2615, %v2619
        %2621 = vst [vmem:[#allocation3] sm:$0xff] %v2509
        %2622 = vst [vmem:[#allocation4] sm:$0xff] %v2507
        %2623 = vst [vmem:[#allocation5] sm:$0xff] %v2620
        %2624 = vst [vmem:[#allocation6] sm:$0xff] %v2618
        %p2625 = scmp.eq.s32.totalorder %s27, 1
        // Predicated region
        $region85: #{tpu_custom_call.1} parent=55 // pred_check
          %p2626 = pneg %p2625
        $region86: #{tpu_custom_call.1} parent=55 // pred_check_branch
          %2628 = sbr.rel (%p2626) target = $region88
        $region87: #{tpu_custom_call.1} parent=55 // pred_region
          %v2629 = vpack.c.bf16 %v2620, %v2620
          %v2630 = vld [vmem:[#allocation16] sm:$0xf]
          %v2631 = vld [vmem:[#allocation16 + $0x4] sm:$0xf]
          %v2632 = vld [vmem:[#allocation16 + $0x8] sm:$0xf]
          %v2633 = vld [vmem:[#allocation16 + $0xc] sm:$0xf]
          %v2634 = vld [vmem:[#allocation16 + $0x10] sm:$0xf]
          %v2635 = vld [vmem:[#allocation16 + $0x14] sm:$0xf]
          %v2636 = vld [vmem:[#allocation16 + $0x18] sm:$0xf]
          %v2637 = vld [vmem:[#allocation16 + $0x1c] sm:$0xf]
          %v2638 = vld [vmem:[#allocation16 + $0x20] sm:$0xf]
          %v2639 = vld [vmem:[#allocation16 + $0x24] sm:$0xf]
          %v2640 = vld [vmem:[#allocation16 + $0x28] sm:$0xf]
          %v2641 = vld [vmem:[#allocation16 + $0x2c] sm:$0xf]
          %v2642 = vld [vmem:[#allocation16 + $0x30] sm:$0xf]
          %v2643 = vld [vmem:[#allocation16 + $0x34] sm:$0xf]
          %v2644 = vld [vmem:[#allocation16 + $0x38] sm:$0xf]
          %v2645 = vld [vmem:[#allocation16 + $0x3c] sm:$0xf]
          %v2646 = vld [vmem:[%s8] sm:$0x1]
          %v2648 = vlaneseq
          %v2649 = vshrl.u32 %v2648, 7
          %v2650 = vsub.s32 0, %v2649
          %v2651 = vrot.slane %v2646, %v2650
          %v2669 = vunpack.c.l.b16 %v2630
          %v2670 = vunpack.c.l.b16 %v2631
          %v2671 = vunpack.c.l.b16 %v2632
          %v2672 = vunpack.c.l.b16 %v2633
          %v2673 = vunpack.c.l.b16 %v2634
          %v2674 = vunpack.c.l.b16 %v2635
          %v2675 = vunpack.c.l.b16 %v2636
          %v2676 = vunpack.c.l.b16 %v2637
          %v2677 = vunpack.c.l.b16 %v2638
          %v2678 = vunpack.c.l.b16 %v2639
          %v2679 = vunpack.c.l.b16 %v2640
          %v2680 = vunpack.c.l.b16 %v2641
          %v2681 = vunpack.c.l.b16 %v2642
          %v2682 = vunpack.c.l.b16 %v2643
          %v2683 = vunpack.c.l.b16 %v2644
          %v2684 = vunpack.c.l.b16 %v2645
          %v2685 = vpack.c.b16 %v2670, %v2669
          %v2686 = vpack.c.b16 %v2672, %v2671
          %v2687 = vpack.c.b16 %v2674, %v2673
          %v2688 = vpack.c.b16 %v2676, %v2675
          %v2689 = vpack.c.b16 %v2678, %v2677
          %v2690 = vpack.c.b16 %v2680, %v2679
          %v2691 = vpack.c.b16 %v2682, %v2681
          %v2692 = vpack.c.b16 %v2684, %v2683
          %2701 = vmatprep.subr.bf16.mxu0 0
          %2702 = vmatpush1.bf16.msra.mxu0 %v2685
          %2703 = vmatprep.subr.bf16.mxu0 0
          %2704 = vmatpush1.bf16.msra.mxu0 %v2686
          %2705 = vmatprep.subr.bf16.mxu0 0
          %2706 = vmatpush1.bf16.msra.mxu0 %v2687
          %2707 = vmatprep.subr.bf16.mxu0 0
          %2708 = vmatpush1.bf16.msra.mxu0 %v2688
          %2709 = vmatprep.subr.bf16.mxu0 0
          %2710 = vmatpush1.bf16.msra.mxu0 %v2689
          %2711 = vmatprep.subr.bf16.mxu0 0
          %2712 = vmatpush1.bf16.msra.mxu0 %v2690
          %2713 = vmatprep.subr.bf16.mxu0 0
          %2714 = vmatpush1.bf16.msra.mxu0 %v2691
          %2715 = vmatprep.subr.bf16.mxu0 0
          %2716 = vmatpush1.bf16.msra.mxu0 %v2692
          %2717 = vmatprep.subr.bf16.mxu0 0
          %2718 = vmatpush1.bf16.msra.mxu0 0
          %2719 = vmatprep.subr.bf16.mxu0 0
          %2720 = vmatpush1.bf16.msra.mxu0 0
          %2721 = vmatprep.subr.bf16.mxu0 0
          %2722 = vmatpush1.bf16.msra.mxu0 0
          %2723 = vmatprep.subr.bf16.mxu0 0
          %2724 = vmatpush1.bf16.msra.mxu0 0
          %2725 = vmatprep.subr.bf16.mxu0 0
          %2726 = vmatpush1.bf16.msra.mxu0 0
          %2727 = vmatprep.subr.bf16.mxu0 0
          %2728 = vmatpush1.bf16.msra.mxu0 0
          %2729 = vmatprep.subr.bf16.mxu0 0
          %2730 = vmatpush1.bf16.msra.mxu0 0
          %2731 = vmatprep.subr.bf16.mxu0 0
          %2732 = vmatpush1.bf16.msra.mxu0 0
          %2733 = vmatprep.mubr.bf16.mxu0 0
          %2734 = vmatmul.mubr.bf16.gmra.mrb[0].mxu0 %v2629
          %v2735 = vpop.f32.mrb[0].mxu0
          %v2736 = vadd.f32 %v2651, %v2735
          %v2737 = vpop.f32.mrb[0].mxu0
          %v2738 = vpop.f32.mrb[0].mxu0
          %v2739 = vpop.f32.mrb[0].mxu0
          %2740 = vdwg.mxu0
          %2741 = vst [vmem:[#allocation18] sm:$0xff] %v2736
        $region88: #{tpu_custom_call.1} parent=55 // pred_fallthru
          _
        // Predicated region
        $region89: #{tpu_custom_call.1} parent=55 // pred_check
          %p2742 = pneg %p234
        $region90: #{tpu_custom_call.1} parent=55 // pred_check_branch
          %2744 = sbr.rel (%p2742) target = $region92
        $region91: #{tpu_custom_call.1} parent=55 // pred_region
          %s2746 = ssub.s32 128, 128
          %2747 = vsyncadd [#allocation9], %s2746
          %s2749 = sshll.u32 [#allocation18], 4
          %s2750 = int_to_ptr.vmem [resolvable:$true] %s2749
          %2752 = dma.vmem_to_hbm [thread:$0]  %s2750, 128, %s9, [#allocation9]
        $region92: #{tpu_custom_call.1} parent=55 // pred_fallthru
          _
        // Predicated region
        $region93: #{tpu_custom_call.1} parent=55 // pred_check
          %p2753 = pneg %p234
        $region94: #{tpu_custom_call.1} parent=55 // pred_check_branch
          %2755 = sbr.rel (%p2753) target = $region96
        $region95: #{tpu_custom_call.1} parent=55 // pred_region
          %2756 = dma.done [#allocation9], 128
        $region96: #{tpu_custom_call.1} parent=55 // pred_fallthru
          _
      $region56: #{tpu_custom_call.1} parent=5 // pred_fallthru
        _
      %p2757 = scmp.le.s32.totalorder 2, %s22
      // Predicated region
      $region97: #{tpu_custom_call.1} parent=5 // pred_check
        %p2758 = pneg %p2757
      $region98: #{tpu_custom_call.1} parent=5 // pred_check_branch
        %2760 = sbr.rel (%p2758) target = $region100
      $region99: #{tpu_custom_call.1} parent=5 // pred_region
        %s2761 = ssub.s32 %s22, 2
      $region100: #{tpu_custom_call.1} parent=5 // pred_fallthru
        _
    $region6: #{tpu_custom_call.1} parent=1 // loop_footer
      %s26 = sadd.s32 1, %s22
    $region7: #{tpu_custom_call.1} parent=1 // loop_footer_branch
      %21 = sbr.rel target = $region3
    $region8: #{tpu_custom_call.1} parent=1 // loop_exit
      _
    %2762 = vsyncpa [#allocation8], 1
    %s2763 = scalar_lea.sflag [#allocation8], 1
    %2764 = vsyncpa %s2763, 1
    %2765 = vsyncpa [#allocation11], 1
    %2766 = vsyncpa [#allocation14], 1
    %2767 = vsyncpa [#allocation17], 1
    %2768 = vsyncpa [#allocation9], 1
    %s2769 = scalar_lea.sflag [#allocation9], 1
    %2770 = vsyncpa %s2769, 1

</llo_original>
